<compile_context>
chip_gen: v7x
topology: tpu7x:2x2x1
jax: 0.10.0
libtpu: 0.0.40
codegen_flags: <defaults>
</compile_context>

<pallas_src>
import functools

import jax
import jax.numpy as jnp
from jax.experimental import pallas as pl
from jax.experimental.pallas import tpu as pltpu

EPS = 1e-5  # PyTorch LayerNorm default eps


def _round_up(x, m):
    return (x + m - 1) // m * m


@functools.lru_cache(maxsize=None)
def _vmem_limit_bytes():
    """Scoped-VMEM limit: physical capacity with ~25% compiler headroom."""
    try:
        cap = int(pltpu.get_tpu_info().vmem_capacity_bytes)
        return (cap * 3) // 4
    except Exception:
        return 48 * 1024 * 1024


@functools.lru_cache(maxsize=None)
def _single_buffer_supported():
    """Probe whether pipeline_mode=pl.Buffered(1) lowers on this JAX/TPU."""
    def _probe(x_ref, o_ref):
        o_ref[...] = x_ref[...] + 1.0

    try:
        with jax.ensure_compile_time_eval():
            fn = pl.pallas_call(
                _probe,
                out_shape=jax.ShapeDtypeStruct((8, 128), jnp.float32),
                grid=(2,),
                in_specs=[pl.BlockSpec((8, 128), lambda i: (0, 0),
                                       pipeline_mode=pl.Buffered(1))],
                out_specs=pl.BlockSpec((8, 128), lambda i: (0, 0)),
            )
            jax.block_until_ready(fn(jnp.zeros((8, 128), jnp.float32)))
        return True
    except Exception:
        return False


def _const_spec(shape, grid_rank=1):
    """BlockSpec for a grid-invariant (weight/bias) operand.

    Constant-index blocks are never re-fetched across the grid; single-buffer
    them (when Buffered(1) is supported) to halve their VMEM footprint.
    """
    imap = (lambda i: (0, 0)) if grid_rank == 1 else (lambda i, j: (0, 0))
    if _single_buffer_supported():
        return pl.BlockSpec(shape, imap, pipeline_mode=pl.Buffered(1))
    return pl.BlockSpec(shape, imap)


def _layernorm(x, g, b):
    mu = jnp.mean(x, axis=-1, keepdims=True)
    xc = x - mu
    var = jnp.mean(xc * xc, axis=-1, keepdims=True)
    return xc * jax.lax.rsqrt(var + EPS) * g + b


# --------------------------------------------------------------------------
# Kernel 1: input projection + positional-embedding add
#   grid = (batch, seq-tiles); pos is indexed by the seq-tile only and x is
#   cast to bf16 in-kernel; output is bf16 (feeds the bf16 encoder layers).
# --------------------------------------------------------------------------
def input_proj_kernel(x_ref, w_ref, b_ref, pos_ref, o_ref):
    x = x_ref[0].astype(jnp.bfloat16)                              # (ts, Din)
    y = jnp.dot(x, w_ref[...], preferred_element_type=jnp.float32)
    o_ref[0] = (y + b_ref[...] + pos_ref[...]).astype(o_ref.dtype)


def input_proj(x, w, b, pos):
    """x: (B,S,Din) f32, w: (Din,D) bf16, b: (1,D) f32, pos: (S,D) f32."""
    B, S, Din = x.shape
    D = w.shape[1]

    S_p = _round_up(S, 8)
    ts = S_p if S_p <= 512 else 512        # big seq tile: ~85% HBM roofline
    S_p = _round_up(S_p, ts)
    if S_p != S:
        x = jnp.pad(x, ((0, 0), (0, S_p - S), (0, 0)))
        pos = jnp.pad(pos, ((0, S_p - S), (0, 0)))

    out = pl.pallas_call(
        input_proj_kernel,
        out_shape=jax.ShapeDtypeStruct((B, S_p, D), jnp.bfloat16),
        grid=(B, S_p // ts),
        in_specs=[
            pl.BlockSpec((1, ts, Din), lambda i, j: (i, j, 0)),
            _const_spec((Din, D), grid_rank=2),
            _const_spec((1, D), grid_rank=2),
            pl.BlockSpec((ts, D), lambda i, j: (j, 0)),
        ],
        out_specs=pl.BlockSpec((1, ts, D), lambda i, j: (i, j, 0)),
        compiler_params=pltpu.CompilerParams(
            dimension_semantics=("parallel", "parallel"),
            vmem_limit_bytes=_vmem_limit_bytes()),
    )(x, w, b, pos)
    return out if S_p == S else out[:, :S]


# --------------------------------------------------------------------------
# Kernel 2: one fused TransformerEncoderLayer (post-LN, relu FFN), grid=batch
# --------------------------------------------------------------------------
def _encoder_layer_math(x, x_bf, num_heads, wqkv, bqkv, wo, bo,
                        ln1g, ln1b, w1, b1, w2, b2, ln2g, ln2b):
    """Post-LN encoder layer on one (S, D) sequence. x is f32, x_bf is bf16."""
    S, D = x.shape
    H = num_heads
    Dh = D // H
    scale = 1.0 / (Dh ** 0.5)

    # Fused QKV projection (bf16 MXU, f32 accumulate). Cast back to bf16
    # BEFORE the lane-crossing transpose: half the XLU traffic, and the MXU
    # consumes bf16 anyway.
    qkv = jnp.dot(x_bf, wqkv, preferred_element_type=jnp.float32) + bqkv
    qkv_t = qkv.astype(jnp.bfloat16).T.reshape(3 * H, Dh, S)        # (3H,Dh,S)

    # 1/sqrt(Dh) folded into q: H*S*Dh multiplies instead of H*S*S.
    q = jnp.transpose(qkv_t[:H] * scale, (0, 2, 1))                 # (H,S,Dh)
    kt = qkv_t[H:2 * H]                                             # (H,Dh,S)
    vt = qkv_t[2 * H:]                                              # (H,Dh,S)

    # Batched multi-head attention; softmax in f32.
    s = jnp.einsum('hqd,hdk->hqk', q, kt,
                   preferred_element_type=jnp.float32)              # (H,S,S)
    s = s - jnp.max(s, axis=-1, keepdims=True)
    p = jnp.exp(s)
    p = p * pl.reciprocal(jnp.sum(p, axis=-1, keepdims=True), approx=True)
    ctx_t = jnp.einsum('hdk,hqk->hdq', vt, p.astype(jnp.bfloat16),
                       preferred_element_type=jnp.float32)          # (H,Dh,S)

    # Head merge: leading-dim reshape + one bf16 2-D transpose.
    attn_in = ctx_t.astype(jnp.bfloat16).reshape(D, S).T            # (S,D) bf16
    attn = jnp.dot(attn_in, wo, preferred_element_type=jnp.float32) + bo

    # Residual + LayerNorm 1 (post-LN) in f32.
    x1 = _layernorm(x + attn, ln1g, ln1b)

    # Feed-forward (relu).
    h1 = jnp.dot(x1.astype(jnp.bfloat16), w1,
                 preferred_element_type=jnp.float32) + b1
    h1 = jnp.maximum(h1, 0.0)
    ff = jnp.dot(h1.astype(jnp.bfloat16), w2,
                 preferred_element_type=jnp.float32) + b2

    return _layernorm(x1 + ff, ln2g, ln2b)                          # (S,D) f32


def encoder_layer_kernel(num_heads, x_ref, wqkv_ref, bqkv_ref, wo_ref, bo_ref,
                         ln1g_ref, ln1b_ref, w1_ref, b1_ref, w2_ref, b2_ref,
                         ln2g_ref, ln2b_ref, o_ref):
    xin = x_ref[0]
    y = _encoder_layer_math(
        xin.astype(jnp.float32), xin.astype(jnp.bfloat16), num_heads,
        wqkv_ref[...], bqkv_ref[...], wo_ref[...], bo_ref[...],
        ln1g_ref[...], ln1b_ref[...], w1_ref[...], b1_ref[...],
        w2_ref[...], b2_ref[...], ln2g_ref[...], ln2b_ref[...])
    o_ref[0] = y.astype(o_ref.dtype)


def encoder_final_kernel(num_heads, x_ref, wqkv_ref, bqkv_ref, wo_ref, bo_ref,
                         ln1g_ref, ln1b_ref, w1_ref, b1_ref, w2_ref, b2_ref,
                         ln2g_ref, ln2b_ref, fing_ref, finb_ref, o_ref):
    """Last encoder layer fused with the mean-pool + final LayerNorm epilogue."""
    xin = x_ref[0]
    y = _encoder_layer_math(
        xin.astype(jnp.float32), xin.astype(jnp.bfloat16), num_heads,
        wqkv_ref[...], bqkv_ref[...], wo_ref[...], bo_ref[...],
        ln1g_ref[...], ln1b_ref[...], w1_ref[...], b1_ref[...],
        w2_ref[...], b2_ref[...], ln2g_ref[...], ln2b_ref[...])
    # Mean over the (unmasked, like the reference module) sequence dim.
    pooled = jnp.mean(y, axis=0, keepdims=True)                     # (1,D)
    o_ref[0] = _layernorm(pooled, fing_ref[...], finb_ref[...]).astype(o_ref.dtype)


def _layer_in_specs(S, D, Dff):
    return [
        pl.BlockSpec((1, S, D), lambda i: (i, 0, 0)),
        _const_spec((D, 3 * D)), _const_spec((1, 3 * D)),
        _const_spec((D, D)), _const_spec((1, D)),
        _const_spec((1, D)), _const_spec((1, D)),
        _const_spec((D, Dff)), _const_spec((1, Dff)),
        _const_spec((Dff, D)), _const_spec((1, D)),
        _const_spec((1, D)), _const_spec((1, D)),
    ]


def _layer_args(x, p):
    return (x, p["wqkv"], p["bqkv"], p["wo"], p["bo"],
            p["ln1g"], p["ln1b"], p["w1"], p["b1"],
            p["w2"], p["b2"], p["ln2g"], p["ln2b"])


def encoder_layer(x, p, num_heads):
    """Intermediate encoder layer; emits bf16 activations."""
    B, S, D = x.shape
    Dff = p["w1"].shape[1]
    return pl.pallas_call(
        functools.partial(encoder_layer_kernel, num_heads),
        out_shape=jax.ShapeDtypeStruct((B, S, D), jnp.bfloat16),
        grid=(B,),
        in_specs=_layer_in_specs(S, D, Dff),
        out_specs=pl.BlockSpec((1, S, D), lambda i: (i, 0, 0)),
        compiler_params=pltpu.CompilerParams(
            dimension_semantics=("parallel",),
            vmem_limit_bytes=_vmem_limit_bytes()),
    )(*_layer_args(x, p))


def encoder_layer_final(x, p, fin_g, fin_b, num_heads):
    """Last encoder layer + mean-pool + final LayerNorm; returns (B, D) f32."""
    B, S, D = x.shape
    Dff = p["w1"].shape[1]
    out = pl.pallas_call(
        functools.partial(encoder_final_kernel, num_heads),
        out_shape=jax.ShapeDtypeStruct((B, 1, D), jnp.float32),
        grid=(B,),
        in_specs=_layer_in_specs(S, D, Dff) + [_const_spec((1, D)),
                                               _const_spec((1, D))],
        out_specs=pl.BlockSpec((1, 1, D), lambda i: (i, 0, 0)),
        compiler_params=pltpu.CompilerParams(
            dimension_semantics=("parallel",),
            vmem_limit_bytes=_vmem_limit_bytes()),
    )(*_layer_args(x, p), fin_g, fin_b)
    return out[:, 0, :]


# --------------------------------------------------------------------------
# Parameter init (deterministic, synthetic) + full forward
# --------------------------------------------------------------------------
def init_params(key, input_dim, embed_dim, num_layers, num_heads, max_seq):
    dff = 4 * embed_dim

    def w_bf16(k, shape, scale=0.02):   # matmul weights stored in bf16
        return (jax.random.normal(k, shape, jnp.float32) * scale).astype(jnp.bfloat16)

    keys = jax.random.split(key, 3 + num_layers)
    params = {
        "in_w": w_bf16(keys[0], (input_dim, embed_dim)),
        "in_b": jnp.zeros((1, embed_dim), jnp.float32),
        "pos": jax.random.normal(keys[1], (max_seq, embed_dim), jnp.float32) * 0.02,
        "fin_g": jnp.ones((1, embed_dim), jnp.float32),
        "fin_b": jnp.zeros((1, embed_dim), jnp.float32),
        "layers": [],
    }
    for l in range(num_layers):
        lk = jax.random.split(keys[3 + l], 4)
        params["layers"].append({
            "wqkv": w_bf16(lk[0], (embed_dim, 3 * embed_dim)),
            "bqkv": jnp.zeros((1, 3 * embed_dim), jnp.float32),
            "wo": w_bf16(lk[1], (embed_dim, embed_dim)),
            "bo": jnp.zeros((1, embed_dim), jnp.float32),
            "ln1g": jnp.ones((1, embed_dim), jnp.float32),
            "ln1b": jnp.zeros((1, embed_dim), jnp.float32),
            "w1": w_bf16(lk[2], (embed_dim, dff)),
            "b1": jnp.zeros((1, dff), jnp.float32),
            "w2": w_bf16(lk[3], (dff, embed_dim)),
            "b2": jnp.zeros((1, embed_dim), jnp.float32),
            "ln2g": jnp.ones((1, embed_dim), jnp.float32),
            "ln2b": jnp.zeros((1, embed_dim), jnp.float32),
        })
    return params


def audio_feature_encoder(x, params, num_heads):
    S = x.shape[1]
    h = input_proj(x, params["in_w"], params["in_b"], params["pos"][:S])
    layers = params["layers"]
    for lp in layers[:-1]:
        h = encoder_layer(h, lp, num_heads)
    return encoder_layer_final(h, layers[-1], params["fin_g"], params["fin_b"],
                               num_heads)


if __name__ == "__main__":
    # Small shapes consistent with the module (scaled-down hyperparameters).
    B, S = 2, 8
    INPUT_DIM, EMBED_DIM = 64, 128
    NUM_LAYERS, NUM_HEADS = 2, 8
    MAX_SEQ = 64
    assert EMBED_DIM % NUM_HEADS == 0

    # Prime the (eager) feature probes before entering jit tracing.
    _single_buffer_supported()
    _vmem_limit_bytes()

    key = jax.random.PRNGKey(0)
    k_x, k_p = jax.random.split(key)
    x = jax.random.normal(k_x, (B, S, INPUT_DIM), jnp.float32)
    params = init_params(k_p, INPUT_DIM, EMBED_DIM, NUM_LAYERS, NUM_HEADS, MAX_SEQ)

    fwd = jax.jit(functools.partial(audio_feature_encoder, num_heads=NUM_HEADS))
    out = jax.block_until_ready(fwd(x, params))

    assert out.shape == (B, EMBED_DIM), out.shape
    assert bool(jnp.all(jnp.isfinite(out)))
    print("KERNEL_OK")
</pallas_src>

<mosaic_0001>
module attributes {stable_mosaic.version = 11 : i64} {
  func.func @_probe(%arg0: i32, %arg1: memref<8x128xf32, #tpu.memory_space<vmem>>, %arg2: memref<8x128xf32, #tpu.memory_space<vmem>>) attributes {dimension_semantics = [#tpu.dimension_semantics<arbitrary>], iteration_bounds = array<i64: 2>, scalar_prefetch = 0 : i64, scratch_operands = 0 : i64, tpu.core_type = #tpu.core_type<tc>, window_params = [{pipeline_mode = #tpu.pipeline_mode<synchronous>, transform_indices = @transform_0, window_bounds = array<i64: 8, 128>}, {pipeline_mode = #tpu.pipeline_mode<synchronous>, transform_indices = @transform_1, window_bounds = array<i64: 8, 128>}]} {
    %c0 = arith.constant 0 : index
    %c0_0 = arith.constant 0 : index
    %0 = vector.load %arg1[%c0, %c0_0] : memref<8x128xf32, #tpu.memory_space<vmem>>, vector<8x128xf32>
    %cst = arith.constant 1.000000e+00 : f32
    %1 = vector.broadcast %cst : f32 to vector<8x128xf32>
    %2 = arith.addf %0, %1 : vector<8x128xf32>
    %c0_1 = arith.constant 0 : index
    %c0_2 = arith.constant 0 : index
    %3 = vector.load %arg2[%c0_1, %c0_2] : memref<8x128xf32, #tpu.memory_space<vmem>>, vector<8x128xf32>
    tpu.vector_store %arg2[%c0_1, %c0_2], %2 {strides = array<i32>} : memref<8x128xf32, #tpu.memory_space<vmem>>, vector<8x128xf32>,
    return
  }
  func.func @transform_0(%arg0: i32) -> (i32, i32) {
    %c0_i32 = arith.constant 0 : i32
    %c0_i32_0 = arith.constant 0 : i32
    %c0_i32_1 = arith.constant 0 : i32
    return %c0_i32, %c0_i32_0 : i32, i32
  }
  func.func @transform_1(%arg0: i32) -> (i32, i32) {
    %c0_i32 = arith.constant 0 : i32
    %c0_i32_0 = arith.constant 0 : i32
    %c0_i32_1 = arith.constant 0 : i32
    return %c0_i32, %c0_i32_0 : i32, i32
  }
}

module attributes {stable_mosaic.version = 11 : i64} {
  func.func @encoder_final_kernel(%arg0: i32, %arg1: memref<1x8x128xbf16, #tpu.memory_space<vmem>>, %arg2: memref<128x384xbf16, #tpu.memory_space<vmem>>, %arg3: memref<1x384xf32, #tpu.memory_space<vmem>>, %arg4: memref<128x128xbf16, #tpu.memory_space<vmem>>, %arg5: memref<1x128xf32, #tpu.memory_space<vmem>>, %arg6: memref<1x128xf32, #tpu.memory_space<vmem>>, %arg7: memref<1x128xf32, #tpu.memory_space<vmem>>, %arg8: memref<128x512xbf16, #tpu.memory_space<vmem>>, %arg9: memref<1x512xf32, #tpu.memory_space<vmem>>, %arg10: memref<512x128xbf16, #tpu.memory_space<vmem>>, %arg11: memref<1x128xf32, #tpu.memory_space<vmem>>, %arg12: memref<1x128xf32, #tpu.memory_space<vmem>>, %arg13: memref<1x128xf32, #tpu.memory_space<vmem>>, %arg14: memref<1x128xf32, #tpu.memory_space<vmem>>, %arg15: memref<1x128xf32, #tpu.memory_space<vmem>>, %arg16: memref<1x1x128xf32, #tpu.memory_space<vmem>>) attributes {dimension_semantics = [#tpu.dimension_semantics<parallel>], iteration_bounds = array<i64: 2>, scalar_prefetch = 0 : i64, scratch_operands = 0 : i64, tpu.core_type = #tpu.core_type<tc>, window_params = [{transform_indices = @transform_0, window_bounds = array<i64: 1, 8, 128>}, {pipeline_mode = #tpu.pipeline_mode<synchronous>, transform_indices = @transform_1, window_bounds = array<i64: 128, 384>}, {pipeline_mode = #tpu.pipeline_mode<synchronous>, transform_indices = @transform_2, window_bounds = array<i64: 1, 384>}, {pipeline_mode = #tpu.pipeline_mode<synchronous>, transform_indices = @transform_3, window_bounds = array<i64: 128, 128>}, {pipeline_mode = #tpu.pipeline_mode<synchronous>, transform_indices = @transform_4, window_bounds = array<i64: 1, 128>}, {pipeline_mode = #tpu.pipeline_mode<synchronous>, transform_indices = @transform_5, window_bounds = array<i64: 1, 128>}, {pipeline_mode = #tpu.pipeline_mode<synchronous>, transform_indices = @transform_6, window_bounds = array<i64: 1, 128>}, {pipeline_mode = #tpu.pipeline_mode<synchronous>, transform_indices = @transform_7, window_bounds = array<i64: 128, 512>}, {pipeline_mode = #tpu.pipeline_mode<synchronous>, transform_indices = @transform_8, window_bounds = array<i64: 1, 512>}, {pipeline_mode = #tpu.pipeline_mode<synchronous>, transform_indices = @transform_9, window_bounds = array<i64: 512, 128>}, {pipeline_mode = #tpu.pipeline_mode<synchronous>, transform_indices = @transform_10, window_bounds = array<i64: 1, 128>}, {pipeline_mode = #tpu.pipeline_mode<synchronous>, transform_indices = @transform_11, window_bounds = array<i64: 1, 128>}, {pipeline_mode = #tpu.pipeline_mode<synchronous>, transform_indices = @transform_12, window_bounds = array<i64: 1, 128>}, {pipeline_mode = #tpu.pipeline_mode<synchronous>, transform_indices = @transform_13, window_bounds = array<i64: 1, 128>}, {pipeline_mode = #tpu.pipeline_mode<synchronous>, transform_indices = @transform_14, window_bounds = array<i64: 1, 128>}, {transform_indices = @transform_15, window_bounds = array<i64: 1, 1, 128>}]} {
    %c0 = arith.constant 0 : index
    %c0_0 = arith.constant 0 : index
    %c0_1 = arith.constant 0 : index
    %0 = vector.load %arg1[%c0, %c0_0, %c0_1] : memref<1x8x128xbf16, #tpu.memory_space<vmem>>, vector<1x8x128xbf16>
    %1 = vector.shape_cast %0 : vector<1x8x128xbf16> to vector<8x128xbf16>
    %2 = arith.extf %1 : vector<8x128xbf16> to vector<8x128xf32>
    %c0_2 = arith.constant 0 : index
    %c0_3 = arith.constant 0 : index
    %3 = vector.load %arg2[%c0_2, %c0_3] : memref<128x384xbf16, #tpu.memory_space<vmem>>, vector<128x384xbf16>
    %c0_4 = arith.constant 0 : index
    %c0_5 = arith.constant 0 : index
    %4 = vector.load %arg3[%c0_4, %c0_5] : memref<1x384xf32, #tpu.memory_space<vmem>>, vector<1x384xf32>
    %c0_6 = arith.constant 0 : index
    %c0_7 = arith.constant 0 : index
    %5 = vector.load %arg4[%c0_6, %c0_7] : memref<128x128xbf16, #tpu.memory_space<vmem>>, vector<128x128xbf16>
    %c0_8 = arith.constant 0 : index
    %c0_9 = arith.constant 0 : index
    %6 = vector.load %arg5[%c0_8, %c0_9] : memref<1x128xf32, #tpu.memory_space<vmem>>, vector<1x128xf32>
    %c0_10 = arith.constant 0 : index
    %c0_11 = arith.constant 0 : index
    %7 = vector.load %arg6[%c0_10, %c0_11] : memref<1x128xf32, #tpu.memory_space<vmem>>, vector<1x128xf32>
    %c0_12 = arith.constant 0 : index
    %c0_13 = arith.constant 0 : index
    %8 = vector.load %arg7[%c0_12, %c0_13] : memref<1x128xf32, #tpu.memory_space<vmem>>, vector<1x128xf32>
    %c0_14 = arith.constant 0 : index
    %c0_15 = arith.constant 0 : index
    %9 = vector.load %arg8[%c0_14, %c0_15] : memref<128x512xbf16, #tpu.memory_space<vmem>>, vector<128x512xbf16>
    %c0_16 = arith.constant 0 : index
    %c0_17 = arith.constant 0 : index
    %10 = vector.load %arg9[%c0_16, %c0_17] : memref<1x512xf32, #tpu.memory_space<vmem>>, vector<1x512xf32>
    %c0_18 = arith.constant 0 : index
    %c0_19 = arith.constant 0 : index
    %11 = vector.load %arg10[%c0_18, %c0_19] : memref<512x128xbf16, #tpu.memory_space<vmem>>, vector<512x128xbf16>
    %c0_20 = arith.constant 0 : index
    %c0_21 = arith.constant 0 : index
    %12 = vector.load %arg11[%c0_20, %c0_21] : memref<1x128xf32, #tpu.memory_space<vmem>>, vector<1x128xf32>
    %c0_22 = arith.constant 0 : index
    %c0_23 = arith.constant 0 : index
    %13 = vector.load %arg12[%c0_22, %c0_23] : memref<1x128xf32, #tpu.memory_space<vmem>>, vector<1x128xf32>
    %c0_24 = arith.constant 0 : index
    %c0_25 = arith.constant 0 : index
    %14 = vector.load %arg13[%c0_24, %c0_25] : memref<1x128xf32, #tpu.memory_space<vmem>>, vector<1x128xf32>
    %cst = arith.constant dense<0.000000e+00> : vector<8x384xf32>
    %15 = tpu.matmul %1, %3, %cst {dimension_numbers = #tpu.dot_dimension_numbers<[1], [0], [0], [1], [0, 0, 1, 1], [], []>} : vector<8x128xbf16>, vector<128x384xbf16>, vector<8x384xf32> -> vector<8x384xf32>
    %16 = vector.broadcast %4 : vector<1x384xf32> to vector<8x384xf32>
    %17 = arith.addf %15, %16 : vector<8x384xf32>
    %18 = arith.truncf %17 : vector<8x384xf32> to vector<8x384xbf16>
    %19 = tpu.transpose %18, [1, 0] : vector<8x384xbf16> -> vector<384x8xbf16>
    %20 = vector.shape_cast %19 : vector<384x8xbf16> to vector<24x16x8xbf16>
    %21 = vector.extract_strided_slice %20 {offsets = [0, 0, 0], sizes = [8, 16, 8], strides = [1, 1, 1]} : vector<24x16x8xbf16> to vector<8x16x8xbf16>
    %cst_26 = arith.constant 2.500000e-01 : bf16
    %22 = vector.broadcast %cst_26 : bf16 to vector<8x16x8xbf16>
    %23 = arith.mulf %21, %22 : vector<8x16x8xbf16>
    %24 = tpu.transpose %23, [0, 2, 1] : vector<8x16x8xbf16> -> vector<8x8x16xbf16>
    %25 = vector.extract_strided_slice %20 {offsets = [8, 0, 0], sizes = [8, 16, 8], strides = [1, 1, 1]} : vector<24x16x8xbf16> to vector<8x16x8xbf16>
    %26 = vector.extract_strided_slice %20 {offsets = [16, 0, 0], sizes = [8, 16, 8], strides = [1, 1, 1]} : vector<24x16x8xbf16> to vector<8x16x8xbf16>
    "tpu.trace_start"() <{level = 10 : i32, message = "hqd,hdk->hqk"}> : () -> ()
    %cst_27 = arith.constant dense<0.000000e+00> : vector<8x8x8xf32>
    %27 = tpu.matmul %24, %25, %cst_27 {dimension_numbers = #tpu.dot_dimension_numbers<[2], [1], [1], [2], [0, 0, 0, 1, 1, 2], [0], [0]>} : vector<8x8x16xbf16>, vector<8x16x8xbf16>, vector<8x8x8xf32> -> vector<8x8x8xf32>
    "tpu.trace_stop"() : () -> ()
    %cst_28 = arith.constant dense<0xFF800000> : vector<8x8xf32>
    %28 = vector.multi_reduction <maximumf>, %27, %cst_28 [2] : vector<8x8x8xf32> to vector<8x8xf32>
    %29 = vector.shape_cast %28 : vector<8x8xf32> to vector<8x8x1xf32>
    %30 = vector.broadcast %29 : vector<8x8x1xf32> to vector<8x8x8xf32>
    %31 = arith.subf %27, %30 : vector<8x8x8xf32>
    %32 = math.exp %31 : vector<8x8x8xf32>
    %cst_29 = arith.constant dense<0.000000e+00> : vector<8x8xf32>
    %33 = vector.multi_reduction <add>, %32, %cst_29 [2] : vector<8x8x8xf32> to vector<8x8xf32>
    %34 = vector.shape_cast %33 : vector<8x8xf32> to vector<8x8x1xf32>
    %35 = tpu.reciprocal %34 {approx = true} : vector<8x8x1xf32> -> vector<8x8x1xf32>
    %36 = vector.broadcast %35 : vector<8x8x1xf32> to vector<8x8x8xf32>
    %37 = arith.mulf %32, %36 : vector<8x8x8xf32>
    %38 = arith.truncf %37 : vector<8x8x8xf32> to vector<8x8x8xbf16>
    "tpu.trace_start"() <{level = 10 : i32, message = "hdk,hqk->hdq"}> : () -> ()
    %cst_30 = arith.constant dense<0.000000e+00> : vector<8x16x8xf32>
    %39 = tpu.matmul %26, %38, %cst_30 {dimension_numbers = #tpu.dot_dimension_numbers<[2], [2], [1], [1], [0, 0, 0, 1, 1, 1], [0], [0]>} : vector<8x16x8xbf16>, vector<8x8x8xbf16>, vector<8x16x8xf32> -> vector<8x16x8xf32>
    "tpu.trace_stop"() : () -> ()
    %40 = arith.truncf %39 : vector<8x16x8xf32> to vector<8x16x8xbf16>
    %41 = vector.shape_cast %40 : vector<8x16x8xbf16> to vector<128x8xbf16>
    %42 = tpu.transpose %41, [1, 0] : vector<128x8xbf16> -> vector<8x128xbf16>
    %cst_31 = arith.constant dense<0.000000e+00> : vector<8x128xf32>
    %43 = tpu.matmul %42, %5, %cst_31 {dimension_numbers = #tpu.dot_dimension_numbers<[1], [0], [0], [1], [0, 0, 1, 1], [], []>} : vector<8x128xbf16>, vector<128x128xbf16>, vector<8x128xf32> -> vector<8x128xf32>
    %44 = vector.broadcast %6 : vector<1x128xf32> to vector<8x128xf32>
    %45 = arith.addf %43, %44 : vector<8x128xf32>
    %46 = arith.addf %2, %45 : vector<8x128xf32>
    %cst_32 = arith.constant dense<0.000000e+00> : vector<8xf32>
    %47 = vector.multi_reduction <add>, %46, %cst_32 [1] : vector<8x128xf32> to vector<8xf32>
    %48 = vector.shape_cast %47 : vector<8xf32> to vector<8x1xf32>
    %cst_33 = arith.constant 1.280000e+02 : f32
    %49 = vector.broadcast %cst_33 : f32 to vector<8x1xf32>
    %50 = arith.divf %48, %49 : vector<8x1xf32>
    %51 = vector.broadcast %50 : vector<8x1xf32> to vector<8x128xf32>
    %52 = arith.subf %46, %51 : vector<8x128xf32>
    %53 = arith.mulf %52, %52 : vector<8x128xf32>
    %cst_34 = arith.constant dense<0.000000e+00> : vector<8xf32>
    %54 = vector.multi_reduction <add>, %53, %cst_34 [1] : vector<8x128xf32> to vector<8xf32>
    %55 = vector.shape_cast %54 : vector<8xf32> to vector<8x1xf32>
    %cst_35 = arith.constant 1.280000e+02 : f32
    %56 = vector.broadcast %cst_35 : f32 to vector<8x1xf32>
    %57 = arith.divf %55, %56 : vector<8x1xf32>
    %cst_36 = arith.constant 9.99999974E-6 : f32
    %58 = vector.broadcast %cst_36 : f32 to vector<8x1xf32>
    %59 = arith.addf %57, %58 : vector<8x1xf32>
    %60 = math.rsqrt %59 : vector<8x1xf32>
    %61 = vector.broadcast %60 : vector<8x1xf32> to vector<8x128xf32>
    %62 = arith.mulf %52, %61 : vector<8x128xf32>
    %63 = vector.broadcast %7 : vector<1x128xf32> to vector<8x128xf32>
    %64 = arith.mulf %62, %63 : vector<8x128xf32>
    %65 = vector.broadcast %8 : vector<1x128xf32> to vector<8x128xf32>
    %66 = arith.addf %64, %65 : vector<8x128xf32>
    %67 = arith.truncf %66 : vector<8x128xf32> to vector<8x128xbf16>
    %cst_37 = arith.constant dense<0.000000e+00> : vector<8x512xf32>
    %68 = tpu.matmul %67, %9, %cst_37 {dimension_numbers = #tpu.dot_dimension_numbers<[1], [0], [0], [1], [0, 0, 1, 1], [], []>} : vector<8x128xbf16>, vector<128x512xbf16>, vector<8x512xf32> -> vector<8x512xf32>
    %69 = vector.broadcast %10 : vector<1x512xf32> to vector<8x512xf32>
    %70 = arith.addf %68, %69 : vector<8x512xf32>
    %cst_38 = arith.constant 0.000000e+00 : f32
    %71 = vector.broadcast %cst_38 : f32 to vector<8x512xf32>
    %72 = arith.maximumf %70, %71 : vector<8x512xf32>
    %73 = arith.truncf %72 : vector<8x512xf32> to vector<8x512xbf16>
    %cst_39 = arith.constant dense<0.000000e+00> : vector<8x128xf32>
    %74 = tpu.matmul %73, %11, %cst_39 {dimension_numbers = #tpu.dot_dimension_numbers<[1], [0], [0], [1], [0, 0, 1, 1], [], []>} : vector<8x512xbf16>, vector<512x128xbf16>, vector<8x128xf32> -> vector<8x128xf32>
    %75 = vector.broadcast %12 : vector<1x128xf32> to vector<8x128xf32>
    %76 = arith.addf %74, %75 : vector<8x128xf32>
    %77 = arith.addf %66, %76 : vector<8x128xf32>
    %cst_40 = arith.constant dense<0.000000e+00> : vector<8xf32>
    %78 = vector.multi_reduction <add>, %77, %cst_40 [1] : vector<8x128xf32> to vector<8xf32>
    %79 = vector.shape_cast %78 : vector<8xf32> to vector<8x1xf32>
    %cst_41 = arith.constant 1.280000e+02 : f32
    %80 = vector.broadcast %cst_41 : f32 to vector<8x1xf32>
    %81 = arith.divf %79, %80 : vector<8x1xf32>
    %82 = vector.broadcast %81 : vector<8x1xf32> to vector<8x128xf32>
    %83 = arith.subf %77, %82 : vector<8x128xf32>
    %84 = arith.mulf %83, %83 : vector<8x128xf32>
    %cst_42 = arith.constant dense<0.000000e+00> : vector<8xf32>
    %85 = vector.multi_reduction <add>, %84, %cst_42 [1] : vector<8x128xf32> to vector<8xf32>
    %86 = vector.shape_cast %85 : vector<8xf32> to vector<8x1xf32>
    %cst_43 = arith.constant 1.280000e+02 : f32
    %87 = vector.broadcast %cst_43 : f32 to vector<8x1xf32>
    %88 = arith.divf %86, %87 : vector<8x1xf32>
    %cst_44 = arith.constant 9.99999974E-6 : f32
    %89 = vector.broadcast %cst_44 : f32 to vector<8x1xf32>
    %90 = arith.addf %88, %89 : vector<8x1xf32>
    %91 = math.rsqrt %90 : vector<8x1xf32>
    %92 = vector.broadcast %91 : vector<8x1xf32> to vector<8x128xf32>
    %93 = arith.mulf %83, %92 : vector<8x128xf32>
    %94 = vector.broadcast %13 : vector<1x128xf32> to vector<8x128xf32>
    %95 = arith.mulf %93, %94 : vector<8x128xf32>
    %96 = vector.broadcast %14 : vector<1x128xf32> to vector<8x128xf32>
    %97 = arith.addf %95, %96 : vector<8x128xf32>
    %cst_45 = arith.constant dense<0.000000e+00> : vector<128xf32>
    %98 = vector.multi_reduction <add>, %97, %cst_45 [0] : vector<8x128xf32> to vector<128xf32>
    %99 = vector.shape_cast %98 : vector<128xf32> to vector<1x128xf32>
    %cst_46 = arith.constant 8.000000e+00 : f32
    %100 = vector.broadcast %cst_46 : f32 to vector<1x128xf32>
    %101 = arith.divf %99, %100 : vector<1x128xf32>
    %c0_47 = arith.constant 0 : index
    %c0_48 = arith.constant 0 : index
    %102 = vector.load %arg14[%c0_47, %c0_48] : memref<1x128xf32, #tpu.memory_space<vmem>>, vector<1x128xf32>
    %c0_49 = arith.constant 0 : index
    %c0_50 = arith.constant 0 : index
    %103 = vector.load %arg15[%c0_49, %c0_50] : memref<1x128xf32, #tpu.memory_space<vmem>>, vector<1x128xf32>
    %cst_51 = arith.constant dense<0.000000e+00> : vector<1xf32>
    %104 = vector.multi_reduction <add>, %101, %cst_51 [1] : vector<1x128xf32> to vector<1xf32>
    %105 = vector.shape_cast %104 : vector<1xf32> to vector<1x1xf32>
    %cst_52 = arith.constant 1.280000e+02 : f32
    %106 = vector.broadcast %cst_52 : f32 to vector<1x1xf32>
    %107 = arith.divf %105, %106 : vector<1x1xf32>
    %108 = vector.broadcast %107 : vector<1x1xf32> to vector<1x128xf32>
    %109 = arith.subf %101, %108 : vector<1x128xf32>
    %110 = arith.mulf %109, %109 : vector<1x128xf32>
    %cst_53 = arith.constant dense<0.000000e+00> : vector<1xf32>
    %111 = vector.multi_reduction <add>, %110, %cst_53 [1] : vector<1x128xf32> to vector<1xf32>
    %112 = vector.shape_cast %111 : vector<1xf32> to vector<1x1xf32>
    %cst_54 = arith.constant 1.280000e+02 : f32
    %113 = vector.broadcast %cst_54 : f32 to vector<1x1xf32>
    %114 = arith.divf %112, %113 : vector<1x1xf32>
    %cst_55 = arith.constant 9.99999974E-6 : f32
    %115 = vector.broadcast %cst_55 : f32 to vector<1x1xf32>
    %116 = arith.addf %114, %115 : vector<1x1xf32>
    %117 = math.rsqrt %116 : vector<1x1xf32>
    %118 = vector.broadcast %117 : vector<1x1xf32> to vector<1x128xf32>
    %119 = arith.mulf %109, %118 : vector<1x128xf32>
    %120 = arith.mulf %119, %102 : vector<1x128xf32>
    %121 = arith.addf %120, %103 : vector<1x128xf32>
    %c0_56 = arith.constant 0 : index
    %c0_57 = arith.constant 0 : index
    %c0_58 = arith.constant 0 : index
    %122 = vector.load %arg16[%c0_56, %c0_57, %c0_58] : memref<1x1x128xf32, #tpu.memory_space<vmem>>, vector<1x1x128xf32>
    %123 = vector.shape_cast %122 : vector<1x1x128xf32> to vector<1x128xf32>
    %124 = vector.shape_cast %121 : vector<1x128xf32> to vector<1x1x128xf32>
    tpu.vector_store %arg16[%c0_56, %c0_57, %c0_58], %124 {strides = array<i32>} : memref<1x1x128xf32, #tpu.memory_space<vmem>>, vector<1x1x128xf32>,
    return
  }
  func.func @transform_0(%arg0: i32) -> (i32, i32, i32) {
    %c0_i32 = arith.constant 0 : i32
    %c0_i32_0 = arith.constant 0 : i32
    %c0_i32_1 = arith.constant 0 : i32
    return %arg0, %c0_i32, %c0_i32_0 : i32, i32, i32
  }
  func.func @transform_1(%arg0: i32) -> (i32, i32) {
    %c0_i32 = arith.constant 0 : i32
    %c0_i32_0 = arith.constant 0 : i32
    %c0_i32_1 = arith.constant 0 : i32
    return %c0_i32, %c0_i32_0 : i32, i32
  }
  func.func @transform_2(%arg0: i32) -> (i32, i32) {
    %c0_i32 = arith.constant 0 : i32
    %c0_i32_0 = arith.constant 0 : i32
    %c0_i32_1 = arith.constant 0 : i32
    return %c0_i32, %c0_i32_0 : i32, i32
  }
  func.func @transform_3(%arg0: i32) -> (i32, i32) {
    %c0_i32 = arith.constant 0 : i32
    %c0_i32_0 = arith.constant 0 : i32
    %c0_i32_1 = arith.constant 0 : i32
    return %c0_i32, %c0_i32_0 : i32, i32
  }
  func.func @transform_4(%arg0: i32) -> (i32, i32) {
    %c0_i32 = arith.constant 0 : i32
    %c0_i32_0 = arith.constant 0 : i32
    %c0_i32_1 = arith.constant 0 : i32
    return %c0_i32, %c0_i32_0 : i32, i32
  }
  func.func @transform_5(%arg0: i32) -> (i32, i32) {
    %c0_i32 = arith.constant 0 : i32
    %c0_i32_0 = arith.constant 0 : i32
    %c0_i32_1 = arith.constant 0 : i32
    return %c0_i32, %c0_i32_0 : i32, i32
  }
  func.func @transform_6(%arg0: i32) -> (i32, i32) {
    %c0_i32 = arith.constant 0 : i32
    %c0_i32_0 = arith.constant 0 : i32
    %c0_i32_1 = arith.constant 0 : i32
    return %c0_i32, %c0_i32_0 : i32, i32
  }
  func.func @transform_7(%arg0: i32) -> (i32, i32) {
    %c0_i32 = arith.constant 0 : i32
    %c0_i32_0 = arith.constant 0 : i32
    %c0_i32_1 = arith.constant 0 : i32
    return %c0_i32, %c0_i32_0 : i32, i32
  }
  func.func @transform_8(%arg0: i32) -> (i32, i32) {
    %c0_i32 = arith.constant 0 : i32
    %c0_i32_0 = arith.constant 0 : i32
    %c0_i32_1 = arith.constant 0 : i32
    return %c0_i32, %c0_i32_0 : i32, i32
  }
  func.func @transform_9(%arg0: i32) -> (i32, i32) {
    %c0_i32 = arith.constant 0 : i32
    %c0_i32_0 = arith.constant 0 : i32
    %c0_i32_1 = arith.constant 0 : i32
    return %c0_i32, %c0_i32_0 : i32, i32
  }
  func.func @transform_10(%arg0: i32) -> (i32, i32) {
    %c0_i32 = arith.constant 0 : i32
    %c0_i32_0 = arith.constant 0 : i32
    %c0_i32_1 = arith.constant 0 : i32
    return %c0_i32, %c0_i32_0 : i32, i32
  }
  func.func @transform_11(%arg0: i32) -> (i32, i32) {
    %c0_i32 = arith.constant 0 : i32
    %c0_i32_0 = arith.constant 0 : i32
    %c0_i32_1 = arith.constant 0 : i32
    return %c0_i32, %c0_i32_0 : i32, i32
  }
  func.func @transform_12(%arg0: i32) -> (i32, i32) {
    %c0_i32 = arith.constant 0 : i32
    %c0_i32_0 = arith.constant 0 : i32
    %c0_i32_1 = arith.constant 0 : i32
    return %c0_i32, %c0_i32_0 : i32, i32
  }
  func.func @transform_13(%arg0: i32) -> (i32, i32) {
    %c0_i32 = arith.constant 0 : i32
    %c0_i32_0 = arith.constant 0 : i32
    %c0_i32_1 = arith.constant 0 : i32
    return %c0_i32, %c0_i32_0 : i32, i32
  }
  func.func @transform_14(%arg0: i32) -> (i32, i32) {
    %c0_i32 = arith.constant 0 : i32
    %c0_i32_0 = arith.constant 0 : i32
    %c0_i32_1 = arith.constant 0 : i32
    return %c0_i32, %c0_i32_0 : i32, i32
  }
  func.func @transform_15(%arg0: i32) -> (i32, i32, i32) {
    %c0_i32 = arith.constant 0 : i32
    %c0_i32_0 = arith.constant 0 : i32
    %c0_i32_1 = arith.constant 0 : i32
    return %arg0, %c0_i32, %c0_i32_0 : i32, i32, i32
  }
}

module attributes {stable_mosaic.version = 11 : i64} {
  func.func @input_proj_kernel(%arg0: i32, %arg1: i32, %arg2: memref<1x8x64xf32, #tpu.memory_space<vmem>>, %arg3: memref<64x128xbf16, #tpu.memory_space<vmem>>, %arg4: memref<1x128xf32, #tpu.memory_space<vmem>>, %arg5: memref<8x128xf32, #tpu.memory_space<vmem>>, %arg6: memref<1x8x128xbf16, #tpu.memory_space<vmem>>) attributes {dimension_semantics = [#tpu.dimension_semantics<parallel>, #tpu.dimension_semantics<parallel>], iteration_bounds = array<i64: 2, 1>, scalar_prefetch = 0 : i64, scratch_operands = 0 : i64, tpu.core_type = #tpu.core_type<tc>, window_params = [{transform_indices = @transform_0, window_bounds = array<i64: 1, 8, 64>}, {pipeline_mode = #tpu.pipeline_mode<synchronous>, transform_indices = @transform_1, window_bounds = array<i64: 64, 128>}, {pipeline_mode = #tpu.pipeline_mode<synchronous>, transform_indices = @transform_2, window_bounds = array<i64: 1, 128>}, {transform_indices = @transform_3, window_bounds = array<i64: 8, 128>}, {transform_indices = @transform_4, window_bounds = array<i64: 1, 8, 128>}]} {
    %c0 = arith.constant 0 : index
    %c0_0 = arith.constant 0 : index
    %c0_1 = arith.constant 0 : index
    %0 = vector.load %arg2[%c0, %c0_0, %c0_1] : memref<1x8x64xf32, #tpu.memory_space<vmem>>, vector<1x8x64xf32>
    %1 = vector.shape_cast %0 : vector<1x8x64xf32> to vector<8x64xf32>
    %2 = arith.truncf %1 : vector<8x64xf32> to vector<8x64xbf16>
    %c0_2 = arith.constant 0 : index
    %c0_3 = arith.constant 0 : index
    %3 = vector.load %arg3[%c0_2, %c0_3] : memref<64x128xbf16, #tpu.memory_space<vmem>>, vector<64x128xbf16>
    %cst = arith.constant dense<0.000000e+00> : vector<8x128xf32>
    %4 = tpu.matmul %2, %3, %cst {dimension_numbers = #tpu.dot_dimension_numbers<[1], [0], [0], [1], [0, 0, 1, 1], [], []>} : vector<8x64xbf16>, vector<64x128xbf16>, vector<8x128xf32> -> vector<8x128xf32>
    %c0_4 = arith.constant 0 : index
    %c0_5 = arith.constant 0 : index
    %5 = vector.load %arg4[%c0_4, %c0_5] : memref<1x128xf32, #tpu.memory_space<vmem>>, vector<1x128xf32>
    %6 = vector.broadcast %5 : vector<1x128xf32> to vector<8x128xf32>
    %7 = arith.addf %4, %6 : vector<8x128xf32>
    %c0_6 = arith.constant 0 : index
    %c0_7 = arith.constant 0 : index
    %8 = vector.load %arg5[%c0_6, %c0_7] : memref<8x128xf32, #tpu.memory_space<vmem>>, vector<8x128xf32>
    %9 = arith.addf %7, %8 : vector<8x128xf32>
    %10 = arith.truncf %9 : vector<8x128xf32> to vector<8x128xbf16>
    %c0_8 = arith.constant 0 : index
    %c0_9 = arith.constant 0 : index
    %c0_10 = arith.constant 0 : index
    %11 = vector.load %arg6[%c0_8, %c0_9, %c0_10] : memref<1x8x128xbf16, #tpu.memory_space<vmem>>, vector<1x8x128xbf16>
    %12 = vector.shape_cast %11 : vector<1x8x128xbf16> to vector<8x128xbf16>
    %13 = vector.shape_cast %10 : vector<8x128xbf16> to vector<1x8x128xbf16>
    tpu.vector_store %arg6[%c0_8, %c0_9, %c0_10], %13 {strides = array<i32>} : memref<1x8x128xbf16, #tpu.memory_space<vmem>>, vector<1x8x128xbf16>,
    return
  }
  func.func @transform_0(%arg0: i32, %arg1: i32) -> (i32, i32, i32) {
    %c0_i32 = arith.constant 0 : i32
    %c0_i32_0 = arith.constant 0 : i32
    return %arg0, %arg1, %c0_i32 : i32, i32, i32
  }
  func.func @transform_1(%arg0: i32, %arg1: i32) -> (i32, i32) {
    %c0_i32 = arith.constant 0 : i32
    %c0_i32_0 = arith.constant 0 : i32
    %c0_i32_1 = arith.constant 0 : i32
    return %c0_i32, %c0_i32_0 : i32, i32
  }
  func.func @transform_2(%arg0: i32, %arg1: i32) -> (i32, i32) {
    %c0_i32 = arith.constant 0 : i32
    %c0_i32_0 = arith.constant 0 : i32
    %c0_i32_1 = arith.constant 0 : i32
    return %c0_i32, %c0_i32_0 : i32, i32
  }
  func.func @transform_3(%arg0: i32, %arg1: i32) -> (i32, i32) {
    %c0_i32 = arith.constant 0 : i32
    %c0_i32_0 = arith.constant 0 : i32
    return %arg1, %c0_i32 : i32, i32
  }
  func.func @transform_4(%arg0: i32, %arg1: i32) -> (i32, i32, i32) {
    %c0_i32 = arith.constant 0 : i32
    %c0_i32_0 = arith.constant 0 : i32
    return %arg0, %arg1, %c0_i32 : i32, i32, i32
  }
}

module attributes {stable_mosaic.version = 11 : i64} {
  func.func @encoder_layer_kernel(%arg0: i32, %arg1: memref<1x8x128xbf16, #tpu.memory_space<vmem>>, %arg2: memref<128x384xbf16, #tpu.memory_space<vmem>>, %arg3: memref<1x384xf32, #tpu.memory_space<vmem>>, %arg4: memref<128x128xbf16, #tpu.memory_space<vmem>>, %arg5: memref<1x128xf32, #tpu.memory_space<vmem>>, %arg6: memref<1x128xf32, #tpu.memory_space<vmem>>, %arg7: memref<1x128xf32, #tpu.memory_space<vmem>>, %arg8: memref<128x512xbf16, #tpu.memory_space<vmem>>, %arg9: memref<1x512xf32, #tpu.memory_space<vmem>>, %arg10: memref<512x128xbf16, #tpu.memory_space<vmem>>, %arg11: memref<1x128xf32, #tpu.memory_space<vmem>>, %arg12: memref<1x128xf32, #tpu.memory_space<vmem>>, %arg13: memref<1x128xf32, #tpu.memory_space<vmem>>, %arg14: memref<1x8x128xbf16, #tpu.memory_space<vmem>>) attributes {dimension_semantics = [#tpu.dimension_semantics<parallel>], iteration_bounds = array<i64: 2>, scalar_prefetch = 0 : i64, scratch_operands = 0 : i64, tpu.core_type = #tpu.core_type<tc>, window_params = [{transform_indices = @transform_0, window_bounds = array<i64: 1, 8, 128>}, {pipeline_mode = #tpu.pipeline_mode<synchronous>, transform_indices = @transform_1, window_bounds = array<i64: 128, 384>}, {pipeline_mode = #tpu.pipeline_mode<synchronous>, transform_indices = @transform_2, window_bounds = array<i64: 1, 384>}, {pipeline_mode = #tpu.pipeline_mode<synchronous>, transform_indices = @transform_3, window_bounds = array<i64: 128, 128>}, {pipeline_mode = #tpu.pipeline_mode<synchronous>, transform_indices = @transform_4, window_bounds = array<i64: 1, 128>}, {pipeline_mode = #tpu.pipeline_mode<synchronous>, transform_indices = @transform_5, window_bounds = array<i64: 1, 128>}, {pipeline_mode = #tpu.pipeline_mode<synchronous>, transform_indices = @transform_6, window_bounds = array<i64: 1, 128>}, {pipeline_mode = #tpu.pipeline_mode<synchronous>, transform_indices = @transform_7, window_bounds = array<i64: 128, 512>}, {pipeline_mode = #tpu.pipeline_mode<synchronous>, transform_indices = @transform_8, window_bounds = array<i64: 1, 512>}, {pipeline_mode = #tpu.pipeline_mode<synchronous>, transform_indices = @transform_9, window_bounds = array<i64: 512, 128>}, {pipeline_mode = #tpu.pipeline_mode<synchronous>, transform_indices = @transform_10, window_bounds = array<i64: 1, 128>}, {pipeline_mode = #tpu.pipeline_mode<synchronous>, transform_indices = @transform_11, window_bounds = array<i64: 1, 128>}, {pipeline_mode = #tpu.pipeline_mode<synchronous>, transform_indices = @transform_12, window_bounds = array<i64: 1, 128>}, {transform_indices = @transform_13, window_bounds = array<i64: 1, 8, 128>}]} {
    %c0 = arith.constant 0 : index
    %c0_0 = arith.constant 0 : index
    %c0_1 = arith.constant 0 : index
    %0 = vector.load %arg1[%c0, %c0_0, %c0_1] : memref<1x8x128xbf16, #tpu.memory_space<vmem>>, vector<1x8x128xbf16>
    %1 = vector.shape_cast %0 : vector<1x8x128xbf16> to vector<8x128xbf16>
    %2 = arith.extf %1 : vector<8x128xbf16> to vector<8x128xf32>
    %c0_2 = arith.constant 0 : index
    %c0_3 = arith.constant 0 : index
    %3 = vector.load %arg2[%c0_2, %c0_3] : memref<128x384xbf16, #tpu.memory_space<vmem>>, vector<128x384xbf16>
    %c0_4 = arith.constant 0 : index
    %c0_5 = arith.constant 0 : index
    %4 = vector.load %arg3[%c0_4, %c0_5] : memref<1x384xf32, #tpu.memory_space<vmem>>, vector<1x384xf32>
    %c0_6 = arith.constant 0 : index
    %c0_7 = arith.constant 0 : index
    %5 = vector.load %arg4[%c0_6, %c0_7] : memref<128x128xbf16, #tpu.memory_space<vmem>>, vector<128x128xbf16>
    %c0_8 = arith.constant 0 : index
    %c0_9 = arith.constant 0 : index
    %6 = vector.load %arg5[%c0_8, %c0_9] : memref<1x128xf32, #tpu.memory_space<vmem>>, vector<1x128xf32>
    %c0_10 = arith.constant 0 : index
    %c0_11 = arith.constant 0 : index
    %7 = vector.load %arg6[%c0_10, %c0_11] : memref<1x128xf32, #tpu.memory_space<vmem>>, vector<1x128xf32>
    %c0_12 = arith.constant 0 : index
    %c0_13 = arith.constant 0 : index
    %8 = vector.load %arg7[%c0_12, %c0_13] : memref<1x128xf32, #tpu.memory_space<vmem>>, vector<1x128xf32>
    %c0_14 = arith.constant 0 : index
    %c0_15 = arith.constant 0 : index
    %9 = vector.load %arg8[%c0_14, %c0_15] : memref<128x512xbf16, #tpu.memory_space<vmem>>, vector<128x512xbf16>
    %c0_16 = arith.constant 0 : index
    %c0_17 = arith.constant 0 : index
    %10 = vector.load %arg9[%c0_16, %c0_17] : memref<1x512xf32, #tpu.memory_space<vmem>>, vector<1x512xf32>
    %c0_18 = arith.constant 0 : index
    %c0_19 = arith.constant 0 : index
    %11 = vector.load %arg10[%c0_18, %c0_19] : memref<512x128xbf16, #tpu.memory_space<vmem>>, vector<512x128xbf16>
    %c0_20 = arith.constant 0 : index
    %c0_21 = arith.constant 0 : index
    %12 = vector.load %arg11[%c0_20, %c0_21] : memref<1x128xf32, #tpu.memory_space<vmem>>, vector<1x128xf32>
    %c0_22 = arith.constant 0 : index
    %c0_23 = arith.constant 0 : index
    %13 = vector.load %arg12[%c0_22, %c0_23] : memref<1x128xf32, #tpu.memory_space<vmem>>, vector<1x128xf32>
    %c0_24 = arith.constant 0 : index
    %c0_25 = arith.constant 0 : index
    %14 = vector.load %arg13[%c0_24, %c0_25] : memref<1x128xf32, #tpu.memory_space<vmem>>, vector<1x128xf32>
    %cst = arith.constant dense<0.000000e+00> : vector<8x384xf32>
    %15 = tpu.matmul %1, %3, %cst {dimension_numbers = #tpu.dot_dimension_numbers<[1], [0], [0], [1], [0, 0, 1, 1], [], []>} : vector<8x128xbf16>, vector<128x384xbf16>, vector<8x384xf32> -> vector<8x384xf32>
    %16 = vector.broadcast %4 : vector<1x384xf32> to vector<8x384xf32>
    %17 = arith.addf %15, %16 : vector<8x384xf32>
    %18 = arith.truncf %17 : vector<8x384xf32> to vector<8x384xbf16>
    %19 = tpu.transpose %18, [1, 0] : vector<8x384xbf16> -> vector<384x8xbf16>
    %20 = vector.shape_cast %19 : vector<384x8xbf16> to vector<24x16x8xbf16>
    %21 = vector.extract_strided_slice %20 {offsets = [0, 0, 0], sizes = [8, 16, 8], strides = [1, 1, 1]} : vector<24x16x8xbf16> to vector<8x16x8xbf16>
    %cst_26 = arith.constant 2.500000e-01 : bf16
    %22 = vector.broadcast %cst_26 : bf16 to vector<8x16x8xbf16>
    %23 = arith.mulf %21, %22 : vector<8x16x8xbf16>
    %24 = tpu.transpose %23, [0, 2, 1] : vector<8x16x8xbf16> -> vector<8x8x16xbf16>
    %25 = vector.extract_strided_slice %20 {offsets = [8, 0, 0], sizes = [8, 16, 8], strides = [1, 1, 1]} : vector<24x16x8xbf16> to vector<8x16x8xbf16>
    %26 = vector.extract_strided_slice %20 {offsets = [16, 0, 0], sizes = [8, 16, 8], strides = [1, 1, 1]} : vector<24x16x8xbf16> to vector<8x16x8xbf16>
    "tpu.trace_start"() <{level = 10 : i32, message = "hqd,hdk->hqk"}> : () -> ()
    %cst_27 = arith.constant dense<0.000000e+00> : vector<8x8x8xf32>
    %27 = tpu.matmul %24, %25, %cst_27 {dimension_numbers = #tpu.dot_dimension_numbers<[2], [1], [1], [2], [0, 0, 0, 1, 1, 2], [0], [0]>} : vector<8x8x16xbf16>, vector<8x16x8xbf16>, vector<8x8x8xf32> -> vector<8x8x8xf32>
    "tpu.trace_stop"() : () -> ()
    %cst_28 = arith.constant dense<0xFF800000> : vector<8x8xf32>
    %28 = vector.multi_reduction <maximumf>, %27, %cst_28 [2] : vector<8x8x8xf32> to vector<8x8xf32>
    %29 = vector.shape_cast %28 : vector<8x8xf32> to vector<8x8x1xf32>
    %30 = vector.broadcast %29 : vector<8x8x1xf32> to vector<8x8x8xf32>
    %31 = arith.subf %27, %30 : vector<8x8x8xf32>
    %32 = math.exp %31 : vector<8x8x8xf32>
    %cst_29 = arith.constant dense<0.000000e+00> : vector<8x8xf32>
    %33 = vector.multi_reduction <add>, %32, %cst_29 [2] : vector<8x8x8xf32> to vector<8x8xf32>
    %34 = vector.shape_cast %33 : vector<8x8xf32> to vector<8x8x1xf32>
    %35 = tpu.reciprocal %34 {approx = true} : vector<8x8x1xf32> -> vector<8x8x1xf32>
    %36 = vector.broadcast %35 : vector<8x8x1xf32> to vector<8x8x8xf32>
    %37 = arith.mulf %32, %36 : vector<8x8x8xf32>
    %38 = arith.truncf %37 : vector<8x8x8xf32> to vector<8x8x8xbf16>
    "tpu.trace_start"() <{level = 10 : i32, message = "hdk,hqk->hdq"}> : () -> ()
    %cst_30 = arith.constant dense<0.000000e+00> : vector<8x16x8xf32>
    %39 = tpu.matmul %26, %38, %cst_30 {dimension_numbers = #tpu.dot_dimension_numbers<[2], [2], [1], [1], [0, 0, 0, 1, 1, 1], [0], [0]>} : vector<8x16x8xbf16>, vector<8x8x8xbf16>, vector<8x16x8xf32> -> vector<8x16x8xf32>
    "tpu.trace_stop"() : () -> ()
    %40 = arith.truncf %39 : vector<8x16x8xf32> to vector<8x16x8xbf16>
    %41 = vector.shape_cast %40 : vector<8x16x8xbf16> to vector<128x8xbf16>
    %42 = tpu.transpose %41, [1, 0] : vector<128x8xbf16> -> vector<8x128xbf16>
    %cst_31 = arith.constant dense<0.000000e+00> : vector<8x128xf32>
    %43 = tpu.matmul %42, %5, %cst_31 {dimension_numbers = #tpu.dot_dimension_numbers<[1], [0], [0], [1], [0, 0, 1, 1], [], []>} : vector<8x128xbf16>, vector<128x128xbf16>, vector<8x128xf32> -> vector<8x128xf32>
    %44 = vector.broadcast %6 : vector<1x128xf32> to vector<8x128xf32>
    %45 = arith.addf %43, %44 : vector<8x128xf32>
    %46 = arith.addf %2, %45 : vector<8x128xf32>
    %cst_32 = arith.constant dense<0.000000e+00> : vector<8xf32>
    %47 = vector.multi_reduction <add>, %46, %cst_32 [1] : vector<8x128xf32> to vector<8xf32>
    %48 = vector.shape_cast %47 : vector<8xf32> to vector<8x1xf32>
    %cst_33 = arith.constant 1.280000e+02 : f32
    %49 = vector.broadcast %cst_33 : f32 to vector<8x1xf32>
    %50 = arith.divf %48, %49 : vector<8x1xf32>
    %51 = vector.broadcast %50 : vector<8x1xf32> to vector<8x128xf32>
    %52 = arith.subf %46, %51 : vector<8x128xf32>
    %53 = arith.mulf %52, %52 : vector<8x128xf32>
    %cst_34 = arith.constant dense<0.000000e+00> : vector<8xf32>
    %54 = vector.multi_reduction <add>, %53, %cst_34 [1] : vector<8x128xf32> to vector<8xf32>
    %55 = vector.shape_cast %54 : vector<8xf32> to vector<8x1xf32>
    %cst_35 = arith.constant 1.280000e+02 : f32
    %56 = vector.broadcast %cst_35 : f32 to vector<8x1xf32>
    %57 = arith.divf %55, %56 : vector<8x1xf32>
    %cst_36 = arith.constant 9.99999974E-6 : f32
    %58 = vector.broadcast %cst_36 : f32 to vector<8x1xf32>
    %59 = arith.addf %57, %58 : vector<8x1xf32>
    %60 = math.rsqrt %59 : vector<8x1xf32>
    %61 = vector.broadcast %60 : vector<8x1xf32> to vector<8x128xf32>
    %62 = arith.mulf %52, %61 : vector<8x128xf32>
    %63 = vector.broadcast %7 : vector<1x128xf32> to vector<8x128xf32>
    %64 = arith.mulf %62, %63 : vector<8x128xf32>
    %65 = vector.broadcast %8 : vector<1x128xf32> to vector<8x128xf32>
    %66 = arith.addf %64, %65 : vector<8x128xf32>
    %67 = arith.truncf %66 : vector<8x128xf32> to vector<8x128xbf16>
    %cst_37 = arith.constant dense<0.000000e+00> : vector<8x512xf32>
    %68 = tpu.matmul %67, %9, %cst_37 {dimension_numbers = #tpu.dot_dimension_numbers<[1], [0], [0], [1], [0, 0, 1, 1], [], []>} : vector<8x128xbf16>, vector<128x512xbf16>, vector<8x512xf32> -> vector<8x512xf32>
    %69 = vector.broadcast %10 : vector<1x512xf32> to vector<8x512xf32>
    %70 = arith.addf %68, %69 : vector<8x512xf32>
    %cst_38 = arith.constant 0.000000e+00 : f32
    %71 = vector.broadcast %cst_38 : f32 to vector<8x512xf32>
    %72 = arith.maximumf %70, %71 : vector<8x512xf32>
    %73 = arith.truncf %72 : vector<8x512xf32> to vector<8x512xbf16>
    %cst_39 = arith.constant dense<0.000000e+00> : vector<8x128xf32>
    %74 = tpu.matmul %73, %11, %cst_39 {dimension_numbers = #tpu.dot_dimension_numbers<[1], [0], [0], [1], [0, 0, 1, 1], [], []>} : vector<8x512xbf16>, vector<512x128xbf16>, vector<8x128xf32> -> vector<8x128xf32>
    %75 = vector.broadcast %12 : vector<1x128xf32> to vector<8x128xf32>
    %76 = arith.addf %74, %75 : vector<8x128xf32>
    %77 = arith.addf %66, %76 : vector<8x128xf32>
    %cst_40 = arith.constant dense<0.000000e+00> : vector<8xf32>
    %78 = vector.multi_reduction <add>, %77, %cst_40 [1] : vector<8x128xf32> to vector<8xf32>
    %79 = vector.shape_cast %78 : vector<8xf32> to vector<8x1xf32>
    %cst_41 = arith.constant 1.280000e+02 : f32
    %80 = vector.broadcast %cst_41 : f32 to vector<8x1xf32>
    %81 = arith.divf %79, %80 : vector<8x1xf32>
    %82 = vector.broadcast %81 : vector<8x1xf32> to vector<8x128xf32>
    %83 = arith.subf %77, %82 : vector<8x128xf32>
    %84 = arith.mulf %83, %83 : vector<8x128xf32>
    %cst_42 = arith.constant dense<0.000000e+00> : vector<8xf32>
    %85 = vector.multi_reduction <add>, %84, %cst_42 [1] : vector<8x128xf32> to vector<8xf32>
    %86 = vector.shape_cast %85 : vector<8xf32> to vector<8x1xf32>
    %cst_43 = arith.constant 1.280000e+02 : f32
    %87 = vector.broadcast %cst_43 : f32 to vector<8x1xf32>
    %88 = arith.divf %86, %87 : vector<8x1xf32>
    %cst_44 = arith.constant 9.99999974E-6 : f32
    %89 = vector.broadcast %cst_44 : f32 to vector<8x1xf32>
    %90 = arith.addf %88, %89 : vector<8x1xf32>
    %91 = math.rsqrt %90 : vector<8x1xf32>
    %92 = vector.broadcast %91 : vector<8x1xf32> to vector<8x128xf32>
    %93 = arith.mulf %83, %92 : vector<8x128xf32>
    %94 = vector.broadcast %13 : vector<1x128xf32> to vector<8x128xf32>
    %95 = arith.mulf %93, %94 : vector<8x128xf32>
    %96 = vector.broadcast %14 : vector<1x128xf32> to vector<8x128xf32>
    %97 = arith.addf %95, %96 : vector<8x128xf32>
    %98 = arith.truncf %97 : vector<8x128xf32> to vector<8x128xbf16>
    %c0_45 = arith.constant 0 : index
    %c0_46 = arith.constant 0 : index
    %c0_47 = arith.constant 0 : index
    %99 = vector.load %arg14[%c0_45, %c0_46, %c0_47] : memref<1x8x128xbf16, #tpu.memory_space<vmem>>, vector<1x8x128xbf16>
    %100 = vector.shape_cast %99 : vector<1x8x128xbf16> to vector<8x128xbf16>
    %101 = vector.shape_cast %98 : vector<8x128xbf16> to vector<1x8x128xbf16>
    tpu.vector_store %arg14[%c0_45, %c0_46, %c0_47], %101 {strides = array<i32>} : memref<1x8x128xbf16, #tpu.memory_space<vmem>>, vector<1x8x128xbf16>,
    return
  }
  func.func @transform_0(%arg0: i32) -> (i32, i32, i32) {
    %c0_i32 = arith.constant 0 : i32
    %c0_i32_0 = arith.constant 0 : i32
    %c0_i32_1 = arith.constant 0 : i32
    return %arg0, %c0_i32, %c0_i32_0 : i32, i32, i32
  }
  func.func @transform_1(%arg0: i32) -> (i32, i32) {
    %c0_i32 = arith.constant 0 : i32
    %c0_i32_0 = arith.constant 0 : i32
    %c0_i32_1 = arith.constant 0 : i32
    return %c0_i32, %c0_i32_0 : i32, i32
  }
  func.func @transform_2(%arg0: i32) -> (i32, i32) {
    %c0_i32 = arith.constant 0 : i32
    %c0_i32_0 = arith.constant 0 : i32
    %c0_i32_1 = arith.constant 0 : i32
    return %c0_i32, %c0_i32_0 : i32, i32
  }
  func.func @transform_3(%arg0: i32) -> (i32, i32) {
    %c0_i32 = arith.constant 0 : i32
    %c0_i32_0 = arith.constant 0 : i32
    %c0_i32_1 = arith.constant 0 : i32
    return %c0_i32, %c0_i32_0 : i32, i32
  }
  func.func @transform_4(%arg0: i32) -> (i32, i32) {
    %c0_i32 = arith.constant 0 : i32
    %c0_i32_0 = arith.constant 0 : i32
    %c0_i32_1 = arith.constant 0 : i32
    return %c0_i32, %c0_i32_0 : i32, i32
  }
  func.func @transform_5(%arg0: i32) -> (i32, i32) {
    %c0_i32 = arith.constant 0 : i32
    %c0_i32_0 = arith.constant 0 : i32
    %c0_i32_1 = arith.constant 0 : i32
    return %c0_i32, %c0_i32_0 : i32, i32
  }
  func.func @transform_6(%arg0: i32) -> (i32, i32) {
    %c0_i32 = arith.constant 0 : i32
    %c0_i32_0 = arith.constant 0 : i32
    %c0_i32_1 = arith.constant 0 : i32
    return %c0_i32, %c0_i32_0 : i32, i32
  }
  func.func @transform_7(%arg0: i32) -> (i32, i32) {
    %c0_i32 = arith.constant 0 : i32
    %c0_i32_0 = arith.constant 0 : i32
    %c0_i32_1 = arith.constant 0 : i32
    return %c0_i32, %c0_i32_0 : i32, i32
  }
  func.func @transform_8(%arg0: i32) -> (i32, i32) {
    %c0_i32 = arith.constant 0 : i32
    %c0_i32_0 = arith.constant 0 : i32
    %c0_i32_1 = arith.constant 0 : i32
    return %c0_i32, %c0_i32_0 : i32, i32
  }
  func.func @transform_9(%arg0: i32) -> (i32, i32) {
    %c0_i32 = arith.constant 0 : i32
    %c0_i32_0 = arith.constant 0 : i32
    %c0_i32_1 = arith.constant 0 : i32
    return %c0_i32, %c0_i32_0 : i32, i32
  }
  func.func @transform_10(%arg0: i32) -> (i32, i32) {
    %c0_i32 = arith.constant 0 : i32
    %c0_i32_0 = arith.constant 0 : i32
    %c0_i32_1 = arith.constant 0 : i32
    return %c0_i32, %c0_i32_0 : i32, i32
  }
  func.func @transform_11(%arg0: i32) -> (i32, i32) {
    %c0_i32 = arith.constant 0 : i32
    %c0_i32_0 = arith.constant 0 : i32
    %c0_i32_1 = arith.constant 0 : i32
    return %c0_i32, %c0_i32_0 : i32, i32
  }
  func.func @transform_12(%arg0: i32) -> (i32, i32) {
    %c0_i32 = arith.constant 0 : i32
    %c0_i32_0 = arith.constant 0 : i32
    %c0_i32_1 = arith.constant 0 : i32
    return %c0_i32, %c0_i32_0 : i32, i32
  }
  func.func @transform_13(%arg0: i32) -> (i32, i32, i32) {
    %c0_i32 = arith.constant 0 : i32
    %c0_i32_0 = arith.constant 0 : i32
    %c0_i32_1 = arith.constant 0 : i32
    return %arg0, %c0_i32, %c0_i32_0 : i32, i32, i32
  }
}

</mosaic_0001>

<llo_original>
// kernel: tpu_custom_call.1
$region0: #{tpu_custom_call.1}
  #allocation0 [shape = 'u32[]', space=smem, size = 0x4, offset = 0x4, fixed_abs, tag = 'smem constant byte address 0x4 - core index']
  #allocation1 [shape = 'u32[144,128]{1,0:T(1,128)}', space=vmem, size = 0x12000, scoped, tag = 'internal scratch']
  %s0 = inlined_call_operand.hbm [shape: f32[8,128], index: 0, kind: input, shape index: {}]
  %s1 = inlined_call_operand.hbm [shape: f32[8,128], index: 1, kind: output, shape index: {}]
  %s2 = sld [smem:[#allocation0]]
  $region41: #{tpu_custom_call.1} parent=0
    _
  %s4 = ssub.s32 1, %s2
  %s5 = scalar_select 0, %s4, %s2
  $region1: #{tpu_custom_call.1} parent=0
    #allocation2 [shape = 'u8[4096]{0}', space=vmem, size = 0x1000, scoped, tag = 'input window, operand 0, single buffered']
    #allocation3 [shape = 's32[2]{0}', space=sflag, size = 0x8, scoped, tag = 'scoped memory for tpu_custom_call.1']
    #allocation4 [shape = 's32[2]{0}', space=sflag, size = 0x8, scoped, tag = 'scoped memory for tpu_custom_call.1']
    #allocation5 [shape = 'u8[4096]{0}', space=vmem, size = 0x1000, scoped, tag = 'output window, operand 0, single buffered']
    %6 = vsyncpa [#allocation3], 0
    %7 = vsyncpa [#allocation4], 0
    loop: start=0, step=1, limit=4
    $region2: #{tpu_custom_call.1} parent=1 // loop_pre_header
      _
    $region3: #{tpu_custom_call.1} parent=1 // loop_header
      %s9 = sphi 0, %s13
      %p10 = scmp.ge.s32.totalorder %s9, 4
      %s17 = sphi 0, %s17
      %s19 = sphi 0, %s17
      %s20 = sphi 0, %s19
      %s34 = sphi 0, %s20
      %s38 = sphi 0, %s38
      %s40 = sphi 0, %s38
      %s41 = sphi 0, %s40
      %s55 = sphi 0, %s41
    $region4: #{tpu_custom_call.1} parent=1 // loop_header_branch
      %12 = sbr.rel (%p10) target = $region8
    $region5: #{tpu_custom_call.1} parent=1 // loop_body
      %s14 = ssub.s32 %s9, 1
      %s15 = ssub.s32 %s9, 2
      %s16 = sadd.s32 %s9, 1
      %s18 = sadd.s32 %s17, 1
      %p21 = scmp.eq.s32.totalorder %s9, 1
      %p22 = scmp.ne.s32.totalorder %s17, %s19
      %p23 = scmp.eq.s32.totalorder %s9, 0
      %p24 = por %p22, %p23
      %p25 = scmp.ne.s32.totalorder %s17, %s19
      %p26 = scmp.eq.s32.totalorder %s14, 1
      %p27 = por %p25, %p26
      %p28 = scmp.ne.s32.totalorder %s19, %s20
      %p29 = scmp.eq.s32.totalorder %s14, 0
      %p30 = por %p28, %p29
      %p31 = scmp.ne.s32.totalorder %s19, %s20
      %p32 = scmp.eq.s32.totalorder %s15, 1
      %p33 = por %p31, %p32
      %p35 = scmp.ne.s32.totalorder %s20, %s34
      %p36 = scmp.eq.s32.totalorder %s15, 0
      %p37 = por %p35, %p36
      %s39 = sadd.s32 %s38, 1
      %p42 = scmp.eq.s32.totalorder %s9, 1
      %p43 = scmp.ne.s32.totalorder %s38, %s40
      %p44 = scmp.eq.s32.totalorder %s9, 0
      %p45 = por %p43, %p44
      %p46 = scmp.ne.s32.totalorder %s38, %s40
      %p47 = scmp.eq.s32.totalorder %s14, 1
      %p48 = por %p46, %p47
      %p49 = scmp.ne.s32.totalorder %s40, %s41
      %p50 = scmp.eq.s32.totalorder %s14, 0
      %p51 = por %p49, %p50
      %p52 = scmp.ne.s32.totalorder %s40, %s41
      %p53 = scmp.eq.s32.totalorder %s15, 1
      %p54 = por %p52, %p53
      %p56 = scmp.ne.s32.totalorder %s41, %s55
      %p57 = scmp.eq.s32.totalorder %s15, 0
      %p58 = por %p56, %p57
      %p59 = scmp.le.s32.totalorder 1, %s9
      %p60 = scmp.lt.s32.totalorder %s9, 3
      %p61 = pnand %p59, %p60
      %p62 = pneg %p61
      // Predicated region
      $region9: #{tpu_custom_call.1} parent=5 // pred_check
        _
      $region10: #{tpu_custom_call.1} parent=5 // pred_check_branch
        %64 = sbr.rel (%p61) target = $region12
      $region11: #{tpu_custom_call.1} parent=5 // pred_region
        %s65 = ssub.s32 %s9, 1
        // Predicated region
        $region13: #{tpu_custom_call.1} parent=11 // pred_check
          %p66 = pneg %p30
        $region14: #{tpu_custom_call.1} parent=11 // pred_check_branch
          %68 = sbr.rel (%p66) target = $region16
        $region15: #{tpu_custom_call.1} parent=11 // pred_region
          %s70 = ssub.s32 128, 128
          %71 = vsyncadd [#allocation3], %s70
          %s73 = sshll.u32 [#allocation2], 4
          %s74 = int_to_ptr.vmem [resolvable:$true] %s73
          %76 = dma.hbm_to_vmem [thread:$0]  %s0, 128, %s74, [#allocation3]
        $region16: #{tpu_custom_call.1} parent=11 // pred_fallthru
          _
      $region12: #{tpu_custom_call.1} parent=5 // pred_fallthru
        _
      %p77 = scmp.lt.s32.totalorder %s9, 2
      // Predicated region
      $region17: #{tpu_custom_call.1} parent=5 // pred_check
        %p78 = pneg %p77
      $region18: #{tpu_custom_call.1} parent=5 // pred_check_branch
        %80 = sbr.rel (%p78) target = $region20
      $region19: #{tpu_custom_call.1} parent=5 // pred_region
        _
      $region20: #{tpu_custom_call.1} parent=5 // pred_fallthru
        _
      %p81 = scmp.le.s32.totalorder 1, %s9
      %p82 = scmp.lt.s32.totalorder %s9, 3
      %p83 = pnand %p81, %p82
      %p84 = pneg %p83
      // Predicated region
      $region21: #{tpu_custom_call.1} parent=5 // pred_check
        _
      $region22: #{tpu_custom_call.1} parent=5 // pred_check_branch
        %86 = sbr.rel (%p83) target = $region24
      $region23: #{tpu_custom_call.1} parent=5 // pred_region
        %s87 = ssub.s32 %s9, 1
        // Predicated region
        $region25: #{tpu_custom_call.1} parent=23 // pred_check
          %p88 = pneg %p30
        $region26: #{tpu_custom_call.1} parent=23 // pred_check_branch
          %90 = sbr.rel (%p88) target = $region28
        $region27: #{tpu_custom_call.1} parent=23 // pred_region
          %91 = dma.done [#allocation3], 128
        $region28: #{tpu_custom_call.1} parent=23 // pred_fallthru
          _
        %p92 = pneg %p30
        %p93 = pneg %p27
        %p94 = pneg %p51
        %p95 = pneg %p48
        %v96 = vld [vmem:[#allocation2] sm:$0xff]
        %v97 = vadd.f32 %v96, 1.0
        %98 = vst [vmem:[#allocation5] sm:$0xff] %v97
        // Predicated region
        $region29: #{tpu_custom_call.1} parent=23 // pred_check
          %p99 = pneg %p48
        $region30: #{tpu_custom_call.1} parent=23 // pred_check_branch
          %101 = sbr.rel (%p99) target = $region32
        $region31: #{tpu_custom_call.1} parent=23 // pred_region
          %s103 = ssub.s32 128, 128
          %104 = vsyncadd [#allocation4], %s103
          %s106 = sshll.u32 [#allocation5], 4
          %s107 = int_to_ptr.vmem [resolvable:$true] %s106
          %109 = dma.vmem_to_hbm [thread:$0]  %s107, 128, %s1, [#allocation4]
        $region32: #{tpu_custom_call.1} parent=23 // pred_fallthru
          _
        // Predicated region
        $region33: #{tpu_custom_call.1} parent=23 // pred_check
          %p110 = pneg %p48
        $region34: #{tpu_custom_call.1} parent=23 // pred_check_branch
          %112 = sbr.rel (%p110) target = $region36
        $region35: #{tpu_custom_call.1} parent=23 // pred_region
          %113 = dma.done [#allocation4], 128
        $region36: #{tpu_custom_call.1} parent=23 // pred_fallthru
          _
      $region24: #{tpu_custom_call.1} parent=5 // pred_fallthru
        _
      %p114 = scmp.le.s32.totalorder 2, %s9
      // Predicated region
      $region37: #{tpu_custom_call.1} parent=5 // pred_check
        %p115 = pneg %p114
      $region38: #{tpu_custom_call.1} parent=5 // pred_check_branch
        %117 = sbr.rel (%p115) target = $region40
      $region39: #{tpu_custom_call.1} parent=5 // pred_region
        %s118 = ssub.s32 %s9, 2
      $region40: #{tpu_custom_call.1} parent=5 // pred_fallthru
        _
    $region6: #{tpu_custom_call.1} parent=1 // loop_footer
      %s13 = sadd.s32 1, %s9
    $region7: #{tpu_custom_call.1} parent=1 // loop_footer_branch
      %8 = sbr.rel target = $region3
    $region8: #{tpu_custom_call.1} parent=1 // loop_exit
      _
    %119 = vsyncpa [#allocation3], 1
    %s120 = scalar_lea.sflag [#allocation3], 1
    %121 = vsyncpa %s120, 1
    %122 = vsyncpa [#allocation4], 1
    %s123 = scalar_lea.sflag [#allocation4], 1
    %124 = vsyncpa %s123, 1

// kernel: audio_feature_encoder.3
$region0: #{audio_feature_encoder.3}
  #allocation0 [shape = 'u32[]', space=smem, size = 0x4, offset = 0x4, fixed_abs, tag = 'smem constant byte address 0x4 - core index']
  #allocation1 [shape = 'u32[144,128]{1,0:T(1,128)}', space=vmem, size = 0x12000, scoped, tag = 'internal scratch']
  %s0 = inlined_call_operand.hbm [shape: f32[2,8,64], index: 0, kind: input, shape index: {}]
  %s1 = inlined_call_operand.hbm [shape: bf16[64,128], index: 1, kind: input, shape index: {}]
  %s2 = inlined_call_operand.hbm [shape: f32[1,128], index: 2, kind: input, shape index: {}]
  %s3 = inlined_call_operand.vmem [shape: f32[8,128], index: 3, kind: input, shape index: {}]
  %s4 = inlined_call_operand.vmem [shape: bf16[2,8,128], index: 4, kind: output, shape index: {}]
  %s5 = sld [smem:[#allocation0]]
  $region61: #{audio_feature_encoder.3} parent=0
    _
  %s7 = ssub.s32 1, %s5
  %s8 = scalar_select 0, %s7, %s5
  $region1: #{audio_feature_encoder.3} parent=0
    #allocation2 [shape = 'u8[8192]{0}', space=vmem, size = 0x2000, scoped, tag = 'input window, operand 0']
    #allocation3 [shape = 's32[2]{0}', space=sflag, size = 0x8, scoped, tag = 'scoped memory for audio_feature_encoder.3']
    #allocation4 [shape = 'u8[16384]{0}', space=vmem, size = 0x4000, scoped, tag = 'input window, operand 1, single buffered']
    #allocation5 [shape = 's32[1]{0}', space=sflag, size = 0x4, scoped, tag = 'scoped memory for audio_feature_encoder.3']
    #allocation6 [shape = 'u8[512]{0}', space=vmem, size = 0x400, scoped, tag = 'input window, operand 2, single buffered']
    %9 = vsyncpa [#allocation3], 0
    %s10 = scalar_lea.sflag [#allocation3], 1
    %11 = vsyncpa %s10, 0
    %12 = vsyncpa [#allocation5], 0
    loop: start=0, step=1, limit=4
    $region2: #{audio_feature_encoder.3} parent=1 // loop_pre_header
      _
    $region3: #{audio_feature_encoder.3} parent=1 // loop_header
      %s14 = sphi 0, %s18
      %p15 = scmp.ge.s32.totalorder %s14, 4
      %s21 = sphi 0, %s33
      %s22 = sphi 0, %s29
      %s23 = sphi 0, %s21
      %s24 = sphi 0, %s22
      %s25 = sphi 0, %s23
      %s26 = sphi 0, %s24
      %s38 = sphi 0, %s40
      %s41 = sphi 0, %s38
      %s42 = sphi 0, %s41
      %s58 = sphi 0, %s42
      %s62 = sphi 0, %s62
      %s64 = sphi 0, %s62
      %s65 = sphi 0, %s64
      %s79 = sphi 0, %s65
      %s83 = sphi 0, %s83
      %s85 = sphi 0, %s83
      %s86 = sphi 0, %s85
      %s100 = sphi 0, %s86
      %s106 = sphi 0, %s108
      %s109 = sphi 0, %s106
      %s110 = sphi 0, %s109
      %s126 = sphi 0, %s110
      %s134 = sphi 0, %s136
      %s137 = sphi 0, %s134
      %s138 = sphi 0, %s137
      %s154 = sphi 0, %s138
    $region4: #{audio_feature_encoder.3} parent=1 // loop_header_branch
      %17 = sbr.rel (%p15) target = $region8
    $region5: #{audio_feature_encoder.3} parent=1 // loop_body
      %s19 = ssub.s32 %s14, 1
      %s20 = ssub.s32 %s14, 2
      %s27 = sadd.s32 1, %s22
      %p28 = scmp.ge.s32.totalorder %s27, 1
      %s29 = scalar_select %p28, 0, %s27
      %s30 = sadd.s32 1, %s21
      %s31 = scalar_select %p28, %s30, %s21
      %p32 = scmp.ge.s32.totalorder %s31, 2
      %s33 = scalar_select %p32, 0, %s31
      %s34 = ssub.s32 %s21, %s33
      %s35 = ssub.s32 %s22, %s29
      %s36 = sor.u32 %s34, %s35
      %p37 = scmp.eq.s32.totalorder %s36, 0
      %s39 = sadd.s32 %s38, 1
      %s40 = scalar_select %p37, %s38, %s39
      %p43 = pneg %p37
      %p44 = scmp.eq.s32.totalorder %s14, 1
      %p45 = por %p43, %p44
      %p46 = scmp.ne.s32.totalorder %s38, %s41
      %p47 = scmp.eq.s32.totalorder %s14, 0
      %p48 = por %p46, %p47
      %p49 = scmp.ne.s32.totalorder %s38, %s41
      %p50 = scmp.eq.s32.totalorder %s19, 1
      %p51 = por %p49, %p50
      %p52 = scmp.ne.s32.totalorder %s41, %s42
      %p53 = scmp.eq.s32.totalorder %s19, 0
      %p54 = por %p52, %p53
      %p55 = scmp.ne.s32.totalorder %s41, %s42
      %p56 = scmp.eq.s32.totalorder %s20, 1
      %p57 = por %p55, %p56
      %p59 = scmp.ne.s32.totalorder %s42, %s58
      %p60 = scmp.eq.s32.totalorder %s20, 0
      %p61 = por %p59, %p60
      %s63 = sadd.s32 %s62, 1
      %p66 = scmp.eq.s32.totalorder %s14, 1
      %p67 = scmp.ne.s32.totalorder %s62, %s64
      %p68 = scmp.eq.s32.totalorder %s14, 0
      %p69 = por %p67, %p68
      %p70 = scmp.ne.s32.totalorder %s62, %s64
      %p71 = scmp.eq.s32.totalorder %s19, 1
      %p72 = por %p70, %p71
      %p73 = scmp.ne.s32.totalorder %s64, %s65
      %p74 = scmp.eq.s32.totalorder %s19, 0
      %p75 = por %p73, %p74
      %p76 = scmp.ne.s32.totalorder %s64, %s65
      %p77 = scmp.eq.s32.totalorder %s20, 1
      %p78 = por %p76, %p77
      %p80 = scmp.ne.s32.totalorder %s65, %s79
      %p81 = scmp.eq.s32.totalorder %s20, 0
      %p82 = por %p80, %p81
      %s84 = sadd.s32 %s83, 1
      %p87 = scmp.eq.s32.totalorder %s14, 1
      %p88 = scmp.ne.s32.totalorder %s83, %s85
      %p89 = scmp.eq.s32.totalorder %s14, 0
      %p90 = por %p88, %p89
      %p91 = scmp.ne.s32.totalorder %s83, %s85
      %p92 = scmp.eq.s32.totalorder %s19, 1
      %p93 = por %p91, %p92
      %p94 = scmp.ne.s32.totalorder %s85, %s86
      %p95 = scmp.eq.s32.totalorder %s19, 0
      %p96 = por %p94, %p95
      %p97 = scmp.ne.s32.totalorder %s85, %s86
      %p98 = scmp.eq.s32.totalorder %s20, 1
      %p99 = por %p97, %p98
      %p101 = scmp.ne.s32.totalorder %s86, %s100
      %p102 = scmp.eq.s32.totalorder %s20, 0
      %p103 = por %p101, %p102
      %s104 = ssub.s32 %s22, %s29
      %p105 = scmp.eq.s32.totalorder %s104, 0
      %s107 = sadd.s32 %s106, 1
      %s108 = scalar_select %p105, %s106, %s107
      %p111 = pneg %p105
      %p112 = scmp.eq.s32.totalorder %s14, 1
      %p113 = por %p111, %p112
      %p114 = scmp.ne.s32.totalorder %s106, %s109
      %p115 = scmp.eq.s32.totalorder %s14, 0
      %p116 = por %p114, %p115
      %p117 = scmp.ne.s32.totalorder %s106, %s109
      %p118 = scmp.eq.s32.totalorder %s19, 1
      %p119 = por %p117, %p118
      %p120 = scmp.ne.s32.totalorder %s109, %s110
      %p121 = scmp.eq.s32.totalorder %s19, 0
      %p122 = por %p120, %p121
      %p123 = scmp.ne.s32.totalorder %s109, %s110
      %p124 = scmp.eq.s32.totalorder %s20, 1
      %p125 = por %p123, %p124
      %p127 = scmp.ne.s32.totalorder %s110, %s126
      %p128 = scmp.eq.s32.totalorder %s20, 0
      %p129 = por %p127, %p128
      %s130 = ssub.s32 %s21, %s33
      %s131 = ssub.s32 %s22, %s29
      %s132 = sor.u32 %s130, %s131
      %p133 = scmp.eq.s32.totalorder %s132, 0
      %s135 = sadd.s32 %s134, 1
      %s136 = scalar_select %p133, %s134, %s135
      %p139 = pneg %p133
      %p140 = scmp.eq.s32.totalorder %s14, 1
      %p141 = por %p139, %p140
      %p142 = scmp.ne.s32.totalorder %s134, %s137
      %p143 = scmp.eq.s32.totalorder %s14, 0
      %p144 = por %p142, %p143
      %p145 = scmp.ne.s32.totalorder %s134, %s137
      %p146 = scmp.eq.s32.totalorder %s19, 1
      %p147 = por %p145, %p146
      %p148 = scmp.ne.s32.totalorder %s137, %s138
      %p149 = scmp.eq.s32.totalorder %s19, 0
      %p150 = por %p148, %p149
      %p151 = scmp.ne.s32.totalorder %s137, %s138
      %p152 = scmp.eq.s32.totalorder %s20, 1
      %p153 = por %p151, %p152
      %p155 = scmp.ne.s32.totalorder %s138, %s154
      %p156 = scmp.eq.s32.totalorder %s20, 0
      %p157 = por %p155, %p156
      %p158 = scmp.le.s32.totalorder 1, %s14
      %p159 = scmp.lt.s32.totalorder %s14, 3
      %p160 = pnand %p158, %p159
      %p161 = pneg %p160
      // Predicated region
      $region9: #{audio_feature_encoder.3} parent=5 // pred_check
        _
      $region10: #{audio_feature_encoder.3} parent=5 // pred_check_branch
        %163 = sbr.rel (%p160) target = $region12
      $region11: #{audio_feature_encoder.3} parent=5 // pred_region
        %s164 = ssub.s32 %s14, 1
        // Predicated region
        $region13: #{audio_feature_encoder.3} parent=11 // pred_check
          %p165 = pneg %p75
        $region14: #{audio_feature_encoder.3} parent=11 // pred_check_branch
          %167 = sbr.rel (%p165) target = $region16
        $region15: #{audio_feature_encoder.3} parent=11 // pred_region
          %s169 = ssub.s32 512, 512
          %170 = vsyncadd [#allocation5], %s169
          %s171 = sshll.u32 [#allocation4], 4
          %s172 = int_to_ptr.vmem [resolvable:$true] %s171
          %177 = dma.hbm_to_vmem [thread:$0]  %s1, 512, %s172, [#allocation5], 64, 64, 4
        $region16: #{audio_feature_encoder.3} parent=11 // pred_fallthru
          _
        // Predicated region
        $region17: #{audio_feature_encoder.3} parent=11 // pred_check
          %p178 = pneg %p96
        $region18: #{audio_feature_encoder.3} parent=11 // pred_check_branch
          %180 = sbr.rel (%p178) target = $region20
        $region19: #{audio_feature_encoder.3} parent=11 // pred_region
          %s182 = ssub.s32 16, 16
          %183 = vsyncadd [#allocation5], %s182
          %s185 = sshll.u32 [#allocation6], 4
          %s186 = int_to_ptr.vmem [resolvable:$true] %s185
          %188 = dma.hbm_to_vmem [thread:$0]  %s2, 16, %s186, [#allocation5]
        $region20: #{audio_feature_encoder.3} parent=11 // pred_fallthru
          _
        // Predicated region
        $region21: #{audio_feature_encoder.3} parent=11 // pred_check
          %p189 = pneg %p122
        $region22: #{audio_feature_encoder.3} parent=11 // pred_check_branch
          %191 = sbr.rel (%p189) target = $region24
        $region23: #{audio_feature_encoder.3} parent=11 // pred_region
          %p192 = scmp.lt.s32.totalorder %s24, 0
          %s193 = scalar_select %p192, %s24, 0
          %s194 = smul.addr %s193, 8
          %s195 = scalar_lea.vmem %s3, %s194
        $region24: #{audio_feature_encoder.3} parent=11 // pred_fallthru
          _
      $region12: #{audio_feature_encoder.3} parent=5 // pred_fallthru
        _
      %p196 = scmp.lt.s32.totalorder %s14, 2
      // Predicated region
      $region25: #{audio_feature_encoder.3} parent=5 // pred_check
        %p197 = pneg %p196
      $region26: #{audio_feature_encoder.3} parent=5 // pred_check_branch
        %199 = sbr.rel (%p197) target = $region28
      $region27: #{audio_feature_encoder.3} parent=5 // pred_region
        // Predicated region
        $region29: #{audio_feature_encoder.3} parent=27 // pred_check
          %p200 = pneg %p48
        $region30: #{audio_feature_encoder.3} parent=27 // pred_check_branch
          %202 = sbr.rel (%p200) target = $region32
        $region31: #{audio_feature_encoder.3} parent=27 // pred_region
          %s203 = sand.u32 %s38, 1
          %s204 = scalar_lea.sflag [#allocation3], %s203
          %s205 = sand.u32 %s38, 1
          %s206 = smul.addr %s205, 8
          %s207 = scalar_lea.vmem [#allocation2], %s206
          %s209 = ssub.s32 128, 128
          %210 = vsyncadd %s204, %s209
          %s211 = sadd.s32 %s22, %s21
          %s212 = smul.addr %s211, 128
          %s213 = scalar_lea.hbm %s0, %s212
          %s215 = sshll.u32 %s207, 4
          %s216 = int_to_ptr.vmem [resolvable:$true] %s215
          %218 = dma.hbm_to_vmem [thread:$0]  %s213, 128, %s216, %s204
        $region32: #{audio_feature_encoder.3} parent=27 // pred_fallthru
          _
      $region28: #{audio_feature_encoder.3} parent=5 // pred_fallthru
        _
      %p219 = scmp.le.s32.totalorder 1, %s14
      %p220 = scmp.lt.s32.totalorder %s14, 3
      %p221 = pnand %p219, %p220
      %p222 = pneg %p221
      // Predicated region
      $region33: #{audio_feature_encoder.3} parent=5 // pred_check
        _
      $region34: #{audio_feature_encoder.3} parent=5 // pred_check_branch
        %224 = sbr.rel (%p221) target = $region36
      $region35: #{audio_feature_encoder.3} parent=5 // pred_region
        %s225 = ssub.s32 %s14, 1
        %s226 = sand.u32 %s41, 1
        %s227 = scalar_lea.sflag [#allocation3], %s226
        %s228 = sand.u32 %s41, 1
        %s229 = smul.addr %s228, 8
        %s230 = scalar_lea.vmem [#allocation2], %s229
        // Predicated region
        $region37: #{audio_feature_encoder.3} parent=35 // pred_check
          %p231 = pneg %p54
        $region38: #{audio_feature_encoder.3} parent=35 // pred_check_branch
          %233 = sbr.rel (%p231) target = $region40
        $region39: #{audio_feature_encoder.3} parent=35 // pred_region
          %234 = dma.done %s227, 128
        $region40: #{audio_feature_encoder.3} parent=35 // pred_fallthru
          _
        // Predicated region
        $region41: #{audio_feature_encoder.3} parent=35 // pred_check
          %p235 = pneg %p75
        $region42: #{audio_feature_encoder.3} parent=35 // pred_check_branch
          %237 = sbr.rel (%p235) target = $region44
        $region43: #{audio_feature_encoder.3} parent=35 // pred_region
          %238 = dma.done [#allocation5], 512
        $region44: #{audio_feature_encoder.3} parent=35 // pred_fallthru
          _
        // Predicated region
        $region45: #{audio_feature_encoder.3} parent=35 // pred_check
          %p239 = pneg %p96
        $region46: #{audio_feature_encoder.3} parent=35 // pred_check_branch
          %241 = sbr.rel (%p239) target = $region48
        $region47: #{audio_feature_encoder.3} parent=35 // pred_region
          %242 = dma.done [#allocation5], 16
        $region48: #{audio_feature_encoder.3} parent=35 // pred_fallthru
          _
        %s243 = sand.u32 %s41, 1
        %s244 = scalar_lea.sflag [#allocation3], %s243
        %s245 = sand.u32 %s41, 1
        %s246 = smul.addr %s245, 8
        %s247 = scalar_lea.vmem [#allocation2], %s246
        %p248 = pneg %p54
        %p249 = pneg %p51
        %p250 = pneg %p75
        %p251 = pneg %p72
        %p252 = pneg %p96
        %p253 = pneg %p93
        %p254 = scmp.lt.s32.totalorder %s24, 0
        %s255 = scalar_select %p254, %s24, 0
        %s256 = smul.addr %s255, 8
        %s257 = scalar_lea.vmem %s3, %s256
        %p258 = pneg %p122
        %p259 = pneg %p119
        %p260 = pneg %p150
        %p261 = pneg %p147
        %p262 = scmp.lt.s32.totalorder %s23, 1
        %s263 = scalar_select %p262, %s23, 1
        %p264 = scmp.lt.s32.totalorder %s24, 0
        %s265 = scalar_select %p264, %s24, 0
        %s266 = sadd.s32 %s265, %s263
        %s267 = smul.addr %s266, 4
        %s268 = scalar_lea.vmem %s4, %s267
        %p269 = scmp.lt.s32.totalorder %s24, 0
        %s270 = scalar_select %p269, %s24, 0
        %s271 = smul.addr %s270, 8
        %s272 = scalar_lea.vmem %s3, %s271
        %p273 = scmp.lt.s32.totalorder %s23, 1
        %s274 = scalar_select %p273, %s23, 1
        %p275 = scmp.lt.s32.totalorder %s24, 0
        %s276 = scalar_select %p275, %s24, 0
        %s277 = sadd.s32 %s276, %s274
        %s278 = smul.addr %s277, 4
        %s279 = scalar_lea.vmem %s4, %s278
        %v281 = vld [vmem:[%s230] sm:$0xff]
        %v282 = vpack.c.bf16 %v281, %v281
        %v283 = vld [vmem:[#allocation4] sm:$0xf]
        %v284 = vld [vmem:[#allocation4 + $0x4] sm:$0xf]
        %v285 = vld [vmem:[#allocation4 + $0x8] sm:$0xf]
        %v286 = vld [vmem:[#allocation4 + $0xc] sm:$0xf]
        %v287 = vld [vmem:[#allocation4 + $0x10] sm:$0xf]
        %v288 = vld [vmem:[#allocation4 + $0x14] sm:$0xf]
        %v289 = vld [vmem:[#allocation4 + $0x18] sm:$0xf]
        %v290 = vld [vmem:[#allocation4 + $0x1c] sm:$0xf]
        %v291 = vld [vmem:[#allocation6] sm:$0x1]
        %v293 = vlaneseq
        %v294 = vshrl.u32 %v293, 7
        %v295 = vsub.s32 0, %v294
        %v296 = vrot.slane %v291, %v295
        %v306 = vunpack.c.l.b16 %v283
        %v307 = vunpack.c.l.b16 %v284
        %v308 = vunpack.c.l.b16 %v285
        %v309 = vunpack.c.l.b16 %v286
        %v310 = vunpack.c.l.b16 %v287
        %v311 = vunpack.c.l.b16 %v288
        %v312 = vunpack.c.l.b16 %v289
        %v313 = vunpack.c.l.b16 %v290
        %v314 = vpack.c.b16 %v307, %v306
        %v315 = vpack.c.b16 %v309, %v308
        %v316 = vpack.c.b16 %v311, %v310
        %v317 = vpack.c.b16 %v313, %v312
        %vm322 = vcmask 523264
        %v324 = vsel %vm322, %v282, 0
        %326 = vmatprep.subr.bf16.mxu0 0
        %327 = vmatpush1.bf16.msra.mxu0 %v314
        %328 = vmatprep.subr.bf16.mxu0 0
        %329 = vmatpush1.bf16.msra.mxu0 %v315
        %330 = vmatprep.subr.bf16.mxu0 0
        %331 = vmatpush1.bf16.msra.mxu0 %v316
        %332 = vmatprep.subr.bf16.mxu0 0
        %333 = vmatpush1.bf16.msra.mxu0 %v317
        %334 = vmatprep.subr.bf16.mxu0 0
        %335 = vmatpush1.bf16.msra.mxu0 0
        %336 = vmatprep.subr.bf16.mxu0 0
        %337 = vmatpush1.bf16.msra.mxu0 0
        %338 = vmatprep.subr.bf16.mxu0 0
        %339 = vmatpush1.bf16.msra.mxu0 0
        %340 = vmatprep.subr.bf16.mxu0 0
        %341 = vmatpush1.bf16.msra.mxu0 0
        %342 = vmatprep.subr.bf16.mxu0 0
        %343 = vmatpush1.bf16.msra.mxu0 0
        %344 = vmatprep.subr.bf16.mxu0 0
        %345 = vmatpush1.bf16.msra.mxu0 0
        %346 = vmatprep.subr.bf16.mxu0 0
        %347 = vmatpush1.bf16.msra.mxu0 0
        %348 = vmatprep.subr.bf16.mxu0 0
        %349 = vmatpush1.bf16.msra.mxu0 0
        %350 = vmatprep.subr.bf16.mxu0 0
        %351 = vmatpush1.bf16.msra.mxu0 0
        %352 = vmatprep.subr.bf16.mxu0 0
        %353 = vmatpush1.bf16.msra.mxu0 0
        %354 = vmatprep.subr.bf16.mxu0 0
        %355 = vmatpush1.bf16.msra.mxu0 0
        %356 = vmatprep.subr.bf16.mxu0 0
        %357 = vmatpush1.bf16.msra.mxu0 0
        %358 = vmatprep.mubr.bf16.mxu0 0
        %359 = vmatmul.mubr.bf16.gmra.mrb[0].mxu0 %v324
        %v360 = vpop.f32.mrb[0].mxu0
        %v361 = vadd.f32 %v296, %v360
        %v362 = vpop.f32.mrb[0].mxu0
        %v363 = vpop.f32.mrb[0].mxu0
        %v364 = vpop.f32.mrb[0].mxu0
        %365 = vdwg.mxu0
        %v366 = vld [vmem:[%s272] sm:$0xff]
        %v367 = vadd.f32 %v361, %v366
        %v368 = vpack.c.bf16 %v367, %v367
        %369 = vst [vmem:[%s279] sm:$0xf] %v368
        %p370 = scmp.lt.s32.totalorder %s23, 1
        %s371 = scalar_select %p370, %s23, 1
        %p372 = scmp.lt.s32.totalorder %s24, 0
        %s373 = scalar_select %p372, %s24, 0
        %s374 = sadd.s32 %s373, %s371
        %s375 = smul.addr %s374, 4
        %s376 = scalar_lea.vmem %s4, %s375
        // Predicated region
        $region49: #{audio_feature_encoder.3} parent=35 // pred_check
          %p377 = pneg %p147
        $region50: #{audio_feature_encoder.3} parent=35 // pred_check_branch
          %379 = sbr.rel (%p377) target = $region52
        $region51: #{audio_feature_encoder.3} parent=35 // pred_region
          _
        $region52: #{audio_feature_encoder.3} parent=35 // pred_fallthru
          _
      $region36: #{audio_feature_encoder.3} parent=5 // pred_fallthru
        _
      %p380 = scmp.le.s32.totalorder 2, %s14
      // Predicated region
      $region53: #{audio_feature_encoder.3} parent=5 // pred_check
        %p381 = pneg %p380
      $region54: #{audio_feature_encoder.3} parent=5 // pred_check_branch
        %383 = sbr.rel (%p381) target = $region56
      $region55: #{audio_feature_encoder.3} parent=5 // pred_region
        %s384 = ssub.s32 %s14, 2
        // Predicated region
        $region57: #{audio_feature_encoder.3} parent=55 // pred_check
          %p385 = pneg %p153
        $region58: #{audio_feature_encoder.3} parent=55 // pred_check_branch
          %387 = sbr.rel (%p385) target = $region60
        $region59: #{audio_feature_encoder.3} parent=55 // pred_region
          %p388 = scmp.lt.s32.totalorder %s25, 1
          %s389 = scalar_select %p388, %s25, 1
          %p390 = scmp.lt.s32.totalorder %s26, 0
          %s391 = scalar_select %p390, %s26, 0
          %s392 = sadd.s32 %s391, %s389
          %s393 = smul.addr %s392, 4
          %s394 = scalar_lea.vmem %s4, %s393
        $region60: #{audio_feature_encoder.3} parent=55 // pred_fallthru
          _
      $region56: #{audio_feature_encoder.3} parent=5 // pred_fallthru
        _
    $region6: #{audio_feature_encoder.3} parent=1 // loop_footer
      %s18 = sadd.s32 1, %s14
    $region7: #{audio_feature_encoder.3} parent=1 // loop_footer_branch
      %13 = sbr.rel target = $region3
    $region8: #{audio_feature_encoder.3} parent=1 // loop_exit
      _
    %395 = vsyncpa [#allocation3], 1
    %s396 = scalar_lea.sflag [#allocation3], 1
    %397 = vsyncpa %s396, 1
    %398 = vsyncpa [#allocation5], 1

// kernel: audio_feature_encoder.4
$region0: #{audio_feature_encoder.4}
  #allocation0 [shape = 'u32[]', space=smem, size = 0x4, offset = 0x4, fixed_abs, tag = 'smem constant byte address 0x4 - core index']
  #allocation1 [shape = 'u32[144,128]{1,0:T(1,128)}', space=vmem, size = 0x12000, scoped, tag = 'internal scratch']
  %s0 = inlined_call_operand.vmem [shape: bf16[2,8,128], index: 0, kind: input, shape index: {}]
  %s1 = inlined_call_operand.hbm [shape: bf16[128,384], index: 1, kind: input, shape index: {}]
  %s2 = inlined_call_operand.vmem [shape: f32[1,384], index: 2, kind: input, shape index: {}]
  %s3 = inlined_call_operand.vmem [shape: bf16[128,128], index: 3, kind: input, shape index: {}]
  %s4 = inlined_call_operand.vmem [shape: f32[1,128], index: 4, kind: input, shape index: {}]
  %s5 = inlined_call_operand.vmem [shape: f32[1,128], index: 5, kind: input, shape index: {}]
  %s6 = inlined_call_operand.vmem [shape: f32[1,128], index: 6, kind: input, shape index: {}]
  %s7 = inlined_call_operand.hbm [shape: bf16[128,512], index: 7, kind: input, shape index: {}]
  %s8 = inlined_call_operand.vmem [shape: f32[1,512], index: 8, kind: input, shape index: {}]
  %s9 = inlined_call_operand.hbm [shape: bf16[512,128], index: 9, kind: input, shape index: {}]
  %s10 = inlined_call_operand.vmem [shape: f32[1,128], index: 10, kind: input, shape index: {}]
  %s11 = inlined_call_operand.vmem [shape: f32[1,128], index: 11, kind: input, shape index: {}]
  %s12 = inlined_call_operand.vmem [shape: f32[1,128], index: 12, kind: input, shape index: {}]
  %s13 = inlined_call_operand.vmem [shape: bf16[2,8,128], index: 13, kind: output, shape index: {}]
  %s14 = sld [smem:[#allocation0]]
  $region97: #{audio_feature_encoder.4} parent=0
    _
  %s16 = ssub.s32 1, %s14
  %s17 = scalar_select 0, %s16, %s14
  $region1: #{audio_feature_encoder.4} parent=0
    #allocation2 [shape = 'u8[98304]{0}', space=vmem, size = 0x18000, scoped, tag = 'input window, operand 1, single buffered']
    #allocation3 [shape = 's32[2]{0}', space=sflag, size = 0x8, scoped, tag = 'scoped memory for audio_feature_encoder.4']
    #allocation4 [shape = 'u8[131072]{0}', space=vmem, size = 0x20000, scoped, tag = 'input window, operand 7, single buffered']
    #allocation5 [shape = 's32[1]{0}', space=sflag, size = 0x4, scoped, tag = 'scoped memory for audio_feature_encoder.4']
    #allocation6 [shape = 'u8[131072]{0}', space=vmem, size = 0x20000, scoped, tag = 'input window, operand 9, single buffered']
    %18 = vsyncpa [#allocation3], 0
    %19 = vsyncpa [#allocation5], 0
    loop: start=0, step=1, limit=4
    $region2: #{audio_feature_encoder.4} parent=1 // loop_pre_header
      _
    $region3: #{audio_feature_encoder.4} parent=1 // loop_header
      %s21 = sphi 0, %s25
      %p22 = scmp.ge.s32.totalorder %s21, 4
      %s31 = sphi 0, %s33
      %s34 = sphi 0, %s31
      %s35 = sphi 0, %s34
      %s51 = sphi 0, %s35
      %s55 = sphi 0, %s55
      %s57 = sphi 0, %s55
      %s58 = sphi 0, %s57
      %s72 = sphi 0, %s58
      %s76 = sphi 0, %s76
      %s78 = sphi 0, %s76
      %s79 = sphi 0, %s78
      %s93 = sphi 0, %s79
      %s97 = sphi 0, %s97
      %s99 = sphi 0, %s97
      %s100 = sphi 0, %s99
      %s114 = sphi 0, %s100
      %s118 = sphi 0, %s118
      %s120 = sphi 0, %s118
      %s121 = sphi 0, %s120
      %s135 = sphi 0, %s121
      %s139 = sphi 0, %s139
      %s141 = sphi 0, %s139
      %s142 = sphi 0, %s141
      %s156 = sphi 0, %s142
      %s160 = sphi 0, %s160
      %s162 = sphi 0, %s160
      %s163 = sphi 0, %s162
      %s177 = sphi 0, %s163
      %s181 = sphi 0, %s181
      %s183 = sphi 0, %s181
      %s184 = sphi 0, %s183
      %s198 = sphi 0, %s184
      %s202 = sphi 0, %s202
      %s204 = sphi 0, %s202
      %s205 = sphi 0, %s204
      %s219 = sphi 0, %s205
      %s223 = sphi 0, %s223
      %s225 = sphi 0, %s223
      %s226 = sphi 0, %s225
      %s240 = sphi 0, %s226
      %s244 = sphi 0, %s244
      %s246 = sphi 0, %s244
      %s247 = sphi 0, %s246
      %s261 = sphi 0, %s247
      %s265 = sphi 0, %s265
      %s267 = sphi 0, %s265
      %s268 = sphi 0, %s267
      %s282 = sphi 0, %s268
      %s286 = sphi 0, %s286
      %s288 = sphi 0, %s286
      %s289 = sphi 0, %s288
      %s303 = sphi 0, %s289
      %s309 = sphi 0, %s311
      %s312 = sphi 0, %s309
      %s313 = sphi 0, %s312
      %s329 = sphi 0, %s313
    $region4: #{audio_feature_encoder.4} parent=1 // loop_header_branch
      %24 = sbr.rel (%p22) target = $region8
    $region5: #{audio_feature_encoder.4} parent=1 // loop_body
      %s26 = ssub.s32 %s21, 1
      %s27 = ssub.s32 %s21, 2
      %s28 = sadd.s32 %s21, 1
      %s29 = ssub.s32 %s21, %s28
      %p30 = scmp.eq.s32.totalorder %s29, 0
      %s32 = sadd.s32 %s31, 1
      %s33 = scalar_select %p30, %s31, %s32
      %p36 = pneg %p30
      %p37 = scmp.eq.s32.totalorder %s21, 1
      %p38 = por %p36, %p37
      %p39 = scmp.ne.s32.totalorder %s31, %s34
      %p40 = scmp.eq.s32.totalorder %s21, 0
      %p41 = por %p39, %p40
      %p42 = scmp.ne.s32.totalorder %s31, %s34
      %p43 = scmp.eq.s32.totalorder %s26, 1
      %p44 = por %p42, %p43
      %p45 = scmp.ne.s32.totalorder %s34, %s35
      %p46 = scmp.eq.s32.totalorder %s26, 0
      %p47 = por %p45, %p46
      %p48 = scmp.ne.s32.totalorder %s34, %s35
      %p49 = scmp.eq.s32.totalorder %s27, 1
      %p50 = por %p48, %p49
      %p52 = scmp.ne.s32.totalorder %s35, %s51
      %p53 = scmp.eq.s32.totalorder %s27, 0
      %p54 = por %p52, %p53
      %s56 = sadd.s32 %s55, 1
      %p59 = scmp.eq.s32.totalorder %s21, 1
      %p60 = scmp.ne.s32.totalorder %s55, %s57
      %p61 = scmp.eq.s32.totalorder %s21, 0
      %p62 = por %p60, %p61
      %p63 = scmp.ne.s32.totalorder %s55, %s57
      %p64 = scmp.eq.s32.totalorder %s26, 1
      %p65 = por %p63, %p64
      %p66 = scmp.ne.s32.totalorder %s57, %s58
      %p67 = scmp.eq.s32.totalorder %s26, 0
      %p68 = por %p66, %p67
      %p69 = scmp.ne.s32.totalorder %s57, %s58
      %p70 = scmp.eq.s32.totalorder %s27, 1
      %p71 = por %p69, %p70
      %p73 = scmp.ne.s32.totalorder %s58, %s72
      %p74 = scmp.eq.s32.totalorder %s27, 0
      %p75 = por %p73, %p74
      %s77 = sadd.s32 %s76, 1
      %p80 = scmp.eq.s32.totalorder %s21, 1
      %p81 = scmp.ne.s32.totalorder %s76, %s78
      %p82 = scmp.eq.s32.totalorder %s21, 0
      %p83 = por %p81, %p82
      %p84 = scmp.ne.s32.totalorder %s76, %s78
      %p85 = scmp.eq.s32.totalorder %s26, 1
      %p86 = por %p84, %p85
      %p87 = scmp.ne.s32.totalorder %s78, %s79
      %p88 = scmp.eq.s32.totalorder %s26, 0
      %p89 = por %p87, %p88
      %p90 = scmp.ne.s32.totalorder %s78, %s79
      %p91 = scmp.eq.s32.totalorder %s27, 1
      %p92 = por %p90, %p91
      %p94 = scmp.ne.s32.totalorder %s79, %s93
      %p95 = scmp.eq.s32.totalorder %s27, 0
      %p96 = por %p94, %p95
      %s98 = sadd.s32 %s97, 1
      %p101 = scmp.eq.s32.totalorder %s21, 1
      %p102 = scmp.ne.s32.totalorder %s97, %s99
      %p103 = scmp.eq.s32.totalorder %s21, 0
      %p104 = por %p102, %p103
      %p105 = scmp.ne.s32.totalorder %s97, %s99
      %p106 = scmp.eq.s32.totalorder %s26, 1
      %p107 = por %p105, %p106
      %p108 = scmp.ne.s32.totalorder %s99, %s100
      %p109 = scmp.eq.s32.totalorder %s26, 0
      %p110 = por %p108, %p109
      %p111 = scmp.ne.s32.totalorder %s99, %s100
      %p112 = scmp.eq.s32.totalorder %s27, 1
      %p113 = por %p111, %p112
      %p115 = scmp.ne.s32.totalorder %s100, %s114
      %p116 = scmp.eq.s32.totalorder %s27, 0
      %p117 = por %p115, %p116
      %s119 = sadd.s32 %s118, 1
      %p122 = scmp.eq.s32.totalorder %s21, 1
      %p123 = scmp.ne.s32.totalorder %s118, %s120
      %p124 = scmp.eq.s32.totalorder %s21, 0
      %p125 = por %p123, %p124
      %p126 = scmp.ne.s32.totalorder %s118, %s120
      %p127 = scmp.eq.s32.totalorder %s26, 1
      %p128 = por %p126, %p127
      %p129 = scmp.ne.s32.totalorder %s120, %s121
      %p130 = scmp.eq.s32.totalorder %s26, 0
      %p131 = por %p129, %p130
      %p132 = scmp.ne.s32.totalorder %s120, %s121
      %p133 = scmp.eq.s32.totalorder %s27, 1
      %p134 = por %p132, %p133
      %p136 = scmp.ne.s32.totalorder %s121, %s135
      %p137 = scmp.eq.s32.totalorder %s27, 0
      %p138 = por %p136, %p137
      %s140 = sadd.s32 %s139, 1
      %p143 = scmp.eq.s32.totalorder %s21, 1
      %p144 = scmp.ne.s32.totalorder %s139, %s141
      %p145 = scmp.eq.s32.totalorder %s21, 0
      %p146 = por %p144, %p145
      %p147 = scmp.ne.s32.totalorder %s139, %s141
      %p148 = scmp.eq.s32.totalorder %s26, 1
      %p149 = por %p147, %p148
      %p150 = scmp.ne.s32.totalorder %s141, %s142
      %p151 = scmp.eq.s32.totalorder %s26, 0
      %p152 = por %p150, %p151
      %p153 = scmp.ne.s32.totalorder %s141, %s142
      %p154 = scmp.eq.s32.totalorder %s27, 1
      %p155 = por %p153, %p154
      %p157 = scmp.ne.s32.totalorder %s142, %s156
      %p158 = scmp.eq.s32.totalorder %s27, 0
      %p159 = por %p157, %p158
      %s161 = sadd.s32 %s160, 1
      %p164 = scmp.eq.s32.totalorder %s21, 1
      %p165 = scmp.ne.s32.totalorder %s160, %s162
      %p166 = scmp.eq.s32.totalorder %s21, 0
      %p167 = por %p165, %p166
      %p168 = scmp.ne.s32.totalorder %s160, %s162
      %p169 = scmp.eq.s32.totalorder %s26, 1
      %p170 = por %p168, %p169
      %p171 = scmp.ne.s32.totalorder %s162, %s163
      %p172 = scmp.eq.s32.totalorder %s26, 0
      %p173 = por %p171, %p172
      %p174 = scmp.ne.s32.totalorder %s162, %s163
      %p175 = scmp.eq.s32.totalorder %s27, 1
      %p176 = por %p174, %p175
      %p178 = scmp.ne.s32.totalorder %s163, %s177
      %p179 = scmp.eq.s32.totalorder %s27, 0
      %p180 = por %p178, %p179
      %s182 = sadd.s32 %s181, 1
      %p185 = scmp.eq.s32.totalorder %s21, 1
      %p186 = scmp.ne.s32.totalorder %s181, %s183
      %p187 = scmp.eq.s32.totalorder %s21, 0
      %p188 = por %p186, %p187
      %p189 = scmp.ne.s32.totalorder %s181, %s183
      %p190 = scmp.eq.s32.totalorder %s26, 1
      %p191 = por %p189, %p190
      %p192 = scmp.ne.s32.totalorder %s183, %s184
      %p193 = scmp.eq.s32.totalorder %s26, 0
      %p194 = por %p192, %p193
      %p195 = scmp.ne.s32.totalorder %s183, %s184
      %p196 = scmp.eq.s32.totalorder %s27, 1
      %p197 = por %p195, %p196
      %p199 = scmp.ne.s32.totalorder %s184, %s198
      %p200 = scmp.eq.s32.totalorder %s27, 0
      %p201 = por %p199, %p200
      %s203 = sadd.s32 %s202, 1
      %p206 = scmp.eq.s32.totalorder %s21, 1
      %p207 = scmp.ne.s32.totalorder %s202, %s204
      %p208 = scmp.eq.s32.totalorder %s21, 0
      %p209 = por %p207, %p208
      %p210 = scmp.ne.s32.totalorder %s202, %s204
      %p211 = scmp.eq.s32.totalorder %s26, 1
      %p212 = por %p210, %p211
      %p213 = scmp.ne.s32.totalorder %s204, %s205
      %p214 = scmp.eq.s32.totalorder %s26, 0
      %p215 = por %p213, %p214
      %p216 = scmp.ne.s32.totalorder %s204, %s205
      %p217 = scmp.eq.s32.totalorder %s27, 1
      %p218 = por %p216, %p217
      %p220 = scmp.ne.s32.totalorder %s205, %s219
      %p221 = scmp.eq.s32.totalorder %s27, 0
      %p222 = por %p220, %p221
      %s224 = sadd.s32 %s223, 1
      %p227 = scmp.eq.s32.totalorder %s21, 1
      %p228 = scmp.ne.s32.totalorder %s223, %s225
      %p229 = scmp.eq.s32.totalorder %s21, 0
      %p230 = por %p228, %p229
      %p231 = scmp.ne.s32.totalorder %s223, %s225
      %p232 = scmp.eq.s32.totalorder %s26, 1
      %p233 = por %p231, %p232
      %p234 = scmp.ne.s32.totalorder %s225, %s226
      %p235 = scmp.eq.s32.totalorder %s26, 0
      %p236 = por %p234, %p235
      %p237 = scmp.ne.s32.totalorder %s225, %s226
      %p238 = scmp.eq.s32.totalorder %s27, 1
      %p239 = por %p237, %p238
      %p241 = scmp.ne.s32.totalorder %s226, %s240
      %p242 = scmp.eq.s32.totalorder %s27, 0
      %p243 = por %p241, %p242
      %s245 = sadd.s32 %s244, 1
      %p248 = scmp.eq.s32.totalorder %s21, 1
      %p249 = scmp.ne.s32.totalorder %s244, %s246
      %p250 = scmp.eq.s32.totalorder %s21, 0
      %p251 = por %p249, %p250
      %p252 = scmp.ne.s32.totalorder %s244, %s246
      %p253 = scmp.eq.s32.totalorder %s26, 1
      %p254 = por %p252, %p253
      %p255 = scmp.ne.s32.totalorder %s246, %s247
      %p256 = scmp.eq.s32.totalorder %s26, 0
      %p257 = por %p255, %p256
      %p258 = scmp.ne.s32.totalorder %s246, %s247
      %p259 = scmp.eq.s32.totalorder %s27, 1
      %p260 = por %p258, %p259
      %p262 = scmp.ne.s32.totalorder %s247, %s261
      %p263 = scmp.eq.s32.totalorder %s27, 0
      %p264 = por %p262, %p263
      %s266 = sadd.s32 %s265, 1
      %p269 = scmp.eq.s32.totalorder %s21, 1
      %p270 = scmp.ne.s32.totalorder %s265, %s267
      %p271 = scmp.eq.s32.totalorder %s21, 0
      %p272 = por %p270, %p271
      %p273 = scmp.ne.s32.totalorder %s265, %s267
      %p274 = scmp.eq.s32.totalorder %s26, 1
      %p275 = por %p273, %p274
      %p276 = scmp.ne.s32.totalorder %s267, %s268
      %p277 = scmp.eq.s32.totalorder %s26, 0
      %p278 = por %p276, %p277
      %p279 = scmp.ne.s32.totalorder %s267, %s268
      %p280 = scmp.eq.s32.totalorder %s27, 1
      %p281 = por %p279, %p280
      %p283 = scmp.ne.s32.totalorder %s268, %s282
      %p284 = scmp.eq.s32.totalorder %s27, 0
      %p285 = por %p283, %p284
      %s287 = sadd.s32 %s286, 1
      %p290 = scmp.eq.s32.totalorder %s21, 1
      %p291 = scmp.ne.s32.totalorder %s286, %s288
      %p292 = scmp.eq.s32.totalorder %s21, 0
      %p293 = por %p291, %p292
      %p294 = scmp.ne.s32.totalorder %s286, %s288
      %p295 = scmp.eq.s32.totalorder %s26, 1
      %p296 = por %p294, %p295
      %p297 = scmp.ne.s32.totalorder %s288, %s289
      %p298 = scmp.eq.s32.totalorder %s26, 0
      %p299 = por %p297, %p298
      %p300 = scmp.ne.s32.totalorder %s288, %s289
      %p301 = scmp.eq.s32.totalorder %s27, 1
      %p302 = por %p300, %p301
      %p304 = scmp.ne.s32.totalorder %s289, %s303
      %p305 = scmp.eq.s32.totalorder %s27, 0
      %p306 = por %p304, %p305
      %s307 = ssub.s32 %s21, %s28
      %p308 = scmp.eq.s32.totalorder %s307, 0
      %s310 = sadd.s32 %s309, 1
      %s311 = scalar_select %p308, %s309, %s310
      %p314 = pneg %p308
      %p315 = scmp.eq.s32.totalorder %s21, 1
      %p316 = por %p314, %p315
      %p317 = scmp.ne.s32.totalorder %s309, %s312
      %p318 = scmp.eq.s32.totalorder %s21, 0
      %p319 = por %p317, %p318
      %p320 = scmp.ne.s32.totalorder %s309, %s312
      %p321 = scmp.eq.s32.totalorder %s26, 1
      %p322 = por %p320, %p321
      %p323 = scmp.ne.s32.totalorder %s312, %s313
      %p324 = scmp.eq.s32.totalorder %s26, 0
      %p325 = por %p323, %p324
      %p326 = scmp.ne.s32.totalorder %s312, %s313
      %p327 = scmp.eq.s32.totalorder %s27, 1
      %p328 = por %p326, %p327
      %p330 = scmp.ne.s32.totalorder %s313, %s329
      %p331 = scmp.eq.s32.totalorder %s27, 0
      %p332 = por %p330, %p331
      %p333 = scmp.le.s32.totalorder 1, %s21
      %p334 = scmp.lt.s32.totalorder %s21, 3
      %p335 = pnand %p333, %p334
      %p336 = pneg %p335
      // Predicated region
      $region9: #{audio_feature_encoder.4} parent=5 // pred_check
        _
      $region10: #{audio_feature_encoder.4} parent=5 // pred_check_branch
        %338 = sbr.rel (%p335) target = $region12
      $region11: #{audio_feature_encoder.4} parent=5 // pred_region
        %s339 = ssub.s32 %s21, 1
        // Predicated region
        $region13: #{audio_feature_encoder.4} parent=11 // pred_check
          %p340 = pneg %p68
        $region14: #{audio_feature_encoder.4} parent=11 // pred_check_branch
          %342 = sbr.rel (%p340) target = $region16
        $region15: #{audio_feature_encoder.4} parent=11 // pred_region
          %s344 = ssub.s32 3072, 3072
          %345 = vsyncadd [#allocation3], %s344
          %s346 = sshll.u32 [#allocation2], 4
          %s347 = int_to_ptr.vmem [resolvable:$true] %s346
          %352 = dma.hbm_to_vmem [thread:$0]  %s1, 3072, %s347, [#allocation3], 192, 192, 12
        $region16: #{audio_feature_encoder.4} parent=11 // pred_fallthru
          _
        // Predicated region
        $region17: #{audio_feature_encoder.4} parent=11 // pred_check
          %p353 = pneg %p89
        $region18: #{audio_feature_encoder.4} parent=11 // pred_check_branch
          %355 = sbr.rel (%p353) target = $region20
        $region19: #{audio_feature_encoder.4} parent=11 // pred_region
          _
        $region20: #{audio_feature_encoder.4} parent=11 // pred_fallthru
          _
        // Predicated region
        $region21: #{audio_feature_encoder.4} parent=11 // pred_check
          %p356 = pneg %p110
        $region22: #{audio_feature_encoder.4} parent=11 // pred_check_branch
          %358 = sbr.rel (%p356) target = $region24
        $region23: #{audio_feature_encoder.4} parent=11 // pred_region
          _
        $region24: #{audio_feature_encoder.4} parent=11 // pred_fallthru
          _
        // Predicated region
        $region25: #{audio_feature_encoder.4} parent=11 // pred_check
          %p359 = pneg %p131
        $region26: #{audio_feature_encoder.4} parent=11 // pred_check_branch
          %361 = sbr.rel (%p359) target = $region28
        $region27: #{audio_feature_encoder.4} parent=11 // pred_region
          _
        $region28: #{audio_feature_encoder.4} parent=11 // pred_fallthru
          _
        // Predicated region
        $region29: #{audio_feature_encoder.4} parent=11 // pred_check
          %p362 = pneg %p152
        $region30: #{audio_feature_encoder.4} parent=11 // pred_check_branch
          %364 = sbr.rel (%p362) target = $region32
        $region31: #{audio_feature_encoder.4} parent=11 // pred_region
          _
        $region32: #{audio_feature_encoder.4} parent=11 // pred_fallthru
          _
        // Predicated region
        $region33: #{audio_feature_encoder.4} parent=11 // pred_check
          %p365 = pneg %p173
        $region34: #{audio_feature_encoder.4} parent=11 // pred_check_branch
          %367 = sbr.rel (%p365) target = $region36
        $region35: #{audio_feature_encoder.4} parent=11 // pred_region
          _
        $region36: #{audio_feature_encoder.4} parent=11 // pred_fallthru
          _
        // Predicated region
        $region37: #{audio_feature_encoder.4} parent=11 // pred_check
          %p368 = pneg %p194
        $region38: #{audio_feature_encoder.4} parent=11 // pred_check_branch
          %370 = sbr.rel (%p368) target = $region40
        $region39: #{audio_feature_encoder.4} parent=11 // pred_region
          %s372 = ssub.s32 4096, 4096
          %373 = vsyncadd [#allocation5], %s372
          %s374 = sshll.u32 [#allocation4], 4
          %s375 = int_to_ptr.vmem [resolvable:$true] %s374
          %380 = dma.hbm_to_vmem [thread:$0]  %s7, 4096, %s375, [#allocation5], 256, 256, 16
        $region40: #{audio_feature_encoder.4} parent=11 // pred_fallthru
          _
        // Predicated region
        $region41: #{audio_feature_encoder.4} parent=11 // pred_check
          %p381 = pneg %p215
        $region42: #{audio_feature_encoder.4} parent=11 // pred_check_branch
          %383 = sbr.rel (%p381) target = $region44
        $region43: #{audio_feature_encoder.4} parent=11 // pred_region
          _
        $region44: #{audio_feature_encoder.4} parent=11 // pred_fallthru
          _
        // Predicated region
        $region45: #{audio_feature_encoder.4} parent=11 // pred_check
          %p384 = pneg %p236
        $region46: #{audio_feature_encoder.4} parent=11 // pred_check_branch
          %386 = sbr.rel (%p384) target = $region48
        $region47: #{audio_feature_encoder.4} parent=11 // pred_region
          %s388 = ssub.s32 4096, 4096
          %389 = vsyncadd [#allocation5], %s388
          %s390 = sshll.u32 [#allocation6], 4
          %s391 = int_to_ptr.vmem [resolvable:$true] %s390
          %396 = dma.hbm_to_vmem [thread:$0]  %s9, 4096, %s391, [#allocation5], 64, 64, 4
        $region48: #{audio_feature_encoder.4} parent=11 // pred_fallthru
          _
        // Predicated region
        $region49: #{audio_feature_encoder.4} parent=11 // pred_check
          %p397 = pneg %p257
        $region50: #{audio_feature_encoder.4} parent=11 // pred_check_branch
          %399 = sbr.rel (%p397) target = $region52
        $region51: #{audio_feature_encoder.4} parent=11 // pred_region
          _
        $region52: #{audio_feature_encoder.4} parent=11 // pred_fallthru
          _
        // Predicated region
        $region53: #{audio_feature_encoder.4} parent=11 // pred_check
          %p400 = pneg %p278
        $region54: #{audio_feature_encoder.4} parent=11 // pred_check_branch
          %402 = sbr.rel (%p400) target = $region56
        $region55: #{audio_feature_encoder.4} parent=11 // pred_region
          _
        $region56: #{audio_feature_encoder.4} parent=11 // pred_fallthru
          _
        // Predicated region
        $region57: #{audio_feature_encoder.4} parent=11 // pred_check
          %p403 = pneg %p299
        $region58: #{audio_feature_encoder.4} parent=11 // pred_check_branch
          %405 = sbr.rel (%p403) target = $region60
        $region59: #{audio_feature_encoder.4} parent=11 // pred_region
          _
        $region60: #{audio_feature_encoder.4} parent=11 // pred_fallthru
          _
      $region12: #{audio_feature_encoder.4} parent=5 // pred_fallthru
        _
      %p406 = scmp.lt.s32.totalorder %s21, 2
      // Predicated region
      $region61: #{audio_feature_encoder.4} parent=5 // pred_check
        %p407 = pneg %p406
      $region62: #{audio_feature_encoder.4} parent=5 // pred_check_branch
        %409 = sbr.rel (%p407) target = $region64
      $region63: #{audio_feature_encoder.4} parent=5 // pred_region
        // Predicated region
        $region65: #{audio_feature_encoder.4} parent=63 // pred_check
          %p410 = pneg %p41
        $region66: #{audio_feature_encoder.4} parent=63 // pred_check_branch
          %412 = sbr.rel (%p410) target = $region68
        $region67: #{audio_feature_encoder.4} parent=63 // pred_region
          %p413 = scmp.lt.s32.totalorder %s21, 1
          %s414 = scalar_select %p413, %s21, 1
          %s415 = smul.addr %s414, 4
          %s416 = scalar_lea.vmem %s0, %s415
        $region68: #{audio_feature_encoder.4} parent=63 // pred_fallthru
          _
      $region64: #{audio_feature_encoder.4} parent=5 // pred_fallthru
        _
      %p417 = scmp.le.s32.totalorder 1, %s21
      %p418 = scmp.lt.s32.totalorder %s21, 3
      %p419 = pnand %p417, %p418
      %p420 = pneg %p419
      // Predicated region
      $region69: #{audio_feature_encoder.4} parent=5 // pred_check
        _
      $region70: #{audio_feature_encoder.4} parent=5 // pred_check_branch
        %422 = sbr.rel (%p419) target = $region72
      $region71: #{audio_feature_encoder.4} parent=5 // pred_region
        %s423 = ssub.s32 %s21, 1
        // Predicated region
        $region73: #{audio_feature_encoder.4} parent=71 // pred_check
          %p424 = pneg %p68
        $region74: #{audio_feature_encoder.4} parent=71 // pred_check_branch
          %426 = sbr.rel (%p424) target = $region76
        $region75: #{audio_feature_encoder.4} parent=71 // pred_region
          %427 = dma.done [#allocation3], 3072
        $region76: #{audio_feature_encoder.4} parent=71 // pred_fallthru
          _
        // Predicated region
        $region77: #{audio_feature_encoder.4} parent=71 // pred_check
          %p428 = pneg %p194
        $region78: #{audio_feature_encoder.4} parent=71 // pred_check_branch
          %430 = sbr.rel (%p428) target = $region80
        $region79: #{audio_feature_encoder.4} parent=71 // pred_region
          %431 = dma.done [#allocation5], 4096
        $region80: #{audio_feature_encoder.4} parent=71 // pred_fallthru
          _
        // Predicated region
        $region81: #{audio_feature_encoder.4} parent=71 // pred_check
          %p432 = pneg %p236
        $region82: #{audio_feature_encoder.4} parent=71 // pred_check_branch
          %434 = sbr.rel (%p432) target = $region84
        $region83: #{audio_feature_encoder.4} parent=71 // pred_region
          %435 = dma.done [#allocation5], 4096
        $region84: #{audio_feature_encoder.4} parent=71 // pred_fallthru
          _
        %p436 = scmp.lt.s32.totalorder %s26, 1
        %s437 = scalar_select %p436, %s26, 1
        %s438 = smul.addr %s437, 4
        %s439 = scalar_lea.vmem %s0, %s438
        %p440 = pneg %p47
        %p441 = pneg %p44
        %p442 = pneg %p68
        %p443 = pneg %p65
        %p444 = pneg %p89
        %p445 = pneg %p86
        %p446 = pneg %p110
        %p447 = pneg %p107
        %p448 = pneg %p131
        %p449 = pneg %p128
        %p450 = pneg %p152
        %p451 = pneg %p149
        %p452 = pneg %p173
        %p453 = pneg %p170
        %p454 = pneg %p194
        %p455 = pneg %p191
        %p456 = pneg %p215
        %p457 = pneg %p212
        %p458 = pneg %p236
        %p459 = pneg %p233
        %p460 = pneg %p257
        %p461 = pneg %p254
        %p462 = pneg %p278
        %p463 = pneg %p275
        %p464 = pneg %p299
        %p465 = pneg %p296
        %p466 = pneg %p325
        %p467 = pneg %p322
        %p468 = scmp.lt.s32.totalorder %s26, 1
        %s469 = scalar_select %p468, %s26, 1
        %s470 = smul.addr %s469, 4
        %s471 = scalar_lea.vmem %s13, %s470
        %p472 = scmp.lt.s32.totalorder %s26, 1
        %s473 = scalar_select %p472, %s26, 1
        %s474 = smul.addr %s473, 4
        %s475 = scalar_lea.vmem %s0, %s474
        %p476 = scmp.lt.s32.totalorder %s26, 1
        %s477 = scalar_select %p476, %s26, 1
        %s478 = smul.addr %s477, 4
        %s479 = scalar_lea.vmem %s13, %s478
        %v482 = vld [vmem:[%s475] sm:$0xf]
        %v483 = vunpack.c.l.bf16 %v482
        %v484 = vld [vmem:[#allocation2] sm:$0xff]
        %v485 = vld [vmem:[#allocation2 + $0x8] sm:$0xf]
        %v486 = vld [vmem:[#allocation2 + $0xc] sm:$0xff]
        %v487 = vld [vmem:[#allocation2 + $0x14] sm:$0xf]
        %v488 = vld [vmem:[#allocation2 + $0x18] sm:$0xff]
        %v489 = vld [vmem:[#allocation2 + $0x20] sm:$0xf]
        %v490 = vld [vmem:[#allocation2 + $0x24] sm:$0xff]
        %v491 = vld [vmem:[#allocation2 + $0x2c] sm:$0xf]
        %v492 = vld [vmem:[#allocation2 + $0x30] sm:$0xff]
        %v493 = vld [vmem:[#allocation2 + $0x38] sm:$0xf]
        %v494 = vld [vmem:[#allocation2 + $0x3c] sm:$0xff]
        %v495 = vld [vmem:[#allocation2 + $0x44] sm:$0xf]
        %v496 = vld [vmem:[#allocation2 + $0x48] sm:$0xff]
        %v497 = vld [vmem:[#allocation2 + $0x50] sm:$0xf]
        %v498 = vld [vmem:[#allocation2 + $0x54] sm:$0xff]
        %v499 = vld [vmem:[#allocation2 + $0x5c] sm:$0xf]
        %v500 = vld [vmem:[#allocation2 + $0x60] sm:$0xff]
        %v501 = vld [vmem:[#allocation2 + $0x68] sm:$0xf]
        %v502 = vld [vmem:[#allocation2 + $0x6c] sm:$0xff]
        %v503 = vld [vmem:[#allocation2 + $0x74] sm:$0xf]
        %v504 = vld [vmem:[#allocation2 + $0x78] sm:$0xff]
        %v505 = vld [vmem:[#allocation2 + $0x80] sm:$0xf]
        %v506 = vld [vmem:[#allocation2 + $0x84] sm:$0xff]
        %v507 = vld [vmem:[#allocation2 + $0x8c] sm:$0xf]
        %v508 = vld [vmem:[#allocation2 + $0x90] sm:$0xff]
        %v509 = vld [vmem:[#allocation2 + $0x98] sm:$0xf]
        %v510 = vld [vmem:[#allocation2 + $0x9c] sm:$0xff]
        %v511 = vld [vmem:[#allocation2 + $0xa4] sm:$0xf]
        %v512 = vld [vmem:[#allocation2 + $0xa8] sm:$0xff]
        %v513 = vld [vmem:[#allocation2 + $0xb0] sm:$0xf]
        %v514 = vld [vmem:[#allocation2 + $0xb4] sm:$0xff]
        %v515 = vld [vmem:[#allocation2 + $0xbc] sm:$0xf]
        %v516 = vld [vmem:[%s2] sm:$0x7]
        %v517 = vld [vmem:[%s3] sm:$0xf]
        %v518 = vld [vmem:[%s3 + $0x4] sm:$0xf]
        %v519 = vld [vmem:[%s3 + $0x8] sm:$0xf]
        %v520 = vld [vmem:[%s3 + $0xc] sm:$0xf]
        %v521 = vld [vmem:[%s3 + $0x10] sm:$0xf]
        %v522 = vld [vmem:[%s3 + $0x14] sm:$0xf]
        %v523 = vld [vmem:[%s3 + $0x18] sm:$0xf]
        %v524 = vld [vmem:[%s3 + $0x1c] sm:$0xf]
        %v525 = vld [vmem:[%s3 + $0x20] sm:$0xf]
        %v526 = vld [vmem:[%s3 + $0x24] sm:$0xf]
        %v527 = vld [vmem:[%s3 + $0x28] sm:$0xf]
        %v528 = vld [vmem:[%s3 + $0x2c] sm:$0xf]
        %v529 = vld [vmem:[%s3 + $0x30] sm:$0xf]
        %v530 = vld [vmem:[%s3 + $0x34] sm:$0xf]
        %v531 = vld [vmem:[%s3 + $0x38] sm:$0xf]
        %v532 = vld [vmem:[%s3 + $0x3c] sm:$0xf]
        %v533 = vld [vmem:[%s4] sm:$0x1]
        %v534 = vld [vmem:[%s5] sm:$0x1]
        %v535 = vld [vmem:[%s6] sm:$0x1]
        %v536 = vld [vmem:[#allocation4] sm:$0xff]
        %v537 = vld [vmem:[#allocation4 + $0x8] sm:$0xff]
        %v538 = vld [vmem:[#allocation4 + $0x10] sm:$0xff]
        %v539 = vld [vmem:[#allocation4 + $0x18] sm:$0xff]
        %v540 = vld [vmem:[#allocation4 + $0x20] sm:$0xff]
        %v541 = vld [vmem:[#allocation4 + $0x28] sm:$0xff]
        %v542 = vld [vmem:[#allocation4 + $0x30] sm:$0xff]
        %v543 = vld [vmem:[#allocation4 + $0x38] sm:$0xff]
        %v544 = vld [vmem:[#allocation4 + $0x40] sm:$0xff]
        %v545 = vld [vmem:[#allocation4 + $0x48] sm:$0xff]
        %v546 = vld [vmem:[#allocation4 + $0x50] sm:$0xff]
        %v547 = vld [vmem:[#allocation4 + $0x58] sm:$0xff]
        %v548 = vld [vmem:[#allocation4 + $0x60] sm:$0xff]
        %v549 = vld [vmem:[#allocation4 + $0x68] sm:$0xff]
        %v550 = vld [vmem:[#allocation4 + $0x70] sm:$0xff]
        %v551 = vld [vmem:[#allocation4 + $0x78] sm:$0xff]
        %v552 = vld [vmem:[#allocation4 + $0x80] sm:$0xff]
        %v553 = vld [vmem:[#allocation4 + $0x88] sm:$0xff]
        %v554 = vld [vmem:[#allocation4 + $0x90] sm:$0xff]
        %v555 = vld [vmem:[#allocation4 + $0x98] sm:$0xff]
        %v556 = vld [vmem:[#allocation4 + $0xa0] sm:$0xff]
        %v557 = vld [vmem:[#allocation4 + $0xa8] sm:$0xff]
        %v558 = vld [vmem:[#allocation4 + $0xb0] sm:$0xff]
        %v559 = vld [vmem:[#allocation4 + $0xb8] sm:$0xff]
        %v560 = vld [vmem:[#allocation4 + $0xc0] sm:$0xff]
        %v561 = vld [vmem:[#allocation4 + $0xc8] sm:$0xff]
        %v562 = vld [vmem:[#allocation4 + $0xd0] sm:$0xff]
        %v563 = vld [vmem:[#allocation4 + $0xd8] sm:$0xff]
        %v564 = vld [vmem:[#allocation4 + $0xe0] sm:$0xff]
        %v565 = vld [vmem:[#allocation4 + $0xe8] sm:$0xff]
        %v566 = vld [vmem:[#allocation4 + $0xf0] sm:$0xff]
        %v567 = vld [vmem:[#allocation4 + $0xf8] sm:$0xff]
        %v568 = vld [vmem:[%s8] sm:$0xf]
        %v569 = vld [vmem:[#allocation6] sm:$0xf]
        %v570 = vld [vmem:[#allocation6 + $0x4] sm:$0xf]
        %v571 = vld [vmem:[#allocation6 + $0x8] sm:$0xf]
        %v572 = vld [vmem:[#allocation6 + $0xc] sm:$0xf]
        %v573 = vld [vmem:[#allocation6 + $0x10] sm:$0xf]
        %v574 = vld [vmem:[#allocation6 + $0x14] sm:$0xf]
        %v575 = vld [vmem:[#allocation6 + $0x18] sm:$0xf]
        %v576 = vld [vmem:[#allocation6 + $0x1c] sm:$0xf]
        %v577 = vld [vmem:[#allocation6 + $0x20] sm:$0xf]
        %v578 = vld [vmem:[#allocation6 + $0x24] sm:$0xf]
        %v579 = vld [vmem:[#allocation6 + $0x28] sm:$0xf]
        %v580 = vld [vmem:[#allocation6 + $0x2c] sm:$0xf]
        %v581 = vld [vmem:[#allocation6 + $0x30] sm:$0xf]
        %v582 = vld [vmem:[#allocation6 + $0x34] sm:$0xf]
        %v583 = vld [vmem:[#allocation6 + $0x38] sm:$0xf]
        %v584 = vld [vmem:[#allocation6 + $0x3c] sm:$0xf]
        %v585 = vld [vmem:[#allocation6 + $0x40] sm:$0xf]
        %v586 = vld [vmem:[#allocation6 + $0x44] sm:$0xf]
        %v587 = vld [vmem:[#allocation6 + $0x48] sm:$0xf]
        %v588 = vld [vmem:[#allocation6 + $0x4c] sm:$0xf]
        %v589 = vld [vmem:[#allocation6 + $0x50] sm:$0xf]
        %v590 = vld [vmem:[#allocation6 + $0x54] sm:$0xf]
        %v591 = vld [vmem:[#allocation6 + $0x58] sm:$0xf]
        %v592 = vld [vmem:[#allocation6 + $0x5c] sm:$0xf]
        %v593 = vld [vmem:[#allocation6 + $0x60] sm:$0xf]
        %v594 = vld [vmem:[#allocation6 + $0x64] sm:$0xf]
        %v595 = vld [vmem:[#allocation6 + $0x68] sm:$0xf]
        %v596 = vld [vmem:[#allocation6 + $0x6c] sm:$0xf]
        %v597 = vld [vmem:[#allocation6 + $0x70] sm:$0xf]
        %v598 = vld [vmem:[#allocation6 + $0x74] sm:$0xf]
        %v599 = vld [vmem:[#allocation6 + $0x78] sm:$0xf]
        %v600 = vld [vmem:[#allocation6 + $0x7c] sm:$0xf]
        %v601 = vld [vmem:[#allocation6 + $0x80] sm:$0xf]
        %v602 = vld [vmem:[#allocation6 + $0x84] sm:$0xf]
        %v603 = vld [vmem:[#allocation6 + $0x88] sm:$0xf]
        %v604 = vld [vmem:[#allocation6 + $0x8c] sm:$0xf]
        %v605 = vld [vmem:[#allocation6 + $0x90] sm:$0xf]
        %v606 = vld [vmem:[#allocation6 + $0x94] sm:$0xf]
        %v607 = vld [vmem:[#allocation6 + $0x98] sm:$0xf]
        %v608 = vld [vmem:[#allocation6 + $0x9c] sm:$0xf]
        %v609 = vld [vmem:[#allocation6 + $0xa0] sm:$0xf]
        %v610 = vld [vmem:[#allocation6 + $0xa4] sm:$0xf]
        %v611 = vld [vmem:[#allocation6 + $0xa8] sm:$0xf]
        %v612 = vld [vmem:[#allocation6 + $0xac] sm:$0xf]
        %v613 = vld [vmem:[#allocation6 + $0xb0] sm:$0xf]
        %v614 = vld [vmem:[#allocation6 + $0xb4] sm:$0xf]
        %v615 = vld [vmem:[#allocation6 + $0xb8] sm:$0xf]
        %v616 = vld [vmem:[#allocation6 + $0xbc] sm:$0xf]
        %v617 = vld [vmem:[#allocation6 + $0xc0] sm:$0xf]
        %v618 = vld [vmem:[#allocation6 + $0xc4] sm:$0xf]
        %v619 = vld [vmem:[#allocation6 + $0xc8] sm:$0xf]
        %v620 = vld [vmem:[#allocation6 + $0xcc] sm:$0xf]
        %v621 = vld [vmem:[#allocation6 + $0xd0] sm:$0xf]
        %v622 = vld [vmem:[#allocation6 + $0xd4] sm:$0xf]
        %v623 = vld [vmem:[#allocation6 + $0xd8] sm:$0xf]
        %v624 = vld [vmem:[#allocation6 + $0xdc] sm:$0xf]
        %v625 = vld [vmem:[#allocation6 + $0xe0] sm:$0xf]
        %v626 = vld [vmem:[#allocation6 + $0xe4] sm:$0xf]
        %v627 = vld [vmem:[#allocation6 + $0xe8] sm:$0xf]
        %v628 = vld [vmem:[#allocation6 + $0xec] sm:$0xf]
        %v629 = vld [vmem:[#allocation6 + $0xf0] sm:$0xf]
        %v630 = vld [vmem:[#allocation6 + $0xf4] sm:$0xf]
        %v631 = vld [vmem:[#allocation6 + $0xf8] sm:$0xf]
        %v632 = vld [vmem:[#allocation6 + $0xfc] sm:$0xf]
        %v633 = vld [vmem:[%s10] sm:$0x1]
        %v634 = vld [vmem:[%s11] sm:$0x1]
        %v635 = vld [vmem:[%s12] sm:$0x1]
        %v637 = vlaneseq
        %v638 = vshrl.u32 %v637, 7
        %v639 = vsub.s32 0, %v638
        %v640 = vrot.slane %v516, %v639
        %v641 = vlaneseq
        %v642 = vshrl.u32 %v641, 7
        %v643 = vsub.s32 1, %v642
        %v644 = vrot.slane %v516, %v643
        %v645 = vlaneseq
        %v646 = vshrl.u32 %v645, 7
        %v647 = vsub.s32 2, %v646
        %v648 = vrot.slane %v516, %v647
        %v684 = vunpack.c.l.b16 %v484
        %v685 = vunpack.c.h.b16 %v484
        %v686 = vunpack.c.l.b16 %v485
        %v687 = vunpack.c.l.b16 %v486
        %v688 = vunpack.c.h.b16 %v486
        %v689 = vunpack.c.l.b16 %v487
        %v690 = vunpack.c.l.b16 %v488
        %v691 = vunpack.c.h.b16 %v488
        %v692 = vunpack.c.l.b16 %v489
        %v693 = vunpack.c.l.b16 %v490
        %v694 = vunpack.c.h.b16 %v490
        %v695 = vunpack.c.l.b16 %v491
        %v696 = vunpack.c.l.b16 %v492
        %v697 = vunpack.c.h.b16 %v492
        %v698 = vunpack.c.l.b16 %v493
        %v699 = vunpack.c.l.b16 %v494
        %v700 = vunpack.c.h.b16 %v494
        %v701 = vunpack.c.l.b16 %v495
        %v702 = vunpack.c.l.b16 %v496
        %v703 = vunpack.c.h.b16 %v496
        %v704 = vunpack.c.l.b16 %v497
        %v705 = vunpack.c.l.b16 %v498
        %v706 = vunpack.c.h.b16 %v498
        %v707 = vunpack.c.l.b16 %v499
        %v708 = vunpack.c.l.b16 %v500
        %v709 = vunpack.c.h.b16 %v500
        %v710 = vunpack.c.l.b16 %v501
        %v711 = vunpack.c.l.b16 %v502
        %v712 = vunpack.c.h.b16 %v502
        %v713 = vunpack.c.l.b16 %v503
        %v714 = vunpack.c.l.b16 %v504
        %v715 = vunpack.c.h.b16 %v504
        %v716 = vunpack.c.l.b16 %v505
        %v717 = vunpack.c.l.b16 %v506
        %v718 = vunpack.c.h.b16 %v506
        %v719 = vunpack.c.l.b16 %v507
        %v720 = vunpack.c.l.b16 %v508
        %v721 = vunpack.c.h.b16 %v508
        %v722 = vunpack.c.l.b16 %v509
        %v723 = vunpack.c.l.b16 %v510
        %v724 = vunpack.c.h.b16 %v510
        %v725 = vunpack.c.l.b16 %v511
        %v726 = vunpack.c.l.b16 %v512
        %v727 = vunpack.c.h.b16 %v512
        %v728 = vunpack.c.l.b16 %v513
        %v729 = vunpack.c.l.b16 %v514
        %v730 = vunpack.c.h.b16 %v514
        %v731 = vunpack.c.l.b16 %v515
        %v732 = vpack.c.b16 %v687, %v684
        %v733 = vpack.c.b16 %v688, %v685
        %v734 = vpack.c.b16 %v689, %v686
        %v735 = vpack.c.b16 %v693, %v690
        %v736 = vpack.c.b16 %v694, %v691
        %v737 = vpack.c.b16 %v695, %v692
        %v738 = vpack.c.b16 %v699, %v696
        %v739 = vpack.c.b16 %v700, %v697
        %v740 = vpack.c.b16 %v701, %v698
        %v741 = vpack.c.b16 %v705, %v702
        %v742 = vpack.c.b16 %v706, %v703
        %v743 = vpack.c.b16 %v707, %v704
        %v744 = vpack.c.b16 %v711, %v708
        %v745 = vpack.c.b16 %v712, %v709
        %v746 = vpack.c.b16 %v713, %v710
        %v747 = vpack.c.b16 %v717, %v714
        %v748 = vpack.c.b16 %v718, %v715
        %v749 = vpack.c.b16 %v719, %v716
        %v750 = vpack.c.b16 %v723, %v720
        %v751 = vpack.c.b16 %v724, %v721
        %v752 = vpack.c.b16 %v725, %v722
        %v753 = vpack.c.b16 %v729, %v726
        %v754 = vpack.c.b16 %v730, %v727
        %v755 = vpack.c.b16 %v731, %v728
        %780 = vmatprep.subr.bf16.mxu0 %v733
        %781 = vmatpush1.bf16.msra.mxu0 %v732
        %782 = vmatprep.subr.bf16.mxu0 %v736
        %783 = vmatpush1.bf16.msra.mxu0 %v735
        %784 = vmatprep.subr.bf16.mxu0 %v739
        %785 = vmatpush1.bf16.msra.mxu0 %v738
        %786 = vmatprep.subr.bf16.mxu0 %v742
        %787 = vmatpush1.bf16.msra.mxu0 %v741
        %788 = vmatprep.subr.bf16.mxu0 %v745
        %789 = vmatpush1.bf16.msra.mxu0 %v744
        %790 = vmatprep.subr.bf16.mxu0 %v748
        %791 = vmatpush1.bf16.msra.mxu0 %v747
        %792 = vmatprep.subr.bf16.mxu0 %v751
        %793 = vmatpush1.bf16.msra.mxu0 %v750
        %794 = vmatprep.subr.bf16.mxu0 %v754
        %795 = vmatpush1.bf16.msra.mxu0 %v753
        %796 = vmatprep.subr.bf16.mxu0 0
        %797 = vmatpush1.bf16.msra.mxu0 0
        %798 = vmatprep.subr.bf16.mxu0 0
        %799 = vmatpush1.bf16.msra.mxu0 0
        %800 = vmatprep.subr.bf16.mxu0 0
        %801 = vmatpush1.bf16.msra.mxu0 0
        %802 = vmatprep.subr.bf16.mxu0 0
        %803 = vmatpush1.bf16.msra.mxu0 0
        %804 = vmatprep.subr.bf16.mxu0 0
        %805 = vmatpush1.bf16.msra.mxu0 0
        %806 = vmatprep.subr.bf16.mxu0 0
        %807 = vmatpush1.bf16.msra.mxu0 0
        %808 = vmatprep.subr.bf16.mxu0 0
        %809 = vmatpush1.bf16.msra.mxu0 0
        %810 = vmatprep.subr.bf16.mxu0 0
        %811 = vmatpush1.bf16.msra.mxu0 0
        %812 = vmatprep.mubr.bf16.mxu0 0
        %813 = vmatmul.mubr.bf16.gmra.mrb[0].mxu0 %v482
        %v814 = vpop.f32.mrb[0].mxu0
        %v815 = vadd.f32 %v640, %v814
        %v816 = vpop.f32.mrb[0].mxu0
        %v817 = vadd.f32 %v644, %v816
        %v818 = vpop.f32.mrb[0].mxu0
        %v819 = vpop.f32.mrb[0].mxu0
        %820 = vdwg.mxu0
        %821 = vmatprep.subr.bf16.mxu0 0
        %822 = vmatpush1.bf16.msra.mxu0 %v734
        %823 = vmatprep.subr.bf16.mxu0 0
        %824 = vmatpush1.bf16.msra.mxu0 %v737
        %825 = vmatprep.subr.bf16.mxu0 0
        %826 = vmatpush1.bf16.msra.mxu0 %v740
        %827 = vmatprep.subr.bf16.mxu0 0
        %828 = vmatpush1.bf16.msra.mxu0 %v743
        %829 = vmatprep.subr.bf16.mxu0 0
        %830 = vmatpush1.bf16.msra.mxu0 %v746
        %831 = vmatprep.subr.bf16.mxu0 0
        %832 = vmatpush1.bf16.msra.mxu0 %v749
        %833 = vmatprep.subr.bf16.mxu0 0
        %834 = vmatpush1.bf16.msra.mxu0 %v752
        %835 = vmatprep.subr.bf16.mxu0 0
        %836 = vmatpush1.bf16.msra.mxu0 %v755
        %837 = vmatprep.subr.bf16.mxu0 0
        %838 = vmatpush1.bf16.msra.mxu0 0
        %839 = vmatprep.subr.bf16.mxu0 0
        %840 = vmatpush1.bf16.msra.mxu0 0
        %841 = vmatprep.subr.bf16.mxu0 0
        %842 = vmatpush1.bf16.msra.mxu0 0
        %843 = vmatprep.subr.bf16.mxu0 0
        %844 = vmatpush1.bf16.msra.mxu0 0
        %845 = vmatprep.subr.bf16.mxu0 0
        %846 = vmatpush1.bf16.msra.mxu0 0
        %847 = vmatprep.subr.bf16.mxu0 0
        %848 = vmatpush1.bf16.msra.mxu0 0
        %849 = vmatprep.subr.bf16.mxu0 0
        %850 = vmatpush1.bf16.msra.mxu0 0
        %851 = vmatprep.subr.bf16.mxu0 0
        %852 = vmatpush1.bf16.msra.mxu0 0
        %853 = vmatprep.mubr.bf16.mxu0 0
        %854 = vmatmul.mubr.bf16.gmra.mrb[0].mxu0 %v482
        %v855 = vpop.f32.mrb[0].mxu0
        %v856 = vadd.f32 %v648, %v855
        %v857 = vpop.f32.mrb[0].mxu0
        %v858 = vpop.f32.mrb[0].mxu0
        %v859 = vpop.f32.mrb[0].mxu0
        %860 = vdwg.mxu0
        %v861 = vpack.c.bf16 %v815, %v815
        %v862 = vpack.c.bf16 %v817, %v817
        %v863 = vpack.c.bf16 %v856, %v856
        %864 = vxpose.xlu0.c.b16.start [1/8] %v861, 128
        %865 = vxpose.xlu0.c.b16.cont [2/8] 0, 128
        %866 = vxpose.xlu0.c.b16.cont [3/8] 0, 128
        %867 = vxpose.xlu0.c.b16.cont [4/8] 0, 128
        %868 = vxpose.xlu0.c.b16.cont [5/8] 0, 128
        %869 = vxpose.xlu0.c.b16.cont [6/8] 0, 128
        %870 = vxpose.xlu0.c.b16.cont [7/8] 0, 128
        %871 = vxpose.xlu0.c.b16.end [8/8] 0, 128
        %v872 = vpop.trf.xlu0
        %v873 = vpop.trf.xlu0
        %v874 = vpop.trf.xlu0
        %v875 = vpop.trf.xlu0
        %v876 = vpop.trf.xlu0
        %v877 = vpop.trf.xlu0
        %v878 = vpop.trf.xlu0
        %v879 = vpop.trf.xlu0
        %880 = vxpose.xlu0.c.b16.start [1/8] %v862, 128
        %881 = vxpose.xlu0.c.b16.cont [2/8] 0, 128
        %882 = vxpose.xlu0.c.b16.cont [3/8] 0, 128
        %883 = vxpose.xlu0.c.b16.cont [4/8] 0, 128
        %884 = vxpose.xlu0.c.b16.cont [5/8] 0, 128
        %885 = vxpose.xlu0.c.b16.cont [6/8] 0, 128
        %886 = vxpose.xlu0.c.b16.cont [7/8] 0, 128
        %887 = vxpose.xlu0.c.b16.end [8/8] 0, 128
        %v888 = vpop.trf.xlu0
        %v889 = vpop.trf.xlu0
        %v890 = vpop.trf.xlu0
        %v891 = vpop.trf.xlu0
        %v892 = vpop.trf.xlu0
        %v893 = vpop.trf.xlu0
        %v894 = vpop.trf.xlu0
        %v895 = vpop.trf.xlu0
        %896 = vxpose.xlu0.c.b16.start [1/8] %v863, 128
        %897 = vxpose.xlu0.c.b16.cont [2/8] 0, 128
        %898 = vxpose.xlu0.c.b16.cont [3/8] 0, 128
        %899 = vxpose.xlu0.c.b16.cont [4/8] 0, 128
        %900 = vxpose.xlu0.c.b16.cont [5/8] 0, 128
        %901 = vxpose.xlu0.c.b16.cont [6/8] 0, 128
        %902 = vxpose.xlu0.c.b16.cont [7/8] 0, 128
        %903 = vxpose.xlu0.c.b16.end [8/8] 0, 128
        %v904 = vpop.trf.xlu0
        %v905 = vpop.trf.xlu0
        %v906 = vpop.trf.xlu0
        %v907 = vpop.trf.xlu0
        %v908 = vpop.trf.xlu0
        %v909 = vpop.trf.xlu0
        %v910 = vpop.trf.xlu0
        %v911 = vpop.trf.xlu0
        %v912 = vmul.bf16 %v872, 1048592000
        %v913 = vmul.bf16 %v873, 1048592000
        %v914 = vmul.bf16 %v874, 1048592000
        %v915 = vmul.bf16 %v875, 1048592000
        %v916 = vmul.bf16 %v876, 1048592000
        %v917 = vmul.bf16 %v877, 1048592000
        %v918 = vmul.bf16 %v878, 1048592000
        %v919 = vmul.bf16 %v879, 1048592000
        %920 = vxpose.xlu0.c.b16.start [1/8] %v912, 128
        %921 = vxpose.xlu0.c.b16.cont [2/8] 0, 128
        %922 = vxpose.xlu0.c.b16.cont [3/8] 0, 128
        %923 = vxpose.xlu0.c.b16.cont [4/8] 0, 128
        %924 = vxpose.xlu0.c.b16.cont [5/8] 0, 128
        %925 = vxpose.xlu0.c.b16.cont [6/8] 0, 128
        %926 = vxpose.xlu0.c.b16.cont [7/8] 0, 128
        %927 = vxpose.xlu0.c.b16.end [8/8] 0, 128
        %v928 = vpop.trf.xlu0
        %v929 = vpop.trf.xlu0
        %v930 = vpop.trf.xlu0
        %v931 = vpop.trf.xlu0
        %v932 = vpop.trf.xlu0
        %v933 = vpop.trf.xlu0
        %v934 = vpop.trf.xlu0
        %v935 = vpop.trf.xlu0
        %936 = vxpose.xlu0.c.b16.start [1/8] %v913, 128
        %937 = vxpose.xlu0.c.b16.cont [2/8] 0, 128
        %938 = vxpose.xlu0.c.b16.cont [3/8] 0, 128
        %939 = vxpose.xlu0.c.b16.cont [4/8] 0, 128
        %940 = vxpose.xlu0.c.b16.cont [5/8] 0, 128
        %941 = vxpose.xlu0.c.b16.cont [6/8] 0, 128
        %942 = vxpose.xlu0.c.b16.cont [7/8] 0, 128
        %943 = vxpose.xlu0.c.b16.end [8/8] 0, 128
        %v944 = vpop.trf.xlu0
        %v945 = vpop.trf.xlu0
        %v946 = vpop.trf.xlu0
        %v947 = vpop.trf.xlu0
        %v948 = vpop.trf.xlu0
        %v949 = vpop.trf.xlu0
        %v950 = vpop.trf.xlu0
        %v951 = vpop.trf.xlu0
        %952 = vxpose.xlu0.c.b16.start [1/8] %v914, 128
        %953 = vxpose.xlu0.c.b16.cont [2/8] 0, 128
        %954 = vxpose.xlu0.c.b16.cont [3/8] 0, 128
        %955 = vxpose.xlu0.c.b16.cont [4/8] 0, 128
        %956 = vxpose.xlu0.c.b16.cont [5/8] 0, 128
        %957 = vxpose.xlu0.c.b16.cont [6/8] 0, 128
        %958 = vxpose.xlu0.c.b16.cont [7/8] 0, 128
        %959 = vxpose.xlu0.c.b16.end [8/8] 0, 128
        %v960 = vpop.trf.xlu0
        %v961 = vpop.trf.xlu0
        %v962 = vpop.trf.xlu0
        %v963 = vpop.trf.xlu0
        %v964 = vpop.trf.xlu0
        %v965 = vpop.trf.xlu0
        %v966 = vpop.trf.xlu0
        %v967 = vpop.trf.xlu0
        %968 = vxpose.xlu0.c.b16.start [1/8] %v915, 128
        %969 = vxpose.xlu0.c.b16.cont [2/8] 0, 128
        %970 = vxpose.xlu0.c.b16.cont [3/8] 0, 128
        %971 = vxpose.xlu0.c.b16.cont [4/8] 0, 128
        %972 = vxpose.xlu0.c.b16.cont [5/8] 0, 128
        %973 = vxpose.xlu0.c.b16.cont [6/8] 0, 128
        %974 = vxpose.xlu0.c.b16.cont [7/8] 0, 128
        %975 = vxpose.xlu0.c.b16.end [8/8] 0, 128
        %v976 = vpop.trf.xlu0
        %v977 = vpop.trf.xlu0
        %v978 = vpop.trf.xlu0
        %v979 = vpop.trf.xlu0
        %v980 = vpop.trf.xlu0
        %v981 = vpop.trf.xlu0
        %v982 = vpop.trf.xlu0
        %v983 = vpop.trf.xlu0
        %984 = vxpose.xlu0.c.b16.start [1/8] %v916, 128
        %985 = vxpose.xlu0.c.b16.cont [2/8] 0, 128
        %986 = vxpose.xlu0.c.b16.cont [3/8] 0, 128
        %987 = vxpose.xlu0.c.b16.cont [4/8] 0, 128
        %988 = vxpose.xlu0.c.b16.cont [5/8] 0, 128
        %989 = vxpose.xlu0.c.b16.cont [6/8] 0, 128
        %990 = vxpose.xlu0.c.b16.cont [7/8] 0, 128
        %991 = vxpose.xlu0.c.b16.end [8/8] 0, 128
        %v992 = vpop.trf.xlu0
        %v993 = vpop.trf.xlu0
        %v994 = vpop.trf.xlu0
        %v995 = vpop.trf.xlu0
        %v996 = vpop.trf.xlu0
        %v997 = vpop.trf.xlu0
        %v998 = vpop.trf.xlu0
        %v999 = vpop.trf.xlu0
        %1000 = vxpose.xlu0.c.b16.start [1/8] %v917, 128
        %1001 = vxpose.xlu0.c.b16.cont [2/8] 0, 128
        %1002 = vxpose.xlu0.c.b16.cont [3/8] 0, 128
        %1003 = vxpose.xlu0.c.b16.cont [4/8] 0, 128
        %1004 = vxpose.xlu0.c.b16.cont [5/8] 0, 128
        %1005 = vxpose.xlu0.c.b16.cont [6/8] 0, 128
        %1006 = vxpose.xlu0.c.b16.cont [7/8] 0, 128
        %1007 = vxpose.xlu0.c.b16.end [8/8] 0, 128
        %v1008 = vpop.trf.xlu0
        %v1009 = vpop.trf.xlu0
        %v1010 = vpop.trf.xlu0
        %v1011 = vpop.trf.xlu0
        %v1012 = vpop.trf.xlu0
        %v1013 = vpop.trf.xlu0
        %v1014 = vpop.trf.xlu0
        %v1015 = vpop.trf.xlu0
        %1016 = vxpose.xlu0.c.b16.start [1/8] %v918, 128
        %1017 = vxpose.xlu0.c.b16.cont [2/8] 0, 128
        %1018 = vxpose.xlu0.c.b16.cont [3/8] 0, 128
        %1019 = vxpose.xlu0.c.b16.cont [4/8] 0, 128
        %1020 = vxpose.xlu0.c.b16.cont [5/8] 0, 128
        %1021 = vxpose.xlu0.c.b16.cont [6/8] 0, 128
        %1022 = vxpose.xlu0.c.b16.cont [7/8] 0, 128
        %1023 = vxpose.xlu0.c.b16.end [8/8] 0, 128
        %v1024 = vpop.trf.xlu0
        %v1025 = vpop.trf.xlu0
        %v1026 = vpop.trf.xlu0
        %v1027 = vpop.trf.xlu0
        %v1028 = vpop.trf.xlu0
        %v1029 = vpop.trf.xlu0
        %v1030 = vpop.trf.xlu0
        %v1031 = vpop.trf.xlu0
        %1032 = vxpose.xlu0.c.b16.start [1/8] %v919, 128
        %1033 = vxpose.xlu0.c.b16.cont [2/8] 0, 128
        %1034 = vxpose.xlu0.c.b16.cont [3/8] 0, 128
        %1035 = vxpose.xlu0.c.b16.cont [4/8] 0, 128
        %1036 = vxpose.xlu0.c.b16.cont [5/8] 0, 128
        %1037 = vxpose.xlu0.c.b16.cont [6/8] 0, 128
        %1038 = vxpose.xlu0.c.b16.cont [7/8] 0, 128
        %1039 = vxpose.xlu0.c.b16.end [8/8] 0, 128
        %v1040 = vpop.trf.xlu0
        %v1041 = vpop.trf.xlu0
        %v1042 = vpop.trf.xlu0
        %v1043 = vpop.trf.xlu0
        %v1044 = vpop.trf.xlu0
        %v1045 = vpop.trf.xlu0
        %v1046 = vpop.trf.xlu0
        %v1047 = vpop.trf.xlu0
        %vm1048 = vcmask 130048
        %v1050 = vsel %vm1048, %v928, 0
        %1052 = vmatprep.subr.bf16.mxu0 0
        %1053 = vmatpush1.bf16.msra.mxu0 %v888
        %1054 = vmatprep.subr.bf16.mxu0 0
        %1055 = vmatpush1.bf16.msra.mxu0 0
        %1056 = vmatprep.subr.bf16.mxu0 0
        %1057 = vmatpush1.bf16.msra.mxu0 0
        %1058 = vmatprep.subr.bf16.mxu0 0
        %1059 = vmatpush1.bf16.msra.mxu0 0
        %1060 = vmatprep.subr.bf16.mxu0 0
        %1061 = vmatpush1.bf16.msra.mxu0 0
        %1062 = vmatprep.subr.bf16.mxu0 0
        %1063 = vmatpush1.bf16.msra.mxu0 0
        %1064 = vmatprep.subr.bf16.mxu0 0
        %1065 = vmatpush1.bf16.msra.mxu0 0
        %1066 = vmatprep.subr.bf16.mxu0 0
        %1067 = vmatpush1.bf16.msra.mxu0 0
        %1068 = vmatprep.subr.bf16.mxu0 0
        %1069 = vmatpush1.bf16.msra.mxu0 0
        %1070 = vmatprep.subr.bf16.mxu0 0
        %1071 = vmatpush1.bf16.msra.mxu0 0
        %1072 = vmatprep.subr.bf16.mxu0 0
        %1073 = vmatpush1.bf16.msra.mxu0 0
        %1074 = vmatprep.subr.bf16.mxu0 0
        %1075 = vmatpush1.bf16.msra.mxu0 0
        %1076 = vmatprep.subr.bf16.mxu0 0
        %1077 = vmatpush1.bf16.msra.mxu0 0
        %1078 = vmatprep.subr.bf16.mxu0 0
        %1079 = vmatpush1.bf16.msra.mxu0 0
        %1080 = vmatprep.subr.bf16.mxu0 0
        %1081 = vmatpush1.bf16.msra.mxu0 0
        %1082 = vmatprep.subr.bf16.mxu0 0
        %1083 = vmatpush1.bf16.msra.mxu0 0
        %1084 = vmatprep.mubr.bf16.mxu0 0
        %1085 = vmatmul.mubr.bf16.gmra.mrb[0].mxu0 %v1050
        %v1086 = vpop.f32.mrb[0].mxu0
        %v1087 = vadd.f32 0.0, %v1086
        %v1088 = vpop.f32.mrb[0].mxu0
        %v1089 = vpop.f32.mrb[0].mxu0
        %v1090 = vpop.f32.mrb[0].mxu0
        %1091 = vdwg.mxu0
        %v1093 = vsel %vm1048, %v944, 0
        %1095 = vmatprep.subr.bf16.mxu0 0
        %1096 = vmatpush1.bf16.msra.mxu0 %v889
        %1097 = vmatprep.subr.bf16.mxu0 0
        %1098 = vmatpush1.bf16.msra.mxu0 0
        %1099 = vmatprep.subr.bf16.mxu0 0
        %1100 = vmatpush1.bf16.msra.mxu0 0
        %1101 = vmatprep.subr.bf16.mxu0 0
        %1102 = vmatpush1.bf16.msra.mxu0 0
        %1103 = vmatprep.subr.bf16.mxu0 0
        %1104 = vmatpush1.bf16.msra.mxu0 0
        %1105 = vmatprep.subr.bf16.mxu0 0
        %1106 = vmatpush1.bf16.msra.mxu0 0
        %1107 = vmatprep.subr.bf16.mxu0 0
        %1108 = vmatpush1.bf16.msra.mxu0 0
        %1109 = vmatprep.subr.bf16.mxu0 0
        %1110 = vmatpush1.bf16.msra.mxu0 0
        %1111 = vmatprep.subr.bf16.mxu0 0
        %1112 = vmatpush1.bf16.msra.mxu0 0
        %1113 = vmatprep.subr.bf16.mxu0 0
        %1114 = vmatpush1.bf16.msra.mxu0 0
        %1115 = vmatprep.subr.bf16.mxu0 0
        %1116 = vmatpush1.bf16.msra.mxu0 0
        %1117 = vmatprep.subr.bf16.mxu0 0
        %1118 = vmatpush1.bf16.msra.mxu0 0
        %1119 = vmatprep.subr.bf16.mxu0 0
        %1120 = vmatpush1.bf16.msra.mxu0 0
        %1121 = vmatprep.subr.bf16.mxu0 0
        %1122 = vmatpush1.bf16.msra.mxu0 0
        %1123 = vmatprep.subr.bf16.mxu0 0
        %1124 = vmatpush1.bf16.msra.mxu0 0
        %1125 = vmatprep.subr.bf16.mxu0 0
        %1126 = vmatpush1.bf16.msra.mxu0 0
        %1127 = vmatprep.mubr.bf16.mxu0 0
        %1128 = vmatmul.mubr.bf16.gmra.mrb[0].mxu0 %v1093
        %v1129 = vpop.f32.mrb[0].mxu0
        %v1130 = vadd.f32 0.0, %v1129
        %v1131 = vpop.f32.mrb[0].mxu0
        %v1132 = vpop.f32.mrb[0].mxu0
        %v1133 = vpop.f32.mrb[0].mxu0
        %1134 = vdwg.mxu0
        %v1136 = vsel %vm1048, %v960, 0
        %1138 = vmatprep.subr.bf16.mxu0 0
        %1139 = vmatpush1.bf16.msra.mxu0 %v890
        %1140 = vmatprep.subr.bf16.mxu0 0
        %1141 = vmatpush1.bf16.msra.mxu0 0
        %1142 = vmatprep.subr.bf16.mxu0 0
        %1143 = vmatpush1.bf16.msra.mxu0 0
        %1144 = vmatprep.subr.bf16.mxu0 0
        %1145 = vmatpush1.bf16.msra.mxu0 0
        %1146 = vmatprep.subr.bf16.mxu0 0
        %1147 = vmatpush1.bf16.msra.mxu0 0
        %1148 = vmatprep.subr.bf16.mxu0 0
        %1149 = vmatpush1.bf16.msra.mxu0 0
        %1150 = vmatprep.subr.bf16.mxu0 0
        %1151 = vmatpush1.bf16.msra.mxu0 0
        %1152 = vmatprep.subr.bf16.mxu0 0
        %1153 = vmatpush1.bf16.msra.mxu0 0
        %1154 = vmatprep.subr.bf16.mxu0 0
        %1155 = vmatpush1.bf16.msra.mxu0 0
        %1156 = vmatprep.subr.bf16.mxu0 0
        %1157 = vmatpush1.bf16.msra.mxu0 0
        %1158 = vmatprep.subr.bf16.mxu0 0
        %1159 = vmatpush1.bf16.msra.mxu0 0
        %1160 = vmatprep.subr.bf16.mxu0 0
        %1161 = vmatpush1.bf16.msra.mxu0 0
        %1162 = vmatprep.subr.bf16.mxu0 0
        %1163 = vmatpush1.bf16.msra.mxu0 0
        %1164 = vmatprep.subr.bf16.mxu0 0
        %1165 = vmatpush1.bf16.msra.mxu0 0
        %1166 = vmatprep.subr.bf16.mxu0 0
        %1167 = vmatpush1.bf16.msra.mxu0 0
        %1168 = vmatprep.subr.bf16.mxu0 0
        %1169 = vmatpush1.bf16.msra.mxu0 0
        %1170 = vmatprep.mubr.bf16.mxu0 0
        %1171 = vmatmul.mubr.bf16.gmra.mrb[0].mxu0 %v1136
        %v1172 = vpop.f32.mrb[0].mxu0
        %v1173 = vadd.f32 0.0, %v1172
        %v1174 = vpop.f32.mrb[0].mxu0
        %v1175 = vpop.f32.mrb[0].mxu0
        %v1176 = vpop.f32.mrb[0].mxu0
        %1177 = vdwg.mxu0
        %v1179 = vsel %vm1048, %v976, 0
        %1181 = vmatprep.subr.bf16.mxu0 0
        %1182 = vmatpush1.bf16.msra.mxu0 %v891
        %1183 = vmatprep.subr.bf16.mxu0 0
        %1184 = vmatpush1.bf16.msra.mxu0 0
        %1185 = vmatprep.subr.bf16.mxu0 0
        %1186 = vmatpush1.bf16.msra.mxu0 0
        %1187 = vmatprep.subr.bf16.mxu0 0
        %1188 = vmatpush1.bf16.msra.mxu0 0
        %1189 = vmatprep.subr.bf16.mxu0 0
        %1190 = vmatpush1.bf16.msra.mxu0 0
        %1191 = vmatprep.subr.bf16.mxu0 0
        %1192 = vmatpush1.bf16.msra.mxu0 0
        %1193 = vmatprep.subr.bf16.mxu0 0
        %1194 = vmatpush1.bf16.msra.mxu0 0
        %1195 = vmatprep.subr.bf16.mxu0 0
        %1196 = vmatpush1.bf16.msra.mxu0 0
        %1197 = vmatprep.subr.bf16.mxu0 0
        %1198 = vmatpush1.bf16.msra.mxu0 0
        %1199 = vmatprep.subr.bf16.mxu0 0
        %1200 = vmatpush1.bf16.msra.mxu0 0
        %1201 = vmatprep.subr.bf16.mxu0 0
        %1202 = vmatpush1.bf16.msra.mxu0 0
        %1203 = vmatprep.subr.bf16.mxu0 0
        %1204 = vmatpush1.bf16.msra.mxu0 0
        %1205 = vmatprep.subr.bf16.mxu0 0
        %1206 = vmatpush1.bf16.msra.mxu0 0
        %1207 = vmatprep.subr.bf16.mxu0 0
        %1208 = vmatpush1.bf16.msra.mxu0 0
        %1209 = vmatprep.subr.bf16.mxu0 0
        %1210 = vmatpush1.bf16.msra.mxu0 0
        %1211 = vmatprep.subr.bf16.mxu0 0
        %1212 = vmatpush1.bf16.msra.mxu0 0
        %1213 = vmatprep.mubr.bf16.mxu0 0
        %1214 = vmatmul.mubr.bf16.gmra.mrb[0].mxu0 %v1179
        %v1215 = vpop.f32.mrb[0].mxu0
        %v1216 = vadd.f32 0.0, %v1215
        %v1217 = vpop.f32.mrb[0].mxu0
        %v1218 = vpop.f32.mrb[0].mxu0
        %v1219 = vpop.f32.mrb[0].mxu0
        %1220 = vdwg.mxu0
        %v1222 = vsel %vm1048, %v992, 0
        %1224 = vmatprep.subr.bf16.mxu0 0
        %1225 = vmatpush1.bf16.msra.mxu0 %v892
        %1226 = vmatprep.subr.bf16.mxu0 0
        %1227 = vmatpush1.bf16.msra.mxu0 0
        %1228 = vmatprep.subr.bf16.mxu0 0
        %1229 = vmatpush1.bf16.msra.mxu0 0
        %1230 = vmatprep.subr.bf16.mxu0 0
        %1231 = vmatpush1.bf16.msra.mxu0 0
        %1232 = vmatprep.subr.bf16.mxu0 0
        %1233 = vmatpush1.bf16.msra.mxu0 0
        %1234 = vmatprep.subr.bf16.mxu0 0
        %1235 = vmatpush1.bf16.msra.mxu0 0
        %1236 = vmatprep.subr.bf16.mxu0 0
        %1237 = vmatpush1.bf16.msra.mxu0 0
        %1238 = vmatprep.subr.bf16.mxu0 0
        %1239 = vmatpush1.bf16.msra.mxu0 0
        %1240 = vmatprep.subr.bf16.mxu0 0
        %1241 = vmatpush1.bf16.msra.mxu0 0
        %1242 = vmatprep.subr.bf16.mxu0 0
        %1243 = vmatpush1.bf16.msra.mxu0 0
        %1244 = vmatprep.subr.bf16.mxu0 0
        %1245 = vmatpush1.bf16.msra.mxu0 0
        %1246 = vmatprep.subr.bf16.mxu0 0
        %1247 = vmatpush1.bf16.msra.mxu0 0
        %1248 = vmatprep.subr.bf16.mxu0 0
        %1249 = vmatpush1.bf16.msra.mxu0 0
        %1250 = vmatprep.subr.bf16.mxu0 0
        %1251 = vmatpush1.bf16.msra.mxu0 0
        %1252 = vmatprep.subr.bf16.mxu0 0
        %1253 = vmatpush1.bf16.msra.mxu0 0
        %1254 = vmatprep.subr.bf16.mxu0 0
        %1255 = vmatpush1.bf16.msra.mxu0 0
        %1256 = vmatprep.mubr.bf16.mxu0 0
        %1257 = vmatmul.mubr.bf16.gmra.mrb[0].mxu0 %v1222
        %v1258 = vpop.f32.mrb[0].mxu0
        %v1259 = vadd.f32 0.0, %v1258
        %v1260 = vpop.f32.mrb[0].mxu0
        %v1261 = vpop.f32.mrb[0].mxu0
        %v1262 = vpop.f32.mrb[0].mxu0
        %1263 = vdwg.mxu0
        %v1265 = vsel %vm1048, %v1008, 0
        %1267 = vmatprep.subr.bf16.mxu0 0
        %1268 = vmatpush1.bf16.msra.mxu0 %v893
        %1269 = vmatprep.subr.bf16.mxu0 0
        %1270 = vmatpush1.bf16.msra.mxu0 0
        %1271 = vmatprep.subr.bf16.mxu0 0
        %1272 = vmatpush1.bf16.msra.mxu0 0
        %1273 = vmatprep.subr.bf16.mxu0 0
        %1274 = vmatpush1.bf16.msra.mxu0 0
        %1275 = vmatprep.subr.bf16.mxu0 0
        %1276 = vmatpush1.bf16.msra.mxu0 0
        %1277 = vmatprep.subr.bf16.mxu0 0
        %1278 = vmatpush1.bf16.msra.mxu0 0
        %1279 = vmatprep.subr.bf16.mxu0 0
        %1280 = vmatpush1.bf16.msra.mxu0 0
        %1281 = vmatprep.subr.bf16.mxu0 0
        %1282 = vmatpush1.bf16.msra.mxu0 0
        %1283 = vmatprep.subr.bf16.mxu0 0
        %1284 = vmatpush1.bf16.msra.mxu0 0
        %1285 = vmatprep.subr.bf16.mxu0 0
        %1286 = vmatpush1.bf16.msra.mxu0 0
        %1287 = vmatprep.subr.bf16.mxu0 0
        %1288 = vmatpush1.bf16.msra.mxu0 0
        %1289 = vmatprep.subr.bf16.mxu0 0
        %1290 = vmatpush1.bf16.msra.mxu0 0
        %1291 = vmatprep.subr.bf16.mxu0 0
        %1292 = vmatpush1.bf16.msra.mxu0 0
        %1293 = vmatprep.subr.bf16.mxu0 0
        %1294 = vmatpush1.bf16.msra.mxu0 0
        %1295 = vmatprep.subr.bf16.mxu0 0
        %1296 = vmatpush1.bf16.msra.mxu0 0
        %1297 = vmatprep.subr.bf16.mxu0 0
        %1298 = vmatpush1.bf16.msra.mxu0 0
        %1299 = vmatprep.mubr.bf16.mxu0 0
        %1300 = vmatmul.mubr.bf16.gmra.mrb[0].mxu0 %v1265
        %v1301 = vpop.f32.mrb[0].mxu0
        %v1302 = vadd.f32 0.0, %v1301
        %v1303 = vpop.f32.mrb[0].mxu0
        %v1304 = vpop.f32.mrb[0].mxu0
        %v1305 = vpop.f32.mrb[0].mxu0
        %1306 = vdwg.mxu0
        %v1308 = vsel %vm1048, %v1024, 0
        %1310 = vmatprep.subr.bf16.mxu0 0
        %1311 = vmatpush1.bf16.msra.mxu0 %v894
        %1312 = vmatprep.subr.bf16.mxu0 0
        %1313 = vmatpush1.bf16.msra.mxu0 0
        %1314 = vmatprep.subr.bf16.mxu0 0
        %1315 = vmatpush1.bf16.msra.mxu0 0
        %1316 = vmatprep.subr.bf16.mxu0 0
        %1317 = vmatpush1.bf16.msra.mxu0 0
        %1318 = vmatprep.subr.bf16.mxu0 0
        %1319 = vmatpush1.bf16.msra.mxu0 0
        %1320 = vmatprep.subr.bf16.mxu0 0
        %1321 = vmatpush1.bf16.msra.mxu0 0
        %1322 = vmatprep.subr.bf16.mxu0 0
        %1323 = vmatpush1.bf16.msra.mxu0 0
        %1324 = vmatprep.subr.bf16.mxu0 0
        %1325 = vmatpush1.bf16.msra.mxu0 0
        %1326 = vmatprep.subr.bf16.mxu0 0
        %1327 = vmatpush1.bf16.msra.mxu0 0
        %1328 = vmatprep.subr.bf16.mxu0 0
        %1329 = vmatpush1.bf16.msra.mxu0 0
        %1330 = vmatprep.subr.bf16.mxu0 0
        %1331 = vmatpush1.bf16.msra.mxu0 0
        %1332 = vmatprep.subr.bf16.mxu0 0
        %1333 = vmatpush1.bf16.msra.mxu0 0
        %1334 = vmatprep.subr.bf16.mxu0 0
        %1335 = vmatpush1.bf16.msra.mxu0 0
        %1336 = vmatprep.subr.bf16.mxu0 0
        %1337 = vmatpush1.bf16.msra.mxu0 0
        %1338 = vmatprep.subr.bf16.mxu0 0
        %1339 = vmatpush1.bf16.msra.mxu0 0
        %1340 = vmatprep.subr.bf16.mxu0 0
        %1341 = vmatpush1.bf16.msra.mxu0 0
        %1342 = vmatprep.mubr.bf16.mxu0 0
        %1343 = vmatmul.mubr.bf16.gmra.mrb[0].mxu0 %v1308
        %v1344 = vpop.f32.mrb[0].mxu0
        %v1345 = vadd.f32 0.0, %v1344
        %v1346 = vpop.f32.mrb[0].mxu0
        %v1347 = vpop.f32.mrb[0].mxu0
        %v1348 = vpop.f32.mrb[0].mxu0
        %1349 = vdwg.mxu0
        %v1351 = vsel %vm1048, %v1040, 0
        %1353 = vmatprep.subr.bf16.mxu0 0
        %1354 = vmatpush1.bf16.msra.mxu0 %v895
        %1355 = vmatprep.subr.bf16.mxu0 0
        %1356 = vmatpush1.bf16.msra.mxu0 0
        %1357 = vmatprep.subr.bf16.mxu0 0
        %1358 = vmatpush1.bf16.msra.mxu0 0
        %1359 = vmatprep.subr.bf16.mxu0 0
        %1360 = vmatpush1.bf16.msra.mxu0 0
        %1361 = vmatprep.subr.bf16.mxu0 0
        %1362 = vmatpush1.bf16.msra.mxu0 0
        %1363 = vmatprep.subr.bf16.mxu0 0
        %1364 = vmatpush1.bf16.msra.mxu0 0
        %1365 = vmatprep.subr.bf16.mxu0 0
        %1366 = vmatpush1.bf16.msra.mxu0 0
        %1367 = vmatprep.subr.bf16.mxu0 0
        %1368 = vmatpush1.bf16.msra.mxu0 0
        %1369 = vmatprep.subr.bf16.mxu0 0
        %1370 = vmatpush1.bf16.msra.mxu0 0
        %1371 = vmatprep.subr.bf16.mxu0 0
        %1372 = vmatpush1.bf16.msra.mxu0 0
        %1373 = vmatprep.subr.bf16.mxu0 0
        %1374 = vmatpush1.bf16.msra.mxu0 0
        %1375 = vmatprep.subr.bf16.mxu0 0
        %1376 = vmatpush1.bf16.msra.mxu0 0
        %1377 = vmatprep.subr.bf16.mxu0 0
        %1378 = vmatpush1.bf16.msra.mxu0 0
        %1379 = vmatprep.subr.bf16.mxu0 0
        %1380 = vmatpush1.bf16.msra.mxu0 0
        %1381 = vmatprep.subr.bf16.mxu0 0
        %1382 = vmatpush1.bf16.msra.mxu0 0
        %1383 = vmatprep.subr.bf16.mxu0 0
        %1384 = vmatpush1.bf16.msra.mxu0 0
        %1385 = vmatprep.mubr.bf16.mxu0 0
        %1386 = vmatmul.mubr.bf16.gmra.mrb[0].mxu0 %v1351
        %v1387 = vpop.f32.mrb[0].mxu0
        %v1388 = vadd.f32 0.0, %v1387
        %v1389 = vpop.f32.mrb[0].mxu0
        %v1390 = vpop.f32.mrb[0].mxu0
        %v1391 = vpop.f32.mrb[0].mxu0
        %1392 = vdwg.mxu0
        %vm1393 = vcmask 64512
        %v1394 = vsel %vm1393, %v1087, -inf
        %1395 = vmax.xlane.f32.xlu0 %v1394
        %v1396 = vpop.xlane.xlu0 %1395
        %v1397 = vsel %vm1393, %v1130, -inf
        %1398 = vmax.xlane.f32.xlu0 %v1397
        %v1399 = vpop.xlane.xlu0 %1398
        %v1400 = vsel %vm1393, %v1173, -inf
        %1401 = vmax.xlane.f32.xlu0 %v1400
        %v1402 = vpop.xlane.xlu0 %1401
        %v1403 = vsel %vm1393, %v1216, -inf
        %1404 = vmax.xlane.f32.xlu0 %v1403
        %v1405 = vpop.xlane.xlu0 %1404
        %v1406 = vsel %vm1393, %v1259, -inf
        %1407 = vmax.xlane.f32.xlu0 %v1406
        %v1408 = vpop.xlane.xlu0 %1407
        %v1409 = vsel %vm1393, %v1302, -inf
        %1410 = vmax.xlane.f32.xlu0 %v1409
        %v1411 = vpop.xlane.xlu0 %1410
        %v1412 = vsel %vm1393, %v1345, -inf
        %1413 = vmax.xlane.f32.xlu0 %v1412
        %v1414 = vpop.xlane.xlu0 %1413
        %v1415 = vsel %vm1393, %v1388, -inf
        %1416 = vmax.xlane.f32.xlu0 %v1415
        %v1417 = vpop.xlane.xlu0 %1416
        %v1418 = vsub.f32 %v1087, %v1396
        %v1419 = vsub.f32 %v1130, %v1399
        %v1420 = vsub.f32 %v1173, %v1402
        %v1421 = vsub.f32 %v1216, %v1405
        %v1422 = vsub.f32 %v1259, %v1408
        %v1423 = vsub.f32 %v1302, %v1411
        %v1424 = vsub.f32 %v1345, %v1414
        %v1425 = vsub.f32 %v1388, %v1417
        %v1426 = vmul.f32 %v1418, 1.442695
        %v1427 = vpow.pop %v1426
        %v1428 = vmul.f32 %v1419, 1.442695
        %v1429 = vpow.pop %v1428
        %v1430 = vmul.f32 %v1420, 1.442695
        %v1431 = vpow.pop %v1430
        %v1432 = vmul.f32 %v1421, 1.442695
        %v1433 = vpow.pop %v1432
        %v1434 = vmul.f32 %v1422, 1.442695
        %v1435 = vpow.pop %v1434
        %v1436 = vmul.f32 %v1423, 1.442695
        %v1437 = vpow.pop %v1436
        %v1438 = vmul.f32 %v1424, 1.442695
        %v1439 = vpow.pop %v1438
        %v1440 = vmul.f32 %v1425, 1.442695
        %v1441 = vpow.pop %v1440
        %v1442 = vsel %vm1393, %v1427, 0.0
        %1443 = vadd.xlane.f32.xlu0 %v1442
        %v1444 = vpop.xlane.xlu0 %1443
        %v1445 = vsel %vm1393, %v1429, 0.0
        %1446 = vadd.xlane.f32.xlu0 %v1445
        %v1447 = vpop.xlane.xlu0 %1446
        %v1448 = vsel %vm1393, %v1431, 0.0
        %1449 = vadd.xlane.f32.xlu0 %v1448
        %v1450 = vpop.xlane.xlu0 %1449
        %v1451 = vsel %vm1393, %v1433, 0.0
        %1452 = vadd.xlane.f32.xlu0 %v1451
        %v1453 = vpop.xlane.xlu0 %1452
        %v1454 = vsel %vm1393, %v1435, 0.0
        %1455 = vadd.xlane.f32.xlu0 %v1454
        %v1456 = vpop.xlane.xlu0 %1455
        %v1457 = vsel %vm1393, %v1437, 0.0
        %1458 = vadd.xlane.f32.xlu0 %v1457
        %v1459 = vpop.xlane.xlu0 %1458
        %v1460 = vsel %vm1393, %v1439, 0.0
        %1461 = vadd.xlane.f32.xlu0 %v1460
        %v1462 = vpop.xlane.xlu0 %1461
        %v1463 = vsel %vm1393, %v1441, 0.0
        %1464 = vadd.xlane.f32.xlu0 %v1463
        %v1465 = vpop.xlane.xlu0 %1464
        %v1466 = vrcp.pop %v1444
        %v1467 = vrcp.pop %v1447
        %v1468 = vrcp.pop %v1450
        %v1469 = vrcp.pop %v1453
        %v1470 = vrcp.pop %v1456
        %v1471 = vrcp.pop %v1459
        %v1472 = vrcp.pop %v1462
        %v1473 = vrcp.pop %v1465
        %v1474 = vmul.f32 %v1427, %v1466
        %v1475 = vmul.f32 %v1429, %v1467
        %v1476 = vmul.f32 %v1431, %v1468
        %v1477 = vmul.f32 %v1433, %v1469
        %v1478 = vmul.f32 %v1435, %v1470
        %v1479 = vmul.f32 %v1437, %v1471
        %v1480 = vmul.f32 %v1439, %v1472
        %v1481 = vmul.f32 %v1441, %v1473
        %v1482 = vpack.c.bf16 %v1474, %v1474
        %v1483 = vpack.c.bf16 %v1475, %v1475
        %v1484 = vpack.c.bf16 %v1476, %v1476
        %v1485 = vpack.c.bf16 %v1477, %v1477
        %v1486 = vpack.c.bf16 %v1478, %v1478
        %v1487 = vpack.c.bf16 %v1479, %v1479
        %v1488 = vpack.c.bf16 %v1480, %v1480
        %v1489 = vpack.c.bf16 %v1481, %v1481
        %v1491 = vsel %vm1393, %v904, 0
        %v1494 = vsel %vm1393, %v1482, 0
        %1496 = vmatprep.subr.bf16.mxu0 0
        %1497 = vmatpush1.bf16.xpose.msra.mxu0 %v1494
        %1498 = vmatprep.subr.bf16.mxu0 0
        %1499 = vmatpush1.bf16.xpose.msra.mxu0 0
        %1500 = vmatprep.subr.bf16.mxu0 0
        %1501 = vmatpush1.bf16.xpose.msra.mxu0 0
        %1502 = vmatprep.subr.bf16.mxu0 0
        %1503 = vmatpush1.bf16.xpose.msra.mxu0 0
        %1504 = vmatprep.subr.bf16.mxu0 0
        %1505 = vmatpush1.bf16.xpose.msra.mxu0 0
        %1506 = vmatprep.subr.bf16.mxu0 0
        %1507 = vmatpush1.bf16.xpose.msra.mxu0 0
        %1508 = vmatprep.subr.bf16.mxu0 0
        %1509 = vmatpush1.bf16.xpose.msra.mxu0 0
        %1510 = vmatprep.subr.bf16.mxu0 0
        %1511 = vmatpush1.bf16.xpose.msra.mxu0 0
        %1512 = vmatprep.subr.bf16.mxu0 0
        %1513 = vmatpush1.bf16.xpose.msra.mxu0 0
        %1514 = vmatprep.subr.bf16.mxu0 0
        %1515 = vmatpush1.bf16.xpose.msra.mxu0 0
        %1516 = vmatprep.subr.bf16.mxu0 0
        %1517 = vmatpush1.bf16.xpose.msra.mxu0 0
        %1518 = vmatprep.subr.bf16.mxu0 0
        %1519 = vmatpush1.bf16.xpose.msra.mxu0 0
        %1520 = vmatprep.subr.bf16.mxu0 0
        %1521 = vmatpush1.bf16.xpose.msra.mxu0 0
        %1522 = vmatprep.subr.bf16.mxu0 0
        %1523 = vmatpush1.bf16.xpose.msra.mxu0 0
        %1524 = vmatprep.subr.bf16.mxu0 0
        %1525 = vmatpush1.bf16.xpose.msra.mxu0 0
        %1526 = vmatprep.subr.bf16.mxu0 0
        %1527 = vmatpush1.bf16.xpose.msra.mxu0 0
        %1528 = vmatprep.mubr.bf16.mxu0 0
        %1529 = vmatmul.mubr.bf16.gmra.mrb[0].mxu0 %v1491
        %v1530 = vpop.f32.mrb[0].mxu0
        %v1531 = vadd.f32 0.0, %v1530
        %v1532 = vpop.f32.mrb[0].mxu0
        %v1533 = vpop.f32.mrb[0].mxu0
        %v1534 = vadd.f32 0.0, %v1533
        %v1535 = vpop.f32.mrb[0].mxu0
        %1536 = vdwg.mxu0
        %v1538 = vsel %vm1393, %v905, 0
        %v1541 = vsel %vm1393, %v1483, 0
        %1543 = vmatprep.subr.bf16.mxu0 0
        %1544 = vmatpush1.bf16.xpose.msra.mxu0 %v1541
        %1545 = vmatprep.subr.bf16.mxu0 0
        %1546 = vmatpush1.bf16.xpose.msra.mxu0 0
        %1547 = vmatprep.subr.bf16.mxu0 0
        %1548 = vmatpush1.bf16.xpose.msra.mxu0 0
        %1549 = vmatprep.subr.bf16.mxu0 0
        %1550 = vmatpush1.bf16.xpose.msra.mxu0 0
        %1551 = vmatprep.subr.bf16.mxu0 0
        %1552 = vmatpush1.bf16.xpose.msra.mxu0 0
        %1553 = vmatprep.subr.bf16.mxu0 0
        %1554 = vmatpush1.bf16.xpose.msra.mxu0 0
        %1555 = vmatprep.subr.bf16.mxu0 0
        %1556 = vmatpush1.bf16.xpose.msra.mxu0 0
        %1557 = vmatprep.subr.bf16.mxu0 0
        %1558 = vmatpush1.bf16.xpose.msra.mxu0 0
        %1559 = vmatprep.subr.bf16.mxu0 0
        %1560 = vmatpush1.bf16.xpose.msra.mxu0 0
        %1561 = vmatprep.subr.bf16.mxu0 0
        %1562 = vmatpush1.bf16.xpose.msra.mxu0 0
        %1563 = vmatprep.subr.bf16.mxu0 0
        %1564 = vmatpush1.bf16.xpose.msra.mxu0 0
        %1565 = vmatprep.subr.bf16.mxu0 0
        %1566 = vmatpush1.bf16.xpose.msra.mxu0 0
        %1567 = vmatprep.subr.bf16.mxu0 0
        %1568 = vmatpush1.bf16.xpose.msra.mxu0 0
        %1569 = vmatprep.subr.bf16.mxu0 0
        %1570 = vmatpush1.bf16.xpose.msra.mxu0 0
        %1571 = vmatprep.subr.bf16.mxu0 0
        %1572 = vmatpush1.bf16.xpose.msra.mxu0 0
        %1573 = vmatprep.subr.bf16.mxu0 0
        %1574 = vmatpush1.bf16.xpose.msra.mxu0 0
        %1575 = vmatprep.mubr.bf16.mxu0 0
        %1576 = vmatmul.mubr.bf16.gmra.mrb[0].mxu0 %v1538
        %v1577 = vpop.f32.mrb[0].mxu0
        %v1578 = vadd.f32 0.0, %v1577
        %v1579 = vpop.f32.mrb[0].mxu0
        %v1580 = vpop.f32.mrb[0].mxu0
        %v1581 = vadd.f32 0.0, %v1580
        %v1582 = vpop.f32.mrb[0].mxu0
        %1583 = vdwg.mxu0
        %v1585 = vsel %vm1393, %v906, 0
        %v1588 = vsel %vm1393, %v1484, 0
        %1590 = vmatprep.subr.bf16.mxu0 0
        %1591 = vmatpush1.bf16.xpose.msra.mxu0 %v1588
        %1592 = vmatprep.subr.bf16.mxu0 0
        %1593 = vmatpush1.bf16.xpose.msra.mxu0 0
        %1594 = vmatprep.subr.bf16.mxu0 0
        %1595 = vmatpush1.bf16.xpose.msra.mxu0 0
        %1596 = vmatprep.subr.bf16.mxu0 0
        %1597 = vmatpush1.bf16.xpose.msra.mxu0 0
        %1598 = vmatprep.subr.bf16.mxu0 0
        %1599 = vmatpush1.bf16.xpose.msra.mxu0 0
        %1600 = vmatprep.subr.bf16.mxu0 0
        %1601 = vmatpush1.bf16.xpose.msra.mxu0 0
        %1602 = vmatprep.subr.bf16.mxu0 0
        %1603 = vmatpush1.bf16.xpose.msra.mxu0 0
        %1604 = vmatprep.subr.bf16.mxu0 0
        %1605 = vmatpush1.bf16.xpose.msra.mxu0 0
        %1606 = vmatprep.subr.bf16.mxu0 0
        %1607 = vmatpush1.bf16.xpose.msra.mxu0 0
        %1608 = vmatprep.subr.bf16.mxu0 0
        %1609 = vmatpush1.bf16.xpose.msra.mxu0 0
        %1610 = vmatprep.subr.bf16.mxu0 0
        %1611 = vmatpush1.bf16.xpose.msra.mxu0 0
        %1612 = vmatprep.subr.bf16.mxu0 0
        %1613 = vmatpush1.bf16.xpose.msra.mxu0 0
        %1614 = vmatprep.subr.bf16.mxu0 0
        %1615 = vmatpush1.bf16.xpose.msra.mxu0 0
        %1616 = vmatprep.subr.bf16.mxu0 0
        %1617 = vmatpush1.bf16.xpose.msra.mxu0 0
        %1618 = vmatprep.subr.bf16.mxu0 0
        %1619 = vmatpush1.bf16.xpose.msra.mxu0 0
        %1620 = vmatprep.subr.bf16.mxu0 0
        %1621 = vmatpush1.bf16.xpose.msra.mxu0 0
        %1622 = vmatprep.mubr.bf16.mxu0 0
        %1623 = vmatmul.mubr.bf16.gmra.mrb[0].mxu0 %v1585
        %v1624 = vpop.f32.mrb[0].mxu0
        %v1625 = vadd.f32 0.0, %v1624
        %v1626 = vpop.f32.mrb[0].mxu0
        %v1627 = vpop.f32.mrb[0].mxu0
        %v1628 = vadd.f32 0.0, %v1627
        %v1629 = vpop.f32.mrb[0].mxu0
        %1630 = vdwg.mxu0
        %v1632 = vsel %vm1393, %v907, 0
        %v1635 = vsel %vm1393, %v1485, 0
        %1637 = vmatprep.subr.bf16.mxu0 0
        %1638 = vmatpush1.bf16.xpose.msra.mxu0 %v1635
        %1639 = vmatprep.subr.bf16.mxu0 0
        %1640 = vmatpush1.bf16.xpose.msra.mxu0 0
        %1641 = vmatprep.subr.bf16.mxu0 0
        %1642 = vmatpush1.bf16.xpose.msra.mxu0 0
        %1643 = vmatprep.subr.bf16.mxu0 0
        %1644 = vmatpush1.bf16.xpose.msra.mxu0 0
        %1645 = vmatprep.subr.bf16.mxu0 0
        %1646 = vmatpush1.bf16.xpose.msra.mxu0 0
        %1647 = vmatprep.subr.bf16.mxu0 0
        %1648 = vmatpush1.bf16.xpose.msra.mxu0 0
        %1649 = vmatprep.subr.bf16.mxu0 0
        %1650 = vmatpush1.bf16.xpose.msra.mxu0 0
        %1651 = vmatprep.subr.bf16.mxu0 0
        %1652 = vmatpush1.bf16.xpose.msra.mxu0 0
        %1653 = vmatprep.subr.bf16.mxu0 0
        %1654 = vmatpush1.bf16.xpose.msra.mxu0 0
        %1655 = vmatprep.subr.bf16.mxu0 0
        %1656 = vmatpush1.bf16.xpose.msra.mxu0 0
        %1657 = vmatprep.subr.bf16.mxu0 0
        %1658 = vmatpush1.bf16.xpose.msra.mxu0 0
        %1659 = vmatprep.subr.bf16.mxu0 0
        %1660 = vmatpush1.bf16.xpose.msra.mxu0 0
        %1661 = vmatprep.subr.bf16.mxu0 0
        %1662 = vmatpush1.bf16.xpose.msra.mxu0 0
        %1663 = vmatprep.subr.bf16.mxu0 0
        %1664 = vmatpush1.bf16.xpose.msra.mxu0 0
        %1665 = vmatprep.subr.bf16.mxu0 0
        %1666 = vmatpush1.bf16.xpose.msra.mxu0 0
        %1667 = vmatprep.subr.bf16.mxu0 0
        %1668 = vmatpush1.bf16.xpose.msra.mxu0 0
        %1669 = vmatprep.mubr.bf16.mxu0 0
        %1670 = vmatmul.mubr.bf16.gmra.mrb[0].mxu0 %v1632
        %v1671 = vpop.f32.mrb[0].mxu0
        %v1672 = vadd.f32 0.0, %v1671
        %v1673 = vpop.f32.mrb[0].mxu0
        %v1674 = vpop.f32.mrb[0].mxu0
        %v1675 = vadd.f32 0.0, %v1674
        %v1676 = vpop.f32.mrb[0].mxu0
        %1677 = vdwg.mxu0
        %v1679 = vsel %vm1393, %v908, 0
        %v1682 = vsel %vm1393, %v1486, 0
        %1684 = vmatprep.subr.bf16.mxu0 0
        %1685 = vmatpush1.bf16.xpose.msra.mxu0 %v1682
        %1686 = vmatprep.subr.bf16.mxu0 0
        %1687 = vmatpush1.bf16.xpose.msra.mxu0 0
        %1688 = vmatprep.subr.bf16.mxu0 0
        %1689 = vmatpush1.bf16.xpose.msra.mxu0 0
        %1690 = vmatprep.subr.bf16.mxu0 0
        %1691 = vmatpush1.bf16.xpose.msra.mxu0 0
        %1692 = vmatprep.subr.bf16.mxu0 0
        %1693 = vmatpush1.bf16.xpose.msra.mxu0 0
        %1694 = vmatprep.subr.bf16.mxu0 0
        %1695 = vmatpush1.bf16.xpose.msra.mxu0 0
        %1696 = vmatprep.subr.bf16.mxu0 0
        %1697 = vmatpush1.bf16.xpose.msra.mxu0 0
        %1698 = vmatprep.subr.bf16.mxu0 0
        %1699 = vmatpush1.bf16.xpose.msra.mxu0 0
        %1700 = vmatprep.subr.bf16.mxu0 0
        %1701 = vmatpush1.bf16.xpose.msra.mxu0 0
        %1702 = vmatprep.subr.bf16.mxu0 0
        %1703 = vmatpush1.bf16.xpose.msra.mxu0 0
        %1704 = vmatprep.subr.bf16.mxu0 0
        %1705 = vmatpush1.bf16.xpose.msra.mxu0 0
        %1706 = vmatprep.subr.bf16.mxu0 0
        %1707 = vmatpush1.bf16.xpose.msra.mxu0 0
        %1708 = vmatprep.subr.bf16.mxu0 0
        %1709 = vmatpush1.bf16.xpose.msra.mxu0 0
        %1710 = vmatprep.subr.bf16.mxu0 0
        %1711 = vmatpush1.bf16.xpose.msra.mxu0 0
        %1712 = vmatprep.subr.bf16.mxu0 0
        %1713 = vmatpush1.bf16.xpose.msra.mxu0 0
        %1714 = vmatprep.subr.bf16.mxu0 0
        %1715 = vmatpush1.bf16.xpose.msra.mxu0 0
        %1716 = vmatprep.mubr.bf16.mxu0 0
        %1717 = vmatmul.mubr.bf16.gmra.mrb[0].mxu0 %v1679
        %v1718 = vpop.f32.mrb[0].mxu0
        %v1719 = vadd.f32 0.0, %v1718
        %v1720 = vpop.f32.mrb[0].mxu0
        %v1721 = vpop.f32.mrb[0].mxu0
        %v1722 = vadd.f32 0.0, %v1721
        %v1723 = vpop.f32.mrb[0].mxu0
        %1724 = vdwg.mxu0
        %v1726 = vsel %vm1393, %v909, 0
        %v1729 = vsel %vm1393, %v1487, 0
        %1731 = vmatprep.subr.bf16.mxu0 0
        %1732 = vmatpush1.bf16.xpose.msra.mxu0 %v1729
        %1733 = vmatprep.subr.bf16.mxu0 0
        %1734 = vmatpush1.bf16.xpose.msra.mxu0 0
        %1735 = vmatprep.subr.bf16.mxu0 0
        %1736 = vmatpush1.bf16.xpose.msra.mxu0 0
        %1737 = vmatprep.subr.bf16.mxu0 0
        %1738 = vmatpush1.bf16.xpose.msra.mxu0 0
        %1739 = vmatprep.subr.bf16.mxu0 0
        %1740 = vmatpush1.bf16.xpose.msra.mxu0 0
        %1741 = vmatprep.subr.bf16.mxu0 0
        %1742 = vmatpush1.bf16.xpose.msra.mxu0 0
        %1743 = vmatprep.subr.bf16.mxu0 0
        %1744 = vmatpush1.bf16.xpose.msra.mxu0 0
        %1745 = vmatprep.subr.bf16.mxu0 0
        %1746 = vmatpush1.bf16.xpose.msra.mxu0 0
        %1747 = vmatprep.subr.bf16.mxu0 0
        %1748 = vmatpush1.bf16.xpose.msra.mxu0 0
        %1749 = vmatprep.subr.bf16.mxu0 0
        %1750 = vmatpush1.bf16.xpose.msra.mxu0 0
        %1751 = vmatprep.subr.bf16.mxu0 0
        %1752 = vmatpush1.bf16.xpose.msra.mxu0 0
        %1753 = vmatprep.subr.bf16.mxu0 0
        %1754 = vmatpush1.bf16.xpose.msra.mxu0 0
        %1755 = vmatprep.subr.bf16.mxu0 0
        %1756 = vmatpush1.bf16.xpose.msra.mxu0 0
        %1757 = vmatprep.subr.bf16.mxu0 0
        %1758 = vmatpush1.bf16.xpose.msra.mxu0 0
        %1759 = vmatprep.subr.bf16.mxu0 0
        %1760 = vmatpush1.bf16.xpose.msra.mxu0 0
        %1761 = vmatprep.subr.bf16.mxu0 0
        %1762 = vmatpush1.bf16.xpose.msra.mxu0 0
        %1763 = vmatprep.mubr.bf16.mxu0 0
        %1764 = vmatmul.mubr.bf16.gmra.mrb[0].mxu0 %v1726
        %v1765 = vpop.f32.mrb[0].mxu0
        %v1766 = vadd.f32 0.0, %v1765
        %v1767 = vpop.f32.mrb[0].mxu0
        %v1768 = vpop.f32.mrb[0].mxu0
        %v1769 = vadd.f32 0.0, %v1768
        %v1770 = vpop.f32.mrb[0].mxu0
        %1771 = vdwg.mxu0
        %v1773 = vsel %vm1393, %v910, 0
        %v1776 = vsel %vm1393, %v1488, 0
        %1778 = vmatprep.subr.bf16.mxu0 0
        %1779 = vmatpush1.bf16.xpose.msra.mxu0 %v1776
        %1780 = vmatprep.subr.bf16.mxu0 0
        %1781 = vmatpush1.bf16.xpose.msra.mxu0 0
        %1782 = vmatprep.subr.bf16.mxu0 0
        %1783 = vmatpush1.bf16.xpose.msra.mxu0 0
        %1784 = vmatprep.subr.bf16.mxu0 0
        %1785 = vmatpush1.bf16.xpose.msra.mxu0 0
        %1786 = vmatprep.subr.bf16.mxu0 0
        %1787 = vmatpush1.bf16.xpose.msra.mxu0 0
        %1788 = vmatprep.subr.bf16.mxu0 0
        %1789 = vmatpush1.bf16.xpose.msra.mxu0 0
        %1790 = vmatprep.subr.bf16.mxu0 0
        %1791 = vmatpush1.bf16.xpose.msra.mxu0 0
        %1792 = vmatprep.subr.bf16.mxu0 0
        %1793 = vmatpush1.bf16.xpose.msra.mxu0 0
        %1794 = vmatprep.subr.bf16.mxu0 0
        %1795 = vmatpush1.bf16.xpose.msra.mxu0 0
        %1796 = vmatprep.subr.bf16.mxu0 0
        %1797 = vmatpush1.bf16.xpose.msra.mxu0 0
        %1798 = vmatprep.subr.bf16.mxu0 0
        %1799 = vmatpush1.bf16.xpose.msra.mxu0 0
        %1800 = vmatprep.subr.bf16.mxu0 0
        %1801 = vmatpush1.bf16.xpose.msra.mxu0 0
        %1802 = vmatprep.subr.bf16.mxu0 0
        %1803 = vmatpush1.bf16.xpose.msra.mxu0 0
        %1804 = vmatprep.subr.bf16.mxu0 0
        %1805 = vmatpush1.bf16.xpose.msra.mxu0 0
        %1806 = vmatprep.subr.bf16.mxu0 0
        %1807 = vmatpush1.bf16.xpose.msra.mxu0 0
        %1808 = vmatprep.subr.bf16.mxu0 0
        %1809 = vmatpush1.bf16.xpose.msra.mxu0 0
        %1810 = vmatprep.mubr.bf16.mxu0 0
        %1811 = vmatmul.mubr.bf16.gmra.mrb[0].mxu0 %v1773
        %v1812 = vpop.f32.mrb[0].mxu0
        %v1813 = vadd.f32 0.0, %v1812
        %v1814 = vpop.f32.mrb[0].mxu0
        %v1815 = vpop.f32.mrb[0].mxu0
        %v1816 = vadd.f32 0.0, %v1815
        %v1817 = vpop.f32.mrb[0].mxu0
        %1818 = vdwg.mxu0
        %v1820 = vsel %vm1393, %v911, 0
        %v1823 = vsel %vm1393, %v1489, 0
        %1825 = vmatprep.subr.bf16.mxu0 0
        %1826 = vmatpush1.bf16.xpose.msra.mxu0 %v1823
        %1827 = vmatprep.subr.bf16.mxu0 0
        %1828 = vmatpush1.bf16.xpose.msra.mxu0 0
        %1829 = vmatprep.subr.bf16.mxu0 0
        %1830 = vmatpush1.bf16.xpose.msra.mxu0 0
        %1831 = vmatprep.subr.bf16.mxu0 0
        %1832 = vmatpush1.bf16.xpose.msra.mxu0 0
        %1833 = vmatprep.subr.bf16.mxu0 0
        %1834 = vmatpush1.bf16.xpose.msra.mxu0 0
        %1835 = vmatprep.subr.bf16.mxu0 0
        %1836 = vmatpush1.bf16.xpose.msra.mxu0 0
        %1837 = vmatprep.subr.bf16.mxu0 0
        %1838 = vmatpush1.bf16.xpose.msra.mxu0 0
        %1839 = vmatprep.subr.bf16.mxu0 0
        %1840 = vmatpush1.bf16.xpose.msra.mxu0 0
        %1841 = vmatprep.subr.bf16.mxu0 0
        %1842 = vmatpush1.bf16.xpose.msra.mxu0 0
        %1843 = vmatprep.subr.bf16.mxu0 0
        %1844 = vmatpush1.bf16.xpose.msra.mxu0 0
        %1845 = vmatprep.subr.bf16.mxu0 0
        %1846 = vmatpush1.bf16.xpose.msra.mxu0 0
        %1847 = vmatprep.subr.bf16.mxu0 0
        %1848 = vmatpush1.bf16.xpose.msra.mxu0 0
        %1849 = vmatprep.subr.bf16.mxu0 0
        %1850 = vmatpush1.bf16.xpose.msra.mxu0 0
        %1851 = vmatprep.subr.bf16.mxu0 0
        %1852 = vmatpush1.bf16.xpose.msra.mxu0 0
        %1853 = vmatprep.subr.bf16.mxu0 0
        %1854 = vmatpush1.bf16.xpose.msra.mxu0 0
        %1855 = vmatprep.subr.bf16.mxu0 0
        %1856 = vmatpush1.bf16.xpose.msra.mxu0 0
        %1857 = vmatprep.mubr.bf16.mxu0 0
        %1858 = vmatmul.mubr.bf16.gmra.mrb[0].mxu0 %v1820
        %v1859 = vpop.f32.mrb[0].mxu0
        %v1860 = vadd.f32 0.0, %v1859
        %v1861 = vpop.f32.mrb[0].mxu0
        %v1862 = vpop.f32.mrb[0].mxu0
        %v1863 = vadd.f32 0.0, %v1862
        %v1864 = vpop.f32.mrb[0].mxu0
        %1865 = vdwg.mxu0
        %v1866 = vpack.c.bf16 %v1534, %v1531
        %v1867 = vpack.c.bf16 %v1581, %v1578
        %v1868 = vpack.c.bf16 %v1628, %v1625
        %v1869 = vpack.c.bf16 %v1675, %v1672
        %v1870 = vpack.c.bf16 %v1722, %v1719
        %v1871 = vpack.c.bf16 %v1769, %v1766
        %v1872 = vpack.c.bf16 %v1816, %v1813
        %v1873 = vpack.c.bf16 %v1863, %v1860
        %1874 = vxpose.xlu0.c.b16.start [1/8] %v1866, 128
        %1875 = vxpose.xlu0.c.b16.cont [2/8] %v1867, 128
        %1876 = vxpose.xlu0.c.b16.cont [3/8] %v1868, 128
        %1877 = vxpose.xlu0.c.b16.cont [4/8] %v1869, 128
        %1878 = vxpose.xlu0.c.b16.cont [5/8] %v1870, 128
        %1879 = vxpose.xlu0.c.b16.cont [6/8] %v1871, 128
        %1880 = vxpose.xlu0.c.b16.cont [7/8] %v1872, 128
        %1881 = vxpose.xlu0.c.b16.end [8/8] %v1873, 128
        %v1882 = vpop.trf.xlu0
        %v1883 = vpop.trf.xlu0
        %v1884 = vpop.trf.xlu0
        %v1885 = vpop.trf.xlu0
        %v1886 = vpop.trf.xlu0
        %v1887 = vpop.trf.xlu0
        %v1888 = vpop.trf.xlu0
        %v1889 = vpop.trf.xlu0
        %v1891 = vlaneseq
        %v1892 = vshrl.u32 %v1891, 7
        %v1893 = vsub.s32 0, %v1892
        %v1894 = vrot.slane %v533, %v1893
        %v1912 = vunpack.c.l.b16 %v517
        %v1913 = vunpack.c.l.b16 %v518
        %v1914 = vunpack.c.l.b16 %v519
        %v1915 = vunpack.c.l.b16 %v520
        %v1916 = vunpack.c.l.b16 %v521
        %v1917 = vunpack.c.l.b16 %v522
        %v1918 = vunpack.c.l.b16 %v523
        %v1919 = vunpack.c.l.b16 %v524
        %v1920 = vunpack.c.l.b16 %v525
        %v1921 = vunpack.c.l.b16 %v526
        %v1922 = vunpack.c.l.b16 %v527
        %v1923 = vunpack.c.l.b16 %v528
        %v1924 = vunpack.c.l.b16 %v529
        %v1925 = vunpack.c.l.b16 %v530
        %v1926 = vunpack.c.l.b16 %v531
        %v1927 = vunpack.c.l.b16 %v532
        %v1928 = vpack.c.b16 %v1913, %v1912
        %v1929 = vpack.c.b16 %v1915, %v1914
        %v1930 = vpack.c.b16 %v1917, %v1916
        %v1931 = vpack.c.b16 %v1919, %v1918
        %v1932 = vpack.c.b16 %v1921, %v1920
        %v1933 = vpack.c.b16 %v1923, %v1922
        %v1934 = vpack.c.b16 %v1925, %v1924
        %v1935 = vpack.c.b16 %v1927, %v1926
        %1944 = vmatprep.subr.bf16.mxu0 0
        %1945 = vmatpush1.bf16.msra.mxu0 %v1928
        %1946 = vmatprep.subr.bf16.mxu0 0
        %1947 = vmatpush1.bf16.msra.mxu0 %v1929
        %1948 = vmatprep.subr.bf16.mxu0 0
        %1949 = vmatpush1.bf16.msra.mxu0 %v1930
        %1950 = vmatprep.subr.bf16.mxu0 0
        %1951 = vmatpush1.bf16.msra.mxu0 %v1931
        %1952 = vmatprep.subr.bf16.mxu0 0
        %1953 = vmatpush1.bf16.msra.mxu0 %v1932
        %1954 = vmatprep.subr.bf16.mxu0 0
        %1955 = vmatpush1.bf16.msra.mxu0 %v1933
        %1956 = vmatprep.subr.bf16.mxu0 0
        %1957 = vmatpush1.bf16.msra.mxu0 %v1934
        %1958 = vmatprep.subr.bf16.mxu0 0
        %1959 = vmatpush1.bf16.msra.mxu0 %v1935
        %1960 = vmatprep.subr.bf16.mxu0 0
        %1961 = vmatpush1.bf16.msra.mxu0 0
        %1962 = vmatprep.subr.bf16.mxu0 0
        %1963 = vmatpush1.bf16.msra.mxu0 0
        %1964 = vmatprep.subr.bf16.mxu0 0
        %1965 = vmatpush1.bf16.msra.mxu0 0
        %1966 = vmatprep.subr.bf16.mxu0 0
        %1967 = vmatpush1.bf16.msra.mxu0 0
        %1968 = vmatprep.subr.bf16.mxu0 0
        %1969 = vmatpush1.bf16.msra.mxu0 0
        %1970 = vmatprep.subr.bf16.mxu0 0
        %1971 = vmatpush1.bf16.msra.mxu0 0
        %1972 = vmatprep.subr.bf16.mxu0 0
        %1973 = vmatpush1.bf16.msra.mxu0 0
        %1974 = vmatprep.subr.bf16.mxu0 0
        %1975 = vmatpush1.bf16.msra.mxu0 0
        %1976 = vmatprep.mubr.bf16.mxu0 0
        %1977 = vmatmul.mubr.bf16.gmra.mrb[0].mxu0 %v1882
        %v1978 = vpop.f32.mrb[0].mxu0
        %v1979 = vadd.f32 %v1894, %v1978
        %v1980 = vpop.f32.mrb[0].mxu0
        %v1981 = vpop.f32.mrb[0].mxu0
        %v1982 = vpop.f32.mrb[0].mxu0
        %1983 = vdwg.mxu0
        %v1984 = vadd.f32 %v483, %v1979
        %1985 = vadd.xlane.f32.xlu0 %v1984
        %v1986 = vpop.xlane.xlu0 %1985
        %v1987 = vrcp.pop 128.0
        %v1988 = vmul.f32 %v1986, %v1987
        %v1989 = vsub.f32 %v1984, %v1988
        %v1990 = vmul.f32 %v1989, %v1989
        %1991 = vadd.xlane.f32.xlu0 %v1990
        %v1992 = vpop.xlane.xlu0 %1991
        %v1993 = vmul.f32 %v1992, %v1987
        %v1994 = vadd.f32 %v1993, 1e-05
        %v1995 = vrsqrt.pop %v1994
        %v1996 = vmul.f32 %v1989, %v1995
        %v1998 = vlaneseq
        %v1999 = vshrl.u32 %v1998, 7
        %v2000 = vsub.s32 0, %v1999
        %v2001 = vrot.slane %v534, %v2000
        %v2003 = vmul.f32 %v1996, %v2001
        %v2005 = vlaneseq
        %v2006 = vshrl.u32 %v2005, 7
        %v2007 = vsub.s32 0, %v2006
        %v2008 = vrot.slane %v535, %v2007
        %v2010 = vadd.f32 %v2003, %v2008
        %v2011 = vpack.c.bf16 %v2010, %v2010
        %v2013 = vlaneseq
        %v2014 = vshrl.u32 %v2013, 7
        %v2015 = vsub.s32 0, %v2014
        %v2016 = vrot.slane %v568, %v2015
        %v2017 = vlaneseq
        %v2018 = vshrl.u32 %v2017, 7
        %v2019 = vsub.s32 1, %v2018
        %v2020 = vrot.slane %v568, %v2019
        %v2021 = vlaneseq
        %v2022 = vshrl.u32 %v2021, 7
        %v2023 = vsub.s32 2, %v2022
        %v2024 = vrot.slane %v568, %v2023
        %v2025 = vlaneseq
        %v2026 = vshrl.u32 %v2025, 7
        %v2027 = vsub.s32 3, %v2026
        %v2028 = vrot.slane %v568, %v2027
        %v2065 = vunpack.c.l.b16 %v536
        %v2066 = vunpack.c.h.b16 %v536
        %v2067 = vunpack.c.l.b16 %v537
        %v2068 = vunpack.c.h.b16 %v537
        %v2069 = vunpack.c.l.b16 %v538
        %v2070 = vunpack.c.h.b16 %v538
        %v2071 = vunpack.c.l.b16 %v539
        %v2072 = vunpack.c.h.b16 %v539
        %v2073 = vunpack.c.l.b16 %v540
        %v2074 = vunpack.c.h.b16 %v540
        %v2075 = vunpack.c.l.b16 %v541
        %v2076 = vunpack.c.h.b16 %v541
        %v2077 = vunpack.c.l.b16 %v542
        %v2078 = vunpack.c.h.b16 %v542
        %v2079 = vunpack.c.l.b16 %v543
        %v2080 = vunpack.c.h.b16 %v543
        %v2081 = vunpack.c.l.b16 %v544
        %v2082 = vunpack.c.h.b16 %v544
        %v2083 = vunpack.c.l.b16 %v545
        %v2084 = vunpack.c.h.b16 %v545
        %v2085 = vunpack.c.l.b16 %v546
        %v2086 = vunpack.c.h.b16 %v546
        %v2087 = vunpack.c.l.b16 %v547
        %v2088 = vunpack.c.h.b16 %v547
        %v2089 = vunpack.c.l.b16 %v548
        %v2090 = vunpack.c.h.b16 %v548
        %v2091 = vunpack.c.l.b16 %v549
        %v2092 = vunpack.c.h.b16 %v549
        %v2093 = vunpack.c.l.b16 %v550
        %v2094 = vunpack.c.h.b16 %v550
        %v2095 = vunpack.c.l.b16 %v551
        %v2096 = vunpack.c.h.b16 %v551
        %v2097 = vunpack.c.l.b16 %v552
        %v2098 = vunpack.c.h.b16 %v552
        %v2099 = vunpack.c.l.b16 %v553
        %v2100 = vunpack.c.h.b16 %v553
        %v2101 = vunpack.c.l.b16 %v554
        %v2102 = vunpack.c.h.b16 %v554
        %v2103 = vunpack.c.l.b16 %v555
        %v2104 = vunpack.c.h.b16 %v555
        %v2105 = vunpack.c.l.b16 %v556
        %v2106 = vunpack.c.h.b16 %v556
        %v2107 = vunpack.c.l.b16 %v557
        %v2108 = vunpack.c.h.b16 %v557
        %v2109 = vunpack.c.l.b16 %v558
        %v2110 = vunpack.c.h.b16 %v558
        %v2111 = vunpack.c.l.b16 %v559
        %v2112 = vunpack.c.h.b16 %v559
        %v2113 = vunpack.c.l.b16 %v560
        %v2114 = vunpack.c.h.b16 %v560
        %v2115 = vunpack.c.l.b16 %v561
        %v2116 = vunpack.c.h.b16 %v561
        %v2117 = vunpack.c.l.b16 %v562
        %v2118 = vunpack.c.h.b16 %v562
        %v2119 = vunpack.c.l.b16 %v563
        %v2120 = vunpack.c.h.b16 %v563
        %v2121 = vunpack.c.l.b16 %v564
        %v2122 = vunpack.c.h.b16 %v564
        %v2123 = vunpack.c.l.b16 %v565
        %v2124 = vunpack.c.h.b16 %v565
        %v2125 = vunpack.c.l.b16 %v566
        %v2126 = vunpack.c.h.b16 %v566
        %v2127 = vunpack.c.l.b16 %v567
        %v2128 = vunpack.c.h.b16 %v567
        %v2129 = vpack.c.b16 %v2069, %v2065
        %v2130 = vpack.c.b16 %v2070, %v2066
        %v2131 = vpack.c.b16 %v2071, %v2067
        %v2132 = vpack.c.b16 %v2072, %v2068
        %v2133 = vpack.c.b16 %v2077, %v2073
        %v2134 = vpack.c.b16 %v2078, %v2074
        %v2135 = vpack.c.b16 %v2079, %v2075
        %v2136 = vpack.c.b16 %v2080, %v2076
        %v2137 = vpack.c.b16 %v2085, %v2081
        %v2138 = vpack.c.b16 %v2086, %v2082
        %v2139 = vpack.c.b16 %v2087, %v2083
        %v2140 = vpack.c.b16 %v2088, %v2084
        %v2141 = vpack.c.b16 %v2093, %v2089
        %v2142 = vpack.c.b16 %v2094, %v2090
        %v2143 = vpack.c.b16 %v2095, %v2091
        %v2144 = vpack.c.b16 %v2096, %v2092
        %v2145 = vpack.c.b16 %v2101, %v2097
        %v2146 = vpack.c.b16 %v2102, %v2098
        %v2147 = vpack.c.b16 %v2103, %v2099
        %v2148 = vpack.c.b16 %v2104, %v2100
        %v2149 = vpack.c.b16 %v2109, %v2105
        %v2150 = vpack.c.b16 %v2110, %v2106
        %v2151 = vpack.c.b16 %v2111, %v2107
        %v2152 = vpack.c.b16 %v2112, %v2108
        %v2153 = vpack.c.b16 %v2117, %v2113
        %v2154 = vpack.c.b16 %v2118, %v2114
        %v2155 = vpack.c.b16 %v2119, %v2115
        %v2156 = vpack.c.b16 %v2120, %v2116
        %v2157 = vpack.c.b16 %v2125, %v2121
        %v2158 = vpack.c.b16 %v2126, %v2122
        %v2159 = vpack.c.b16 %v2127, %v2123
        %v2160 = vpack.c.b16 %v2128, %v2124
        %2193 = vmatprep.subr.bf16.mxu0 %v2130
        %2194 = vmatpush1.bf16.msra.mxu0 %v2129
        %2195 = vmatprep.subr.bf16.mxu0 %v2134
        %2196 = vmatpush1.bf16.msra.mxu0 %v2133
        %2197 = vmatprep.subr.bf16.mxu0 %v2138
        %2198 = vmatpush1.bf16.msra.mxu0 %v2137
        %2199 = vmatprep.subr.bf16.mxu0 %v2142
        %2200 = vmatpush1.bf16.msra.mxu0 %v2141
        %2201 = vmatprep.subr.bf16.mxu0 %v2146
        %2202 = vmatpush1.bf16.msra.mxu0 %v2145
        %2203 = vmatprep.subr.bf16.mxu0 %v2150
        %2204 = vmatpush1.bf16.msra.mxu0 %v2149
        %2205 = vmatprep.subr.bf16.mxu0 %v2154
        %2206 = vmatpush1.bf16.msra.mxu0 %v2153
        %2207 = vmatprep.subr.bf16.mxu0 %v2158
        %2208 = vmatpush1.bf16.msra.mxu0 %v2157
        %2209 = vmatprep.subr.bf16.mxu0 0
        %2210 = vmatpush1.bf16.msra.mxu0 0
        %2211 = vmatprep.subr.bf16.mxu0 0
        %2212 = vmatpush1.bf16.msra.mxu0 0
        %2213 = vmatprep.subr.bf16.mxu0 0
        %2214 = vmatpush1.bf16.msra.mxu0 0
        %2215 = vmatprep.subr.bf16.mxu0 0
        %2216 = vmatpush1.bf16.msra.mxu0 0
        %2217 = vmatprep.subr.bf16.mxu0 0
        %2218 = vmatpush1.bf16.msra.mxu0 0
        %2219 = vmatprep.subr.bf16.mxu0 0
        %2220 = vmatpush1.bf16.msra.mxu0 0
        %2221 = vmatprep.subr.bf16.mxu0 0
        %2222 = vmatpush1.bf16.msra.mxu0 0
        %2223 = vmatprep.subr.bf16.mxu0 0
        %2224 = vmatpush1.bf16.msra.mxu0 0
        %2225 = vmatprep.mubr.bf16.mxu0 0
        %2226 = vmatmul.mubr.bf16.gmra.mrb[0].mxu0 %v2011
        %v2227 = vpop.f32.mrb[0].mxu0
        %v2228 = vadd.f32 %v2016, %v2227
        %v2229 = vpop.f32.mrb[0].mxu0
        %v2230 = vadd.f32 %v2020, %v2229
        %v2231 = vpop.f32.mrb[0].mxu0
        %v2232 = vpop.f32.mrb[0].mxu0
        %2233 = vdwg.mxu0
        %2234 = vmatprep.subr.bf16.mxu0 %v2132
        %2235 = vmatpush1.bf16.msra.mxu0 %v2131
        %2236 = vmatprep.subr.bf16.mxu0 %v2136
        %2237 = vmatpush1.bf16.msra.mxu0 %v2135
        %2238 = vmatprep.subr.bf16.mxu0 %v2140
        %2239 = vmatpush1.bf16.msra.mxu0 %v2139
        %2240 = vmatprep.subr.bf16.mxu0 %v2144
        %2241 = vmatpush1.bf16.msra.mxu0 %v2143
        %2242 = vmatprep.subr.bf16.mxu0 %v2148
        %2243 = vmatpush1.bf16.msra.mxu0 %v2147
        %2244 = vmatprep.subr.bf16.mxu0 %v2152
        %2245 = vmatpush1.bf16.msra.mxu0 %v2151
        %2246 = vmatprep.subr.bf16.mxu0 %v2156
        %2247 = vmatpush1.bf16.msra.mxu0 %v2155
        %2248 = vmatprep.subr.bf16.mxu0 %v2160
        %2249 = vmatpush1.bf16.msra.mxu0 %v2159
        %2250 = vmatprep.subr.bf16.mxu0 0
        %2251 = vmatpush1.bf16.msra.mxu0 0
        %2252 = vmatprep.subr.bf16.mxu0 0
        %2253 = vmatpush1.bf16.msra.mxu0 0
        %2254 = vmatprep.subr.bf16.mxu0 0
        %2255 = vmatpush1.bf16.msra.mxu0 0
        %2256 = vmatprep.subr.bf16.mxu0 0
        %2257 = vmatpush1.bf16.msra.mxu0 0
        %2258 = vmatprep.subr.bf16.mxu0 0
        %2259 = vmatpush1.bf16.msra.mxu0 0
        %2260 = vmatprep.subr.bf16.mxu0 0
        %2261 = vmatpush1.bf16.msra.mxu0 0
        %2262 = vmatprep.subr.bf16.mxu0 0
        %2263 = vmatpush1.bf16.msra.mxu0 0
        %2264 = vmatprep.subr.bf16.mxu0 0
        %2265 = vmatpush1.bf16.msra.mxu0 0
        %2266 = vmatprep.mubr.bf16.mxu0 0
        %2267 = vmatmul.mubr.bf16.gmra.mrb[0].mxu0 %v2011
        %v2268 = vpop.f32.mrb[0].mxu0
        %v2269 = vadd.f32 %v2024, %v2268
        %v2270 = vpop.f32.mrb[0].mxu0
        %v2271 = vadd.f32 %v2028, %v2270
        %v2272 = vpop.f32.mrb[0].mxu0
        %v2273 = vpop.f32.mrb[0].mxu0
        %2274 = vdwg.mxu0
        %v2275 = vmax.f32 %v2228, 0.0
        %v2276 = vmax.f32 %v2230, 0.0
        %v2277 = vmax.f32 %v2269, 0.0
        %v2278 = vmax.f32 %v2271, 0.0
        %v2279 = vpack.c.bf16 %v2275, %v2275
        %v2280 = vpack.c.bf16 %v2276, %v2276
        %v2281 = vpack.c.bf16 %v2277, %v2277
        %v2282 = vpack.c.bf16 %v2278, %v2278
        %v2284 = vlaneseq
        %v2285 = vshrl.u32 %v2284, 7
        %v2286 = vsub.s32 0, %v2285
        %v2287 = vrot.slane %v633, %v2286
        %v2353 = vunpack.c.l.b16 %v569
        %v2354 = vunpack.c.l.b16 %v570
        %v2355 = vunpack.c.l.b16 %v571
        %v2356 = vunpack.c.l.b16 %v572
        %v2357 = vunpack.c.l.b16 %v573
        %v2358 = vunpack.c.l.b16 %v574
        %v2359 = vunpack.c.l.b16 %v575
        %v2360 = vunpack.c.l.b16 %v576
        %v2361 = vunpack.c.l.b16 %v577
        %v2362 = vunpack.c.l.b16 %v578
        %v2363 = vunpack.c.l.b16 %v579
        %v2364 = vunpack.c.l.b16 %v580
        %v2365 = vunpack.c.l.b16 %v581
        %v2366 = vunpack.c.l.b16 %v582
        %v2367 = vunpack.c.l.b16 %v583
        %v2368 = vunpack.c.l.b16 %v584
        %v2369 = vunpack.c.l.b16 %v585
        %v2370 = vunpack.c.l.b16 %v586
        %v2371 = vunpack.c.l.b16 %v587
        %v2372 = vunpack.c.l.b16 %v588
        %v2373 = vunpack.c.l.b16 %v589
        %v2374 = vunpack.c.l.b16 %v590
        %v2375 = vunpack.c.l.b16 %v591
        %v2376 = vunpack.c.l.b16 %v592
        %v2377 = vunpack.c.l.b16 %v593
        %v2378 = vunpack.c.l.b16 %v594
        %v2379 = vunpack.c.l.b16 %v595
        %v2380 = vunpack.c.l.b16 %v596
        %v2381 = vunpack.c.l.b16 %v597
        %v2382 = vunpack.c.l.b16 %v598
        %v2383 = vunpack.c.l.b16 %v599
        %v2384 = vunpack.c.l.b16 %v600
        %v2385 = vunpack.c.l.b16 %v601
        %v2386 = vunpack.c.l.b16 %v602
        %v2387 = vunpack.c.l.b16 %v603
        %v2388 = vunpack.c.l.b16 %v604
        %v2389 = vunpack.c.l.b16 %v605
        %v2390 = vunpack.c.l.b16 %v606
        %v2391 = vunpack.c.l.b16 %v607
        %v2392 = vunpack.c.l.b16 %v608
        %v2393 = vunpack.c.l.b16 %v609
        %v2394 = vunpack.c.l.b16 %v610
        %v2395 = vunpack.c.l.b16 %v611
        %v2396 = vunpack.c.l.b16 %v612
        %v2397 = vunpack.c.l.b16 %v613
        %v2398 = vunpack.c.l.b16 %v614
        %v2399 = vunpack.c.l.b16 %v615
        %v2400 = vunpack.c.l.b16 %v616
        %v2401 = vunpack.c.l.b16 %v617
        %v2402 = vunpack.c.l.b16 %v618
        %v2403 = vunpack.c.l.b16 %v619
        %v2404 = vunpack.c.l.b16 %v620
        %v2405 = vunpack.c.l.b16 %v621
        %v2406 = vunpack.c.l.b16 %v622
        %v2407 = vunpack.c.l.b16 %v623
        %v2408 = vunpack.c.l.b16 %v624
        %v2409 = vunpack.c.l.b16 %v625
        %v2410 = vunpack.c.l.b16 %v626
        %v2411 = vunpack.c.l.b16 %v627
        %v2412 = vunpack.c.l.b16 %v628
        %v2413 = vunpack.c.l.b16 %v629
        %v2414 = vunpack.c.l.b16 %v630
        %v2415 = vunpack.c.l.b16 %v631
        %v2416 = vunpack.c.l.b16 %v632
        %v2417 = vpack.c.b16 %v2354, %v2353
        %v2418 = vpack.c.b16 %v2356, %v2355
        %v2419 = vpack.c.b16 %v2358, %v2357
        %v2420 = vpack.c.b16 %v2360, %v2359
        %v2421 = vpack.c.b16 %v2362, %v2361
        %v2422 = vpack.c.b16 %v2364, %v2363
        %v2423 = vpack.c.b16 %v2366, %v2365
        %v2424 = vpack.c.b16 %v2368, %v2367
        %v2425 = vpack.c.b16 %v2370, %v2369
        %v2426 = vpack.c.b16 %v2372, %v2371
        %v2427 = vpack.c.b16 %v2374, %v2373
        %v2428 = vpack.c.b16 %v2376, %v2375
        %v2429 = vpack.c.b16 %v2378, %v2377
        %v2430 = vpack.c.b16 %v2380, %v2379
        %v2431 = vpack.c.b16 %v2382, %v2381
        %v2432 = vpack.c.b16 %v2384, %v2383
        %v2433 = vpack.c.b16 %v2386, %v2385
        %v2434 = vpack.c.b16 %v2388, %v2387
        %v2435 = vpack.c.b16 %v2390, %v2389
        %v2436 = vpack.c.b16 %v2392, %v2391
        %v2437 = vpack.c.b16 %v2394, %v2393
        %v2438 = vpack.c.b16 %v2396, %v2395
        %v2439 = vpack.c.b16 %v2398, %v2397
        %v2440 = vpack.c.b16 %v2400, %v2399
        %v2441 = vpack.c.b16 %v2402, %v2401
        %v2442 = vpack.c.b16 %v2404, %v2403
        %v2443 = vpack.c.b16 %v2406, %v2405
        %v2444 = vpack.c.b16 %v2408, %v2407
        %v2445 = vpack.c.b16 %v2410, %v2409
        %v2446 = vpack.c.b16 %v2412, %v2411
        %v2447 = vpack.c.b16 %v2414, %v2413
        %v2448 = vpack.c.b16 %v2416, %v2415
        %2481 = vmatprep.subr.bf16.mxu0 0
        %2482 = vmatpush1.bf16.msra.mxu0 %v2417
        %2483 = vmatprep.subr.bf16.mxu0 0
        %2484 = vmatpush1.bf16.msra.mxu0 %v2418
        %2485 = vmatprep.subr.bf16.mxu0 0
        %2486 = vmatpush1.bf16.msra.mxu0 %v2419
        %2487 = vmatprep.subr.bf16.mxu0 0
        %2488 = vmatpush1.bf16.msra.mxu0 %v2420
        %2489 = vmatprep.subr.bf16.mxu0 0
        %2490 = vmatpush1.bf16.msra.mxu0 %v2421
        %2491 = vmatprep.subr.bf16.mxu0 0
        %2492 = vmatpush1.bf16.msra.mxu0 %v2422
        %2493 = vmatprep.subr.bf16.mxu0 0
        %2494 = vmatpush1.bf16.msra.mxu0 %v2423
        %2495 = vmatprep.subr.bf16.mxu0 0
        %2496 = vmatpush1.bf16.msra.mxu0 %v2424
        %2497 = vmatprep.subr.bf16.mxu0 0
        %2498 = vmatpush1.bf16.msra.mxu0 %v2425
        %2499 = vmatprep.subr.bf16.mxu0 0
        %2500 = vmatpush1.bf16.msra.mxu0 %v2426
        %2501 = vmatprep.subr.bf16.mxu0 0
        %2502 = vmatpush1.bf16.msra.mxu0 %v2427
        %2503 = vmatprep.subr.bf16.mxu0 0
        %2504 = vmatpush1.bf16.msra.mxu0 %v2428
        %2505 = vmatprep.subr.bf16.mxu0 0
        %2506 = vmatpush1.bf16.msra.mxu0 %v2429
        %2507 = vmatprep.subr.bf16.mxu0 0
        %2508 = vmatpush1.bf16.msra.mxu0 %v2430
        %2509 = vmatprep.subr.bf16.mxu0 0
        %2510 = vmatpush1.bf16.msra.mxu0 %v2431
        %2511 = vmatprep.subr.bf16.mxu0 0
        %2512 = vmatpush1.bf16.msra.mxu0 %v2432
        %2513 = vmatprep.mubr.bf16.mxu0 %v2280
        %2514 = vmatmul.mubr.bf16.gmra.mrb[0].mxu0 %v2279
        %v2515 = vpop.f32.mrb[0].mxu0
        %v2516 = vadd.f32 %v2287, %v2515
        %v2517 = vpop.f32.mrb[0].mxu0
        %v2518 = vpop.f32.mrb[0].mxu0
        %v2519 = vpop.f32.mrb[0].mxu0
        %2520 = vdwg.mxu0
        %2521 = vmatprep.subr.bf16.mxu0 0
        %2522 = vmatpush1.bf16.msra.mxu0 %v2433
        %2523 = vmatprep.subr.bf16.mxu0 0
        %2524 = vmatpush1.bf16.msra.mxu0 %v2434
        %2525 = vmatprep.subr.bf16.mxu0 0
        %2526 = vmatpush1.bf16.msra.mxu0 %v2435
        %2527 = vmatprep.subr.bf16.mxu0 0
        %2528 = vmatpush1.bf16.msra.mxu0 %v2436
        %2529 = vmatprep.subr.bf16.mxu0 0
        %2530 = vmatpush1.bf16.msra.mxu0 %v2437
        %2531 = vmatprep.subr.bf16.mxu0 0
        %2532 = vmatpush1.bf16.msra.mxu0 %v2438
        %2533 = vmatprep.subr.bf16.mxu0 0
        %2534 = vmatpush1.bf16.msra.mxu0 %v2439
        %2535 = vmatprep.subr.bf16.mxu0 0
        %2536 = vmatpush1.bf16.msra.mxu0 %v2440
        %2537 = vmatprep.subr.bf16.mxu0 0
        %2538 = vmatpush1.bf16.msra.mxu0 %v2441
        %2539 = vmatprep.subr.bf16.mxu0 0
        %2540 = vmatpush1.bf16.msra.mxu0 %v2442
        %2541 = vmatprep.subr.bf16.mxu0 0
        %2542 = vmatpush1.bf16.msra.mxu0 %v2443
        %2543 = vmatprep.subr.bf16.mxu0 0
        %2544 = vmatpush1.bf16.msra.mxu0 %v2444
        %2545 = vmatprep.subr.bf16.mxu0 0
        %2546 = vmatpush1.bf16.msra.mxu0 %v2445
        %2547 = vmatprep.subr.bf16.mxu0 0
        %2548 = vmatpush1.bf16.msra.mxu0 %v2446
        %2549 = vmatprep.subr.bf16.mxu0 0
        %2550 = vmatpush1.bf16.msra.mxu0 %v2447
        %2551 = vmatprep.subr.bf16.mxu0 0
        %2552 = vmatpush1.bf16.msra.mxu0 %v2448
        %2553 = vmatprep.mubr.bf16.mxu0 %v2282
        %2554 = vmatmul.mubr.bf16.gmra.mrb[0].mxu0 %v2281
        %v2555 = vpop.f32.mrb[0].mxu0
        %v2556 = vadd.f32 %v2516, %v2555
        %v2557 = vpop.f32.mrb[0].mxu0
        %v2558 = vpop.f32.mrb[0].mxu0
        %v2559 = vpop.f32.mrb[0].mxu0
        %2560 = vdwg.mxu0
        %v2561 = vadd.f32 %v2010, %v2556
        %2562 = vadd.xlane.f32.xlu0 %v2561
        %v2563 = vpop.xlane.xlu0 %2562
        %v2564 = vmul.f32 %v2563, %v1987
        %v2565 = vsub.f32 %v2561, %v2564
        %v2566 = vmul.f32 %v2565, %v2565
        %2567 = vadd.xlane.f32.xlu0 %v2566
        %v2568 = vpop.xlane.xlu0 %2567
        %v2569 = vmul.f32 %v2568, %v1987
        %v2570 = vadd.f32 %v2569, 1e-05
        %v2571 = vrsqrt.pop %v2570
        %v2572 = vmul.f32 %v2565, %v2571
        %v2574 = vlaneseq
        %v2575 = vshrl.u32 %v2574, 7
        %v2576 = vsub.s32 0, %v2575
        %v2577 = vrot.slane %v634, %v2576
        %v2579 = vmul.f32 %v2572, %v2577
        %v2581 = vlaneseq
        %v2582 = vshrl.u32 %v2581, 7
        %v2583 = vsub.s32 0, %v2582
        %v2584 = vrot.slane %v635, %v2583
        %v2586 = vadd.f32 %v2579, %v2584
        %v2587 = vpack.c.bf16 %v2586, %v2586
        %2588 = vst [vmem:[%s479] sm:$0xf] %v2587
        %p2589 = scmp.lt.s32.totalorder %s26, 1
        %s2590 = scalar_select %p2589, %s26, 1
        %s2591 = smul.addr %s2590, 4
        %s2592 = scalar_lea.vmem %s13, %s2591
        // Predicated region
        $region85: #{audio_feature_encoder.4} parent=71 // pred_check
          %p2593 = pneg %p322
        $region86: #{audio_feature_encoder.4} parent=71 // pred_check_branch
          %2595 = sbr.rel (%p2593) target = $region88
        $region87: #{audio_feature_encoder.4} parent=71 // pred_region
          _
        $region88: #{audio_feature_encoder.4} parent=71 // pred_fallthru
          _
      $region72: #{audio_feature_encoder.4} parent=5 // pred_fallthru
        _
      %p2596 = scmp.le.s32.totalorder 2, %s21
      // Predicated region
      $region89: #{audio_feature_encoder.4} parent=5 // pred_check
        %p2597 = pneg %p2596
      $region90: #{audio_feature_encoder.4} parent=5 // pred_check_branch
        %2599 = sbr.rel (%p2597) target = $region92
      $region91: #{audio_feature_encoder.4} parent=5 // pred_region
        %s2600 = ssub.s32 %s21, 2
        // Predicated region
        $region93: #{audio_feature_encoder.4} parent=91 // pred_check
          %p2601 = pneg %p328
        $region94: #{audio_feature_encoder.4} parent=91 // pred_check_branch
          %2603 = sbr.rel (%p2601) target = $region96
        $region95: #{audio_feature_encoder.4} parent=91 // pred_region
          %p2604 = scmp.lt.s32.totalorder %s27, 1
          %s2605 = scalar_select %p2604, %s27, 1
          %s2606 = smul.addr %s2605, 4
          %s2607 = scalar_lea.vmem %s13, %s2606
        $region96: #{audio_feature_encoder.4} parent=91 // pred_fallthru
          _
      $region92: #{audio_feature_encoder.4} parent=5 // pred_fallthru
        _
    $region6: #{audio_feature_encoder.4} parent=1 // loop_footer
      %s25 = sadd.s32 1, %s21
    $region7: #{audio_feature_encoder.4} parent=1 // loop_footer_branch
      %20 = sbr.rel target = $region3
    $region8: #{audio_feature_encoder.4} parent=1 // loop_exit
      _
    %2608 = vsyncpa [#allocation3], 1
    %s2609 = scalar_lea.sflag [#allocation3], 1
    %2610 = vsyncpa %s2609, 1
    %2611 = vsyncpa [#allocation5], 1

// kernel: audio_feature_encoder.5
$region0: #{audio_feature_encoder.5}
  #allocation0 [shape = 'u32[]', space=smem, size = 0x4, offset = 0x4, fixed_abs, tag = 'smem constant byte address 0x4 - core index']
  #allocation1 [shape = 'u32[144,128]{1,0:T(1,128)}', space=vmem, size = 0x12000, scoped, tag = 'internal scratch']
  %s0 = inlined_call_operand.vmem [shape: bf16[2,8,128], index: 0, kind: input, shape index: {}]
  %s1 = inlined_call_operand.vmem [shape: bf16[128,384], index: 1, kind: input, shape index: {}]
  %s2 = inlined_call_operand.vmem [shape: f32[1,384], index: 2, kind: input, shape index: {}]
  %s3 = inlined_call_operand.vmem [shape: bf16[128,128], index: 3, kind: input, shape index: {}]
  %s4 = inlined_call_operand.vmem [shape: f32[1,128], index: 4, kind: input, shape index: {}]
  %s5 = inlined_call_operand.vmem [shape: f32[1,128], index: 5, kind: input, shape index: {}]
  %s6 = inlined_call_operand.vmem [shape: f32[1,128], index: 6, kind: input, shape index: {}]
  %s7 = inlined_call_operand.vmem [shape: bf16[128,512], index: 7, kind: input, shape index: {}]
  %s8 = inlined_call_operand.vmem [shape: f32[1,512], index: 8, kind: input, shape index: {}]
  %s9 = inlined_call_operand.vmem [shape: bf16[512,128], index: 9, kind: input, shape index: {}]
  %s10 = inlined_call_operand.vmem [shape: f32[1,128], index: 10, kind: input, shape index: {}]
  %s11 = inlined_call_operand.vmem [shape: f32[1,128], index: 11, kind: input, shape index: {}]
  %s12 = inlined_call_operand.vmem [shape: f32[1,128], index: 12, kind: input, shape index: {}]
  %s13 = inlined_call_operand.vmem [shape: f32[1,128], index: 13, kind: input, shape index: {}]
  %s14 = inlined_call_operand.vmem [shape: f32[1,128], index: 14, kind: input, shape index: {}]
  %s15 = inlined_call_operand.hbm [shape: f32[2,1,128], index: 15, kind: output, shape index: {}]
  %s16 = sld [smem:[#allocation0]]
  $region93: #{audio_feature_encoder.5} parent=0
    _
  %s18 = ssub.s32 1, %s16
  %s19 = scalar_select 0, %s18, %s16
  $region1: #{audio_feature_encoder.5} parent=0
    #allocation2 [shape = 'u8[1024]{0}', space=vmem, size = 0x400, scoped, tag = 'output window, operand 0']
    #allocation3 [shape = 's32[2]{0}', space=sflag, size = 0x8, scoped, tag = 'scoped memory for audio_feature_encoder.5']
    %20 = vsyncpa [#allocation3], 0
    %s21 = scalar_lea.sflag [#allocation3], 1
    %22 = vsyncpa %s21, 0
    loop: start=0, step=1, limit=4
    $region2: #{audio_feature_encoder.5} parent=1 // loop_pre_header
      _
    $region3: #{audio_feature_encoder.5} parent=1 // loop_header
      %s24 = sphi 0, %s28
      %p25 = scmp.ge.s32.totalorder %s24, 4
      %s34 = sphi 0, %s36
      %s37 = sphi 0, %s34
      %s38 = sphi 0, %s37
      %s54 = sphi 0, %s38
      %s58 = sphi 0, %s58
      %s60 = sphi 0, %s58
      %s61 = sphi 0, %s60
      %s75 = sphi 0, %s61
      %s79 = sphi 0, %s79
      %s81 = sphi 0, %s79
      %s82 = sphi 0, %s81
      %s96 = sphi 0, %s82
      %s100 = sphi 0, %s100
      %s102 = sphi 0, %s100
      %s103 = sphi 0, %s102
      %s117 = sphi 0, %s103
      %s121 = sphi 0, %s121
      %s123 = sphi 0, %s121
      %s124 = sphi 0, %s123
      %s138 = sphi 0, %s124
      %s142 = sphi 0, %s142
      %s144 = sphi 0, %s142
      %s145 = sphi 0, %s144
      %s159 = sphi 0, %s145
      %s163 = sphi 0, %s163
      %s165 = sphi 0, %s163
      %s166 = sphi 0, %s165
      %s180 = sphi 0, %s166
      %s184 = sphi 0, %s184
      %s186 = sphi 0, %s184
      %s187 = sphi 0, %s186
      %s201 = sphi 0, %s187
      %s205 = sphi 0, %s205
      %s207 = sphi 0, %s205
      %s208 = sphi 0, %s207
      %s222 = sphi 0, %s208
      %s226 = sphi 0, %s226
      %s228 = sphi 0, %s226
      %s229 = sphi 0, %s228
      %s243 = sphi 0, %s229
      %s247 = sphi 0, %s247
      %s249 = sphi 0, %s247
      %s250 = sphi 0, %s249
      %s264 = sphi 0, %s250
      %s268 = sphi 0, %s268
      %s270 = sphi 0, %s268
      %s271 = sphi 0, %s270
      %s285 = sphi 0, %s271
      %s289 = sphi 0, %s289
      %s291 = sphi 0, %s289
      %s292 = sphi 0, %s291
      %s306 = sphi 0, %s292
      %s310 = sphi 0, %s310
      %s312 = sphi 0, %s310
      %s313 = sphi 0, %s312
      %s327 = sphi 0, %s313
      %s331 = sphi 0, %s331
      %s333 = sphi 0, %s331
      %s334 = sphi 0, %s333
      %s348 = sphi 0, %s334
      %s354 = sphi 0, %s356
      %s357 = sphi 0, %s354
      %s358 = sphi 0, %s357
      %s374 = sphi 0, %s358
    $region4: #{audio_feature_encoder.5} parent=1 // loop_header_branch
      %27 = sbr.rel (%p25) target = $region8
    $region5: #{audio_feature_encoder.5} parent=1 // loop_body
      %s29 = ssub.s32 %s24, 1
      %s30 = ssub.s32 %s24, 2
      %s31 = sadd.s32 %s24, 1
      %s32 = ssub.s32 %s24, %s31
      %p33 = scmp.eq.s32.totalorder %s32, 0
      %s35 = sadd.s32 %s34, 1
      %s36 = scalar_select %p33, %s34, %s35
      %p39 = pneg %p33
      %p40 = scmp.eq.s32.totalorder %s24, 1
      %p41 = por %p39, %p40
      %p42 = scmp.ne.s32.totalorder %s34, %s37
      %p43 = scmp.eq.s32.totalorder %s24, 0
      %p44 = por %p42, %p43
      %p45 = scmp.ne.s32.totalorder %s34, %s37
      %p46 = scmp.eq.s32.totalorder %s29, 1
      %p47 = por %p45, %p46
      %p48 = scmp.ne.s32.totalorder %s37, %s38
      %p49 = scmp.eq.s32.totalorder %s29, 0
      %p50 = por %p48, %p49
      %p51 = scmp.ne.s32.totalorder %s37, %s38
      %p52 = scmp.eq.s32.totalorder %s30, 1
      %p53 = por %p51, %p52
      %p55 = scmp.ne.s32.totalorder %s38, %s54
      %p56 = scmp.eq.s32.totalorder %s30, 0
      %p57 = por %p55, %p56
      %s59 = sadd.s32 %s58, 1
      %p62 = scmp.eq.s32.totalorder %s24, 1
      %p63 = scmp.ne.s32.totalorder %s58, %s60
      %p64 = scmp.eq.s32.totalorder %s24, 0
      %p65 = por %p63, %p64
      %p66 = scmp.ne.s32.totalorder %s58, %s60
      %p67 = scmp.eq.s32.totalorder %s29, 1
      %p68 = por %p66, %p67
      %p69 = scmp.ne.s32.totalorder %s60, %s61
      %p70 = scmp.eq.s32.totalorder %s29, 0
      %p71 = por %p69, %p70
      %p72 = scmp.ne.s32.totalorder %s60, %s61
      %p73 = scmp.eq.s32.totalorder %s30, 1
      %p74 = por %p72, %p73
      %p76 = scmp.ne.s32.totalorder %s61, %s75
      %p77 = scmp.eq.s32.totalorder %s30, 0
      %p78 = por %p76, %p77
      %s80 = sadd.s32 %s79, 1
      %p83 = scmp.eq.s32.totalorder %s24, 1
      %p84 = scmp.ne.s32.totalorder %s79, %s81
      %p85 = scmp.eq.s32.totalorder %s24, 0
      %p86 = por %p84, %p85
      %p87 = scmp.ne.s32.totalorder %s79, %s81
      %p88 = scmp.eq.s32.totalorder %s29, 1
      %p89 = por %p87, %p88
      %p90 = scmp.ne.s32.totalorder %s81, %s82
      %p91 = scmp.eq.s32.totalorder %s29, 0
      %p92 = por %p90, %p91
      %p93 = scmp.ne.s32.totalorder %s81, %s82
      %p94 = scmp.eq.s32.totalorder %s30, 1
      %p95 = por %p93, %p94
      %p97 = scmp.ne.s32.totalorder %s82, %s96
      %p98 = scmp.eq.s32.totalorder %s30, 0
      %p99 = por %p97, %p98
      %s101 = sadd.s32 %s100, 1
      %p104 = scmp.eq.s32.totalorder %s24, 1
      %p105 = scmp.ne.s32.totalorder %s100, %s102
      %p106 = scmp.eq.s32.totalorder %s24, 0
      %p107 = por %p105, %p106
      %p108 = scmp.ne.s32.totalorder %s100, %s102
      %p109 = scmp.eq.s32.totalorder %s29, 1
      %p110 = por %p108, %p109
      %p111 = scmp.ne.s32.totalorder %s102, %s103
      %p112 = scmp.eq.s32.totalorder %s29, 0
      %p113 = por %p111, %p112
      %p114 = scmp.ne.s32.totalorder %s102, %s103
      %p115 = scmp.eq.s32.totalorder %s30, 1
      %p116 = por %p114, %p115
      %p118 = scmp.ne.s32.totalorder %s103, %s117
      %p119 = scmp.eq.s32.totalorder %s30, 0
      %p120 = por %p118, %p119
      %s122 = sadd.s32 %s121, 1
      %p125 = scmp.eq.s32.totalorder %s24, 1
      %p126 = scmp.ne.s32.totalorder %s121, %s123
      %p127 = scmp.eq.s32.totalorder %s24, 0
      %p128 = por %p126, %p127
      %p129 = scmp.ne.s32.totalorder %s121, %s123
      %p130 = scmp.eq.s32.totalorder %s29, 1
      %p131 = por %p129, %p130
      %p132 = scmp.ne.s32.totalorder %s123, %s124
      %p133 = scmp.eq.s32.totalorder %s29, 0
      %p134 = por %p132, %p133
      %p135 = scmp.ne.s32.totalorder %s123, %s124
      %p136 = scmp.eq.s32.totalorder %s30, 1
      %p137 = por %p135, %p136
      %p139 = scmp.ne.s32.totalorder %s124, %s138
      %p140 = scmp.eq.s32.totalorder %s30, 0
      %p141 = por %p139, %p140
      %s143 = sadd.s32 %s142, 1
      %p146 = scmp.eq.s32.totalorder %s24, 1
      %p147 = scmp.ne.s32.totalorder %s142, %s144
      %p148 = scmp.eq.s32.totalorder %s24, 0
      %p149 = por %p147, %p148
      %p150 = scmp.ne.s32.totalorder %s142, %s144
      %p151 = scmp.eq.s32.totalorder %s29, 1
      %p152 = por %p150, %p151
      %p153 = scmp.ne.s32.totalorder %s144, %s145
      %p154 = scmp.eq.s32.totalorder %s29, 0
      %p155 = por %p153, %p154
      %p156 = scmp.ne.s32.totalorder %s144, %s145
      %p157 = scmp.eq.s32.totalorder %s30, 1
      %p158 = por %p156, %p157
      %p160 = scmp.ne.s32.totalorder %s145, %s159
      %p161 = scmp.eq.s32.totalorder %s30, 0
      %p162 = por %p160, %p161
      %s164 = sadd.s32 %s163, 1
      %p167 = scmp.eq.s32.totalorder %s24, 1
      %p168 = scmp.ne.s32.totalorder %s163, %s165
      %p169 = scmp.eq.s32.totalorder %s24, 0
      %p170 = por %p168, %p169
      %p171 = scmp.ne.s32.totalorder %s163, %s165
      %p172 = scmp.eq.s32.totalorder %s29, 1
      %p173 = por %p171, %p172
      %p174 = scmp.ne.s32.totalorder %s165, %s166
      %p175 = scmp.eq.s32.totalorder %s29, 0
      %p176 = por %p174, %p175
      %p177 = scmp.ne.s32.totalorder %s165, %s166
      %p178 = scmp.eq.s32.totalorder %s30, 1
      %p179 = por %p177, %p178
      %p181 = scmp.ne.s32.totalorder %s166, %s180
      %p182 = scmp.eq.s32.totalorder %s30, 0
      %p183 = por %p181, %p182
      %s185 = sadd.s32 %s184, 1
      %p188 = scmp.eq.s32.totalorder %s24, 1
      %p189 = scmp.ne.s32.totalorder %s184, %s186
      %p190 = scmp.eq.s32.totalorder %s24, 0
      %p191 = por %p189, %p190
      %p192 = scmp.ne.s32.totalorder %s184, %s186
      %p193 = scmp.eq.s32.totalorder %s29, 1
      %p194 = por %p192, %p193
      %p195 = scmp.ne.s32.totalorder %s186, %s187
      %p196 = scmp.eq.s32.totalorder %s29, 0
      %p197 = por %p195, %p196
      %p198 = scmp.ne.s32.totalorder %s186, %s187
      %p199 = scmp.eq.s32.totalorder %s30, 1
      %p200 = por %p198, %p199
      %p202 = scmp.ne.s32.totalorder %s187, %s201
      %p203 = scmp.eq.s32.totalorder %s30, 0
      %p204 = por %p202, %p203
      %s206 = sadd.s32 %s205, 1
      %p209 = scmp.eq.s32.totalorder %s24, 1
      %p210 = scmp.ne.s32.totalorder %s205, %s207
      %p211 = scmp.eq.s32.totalorder %s24, 0
      %p212 = por %p210, %p211
      %p213 = scmp.ne.s32.totalorder %s205, %s207
      %p214 = scmp.eq.s32.totalorder %s29, 1
      %p215 = por %p213, %p214
      %p216 = scmp.ne.s32.totalorder %s207, %s208
      %p217 = scmp.eq.s32.totalorder %s29, 0
      %p218 = por %p216, %p217
      %p219 = scmp.ne.s32.totalorder %s207, %s208
      %p220 = scmp.eq.s32.totalorder %s30, 1
      %p221 = por %p219, %p220
      %p223 = scmp.ne.s32.totalorder %s208, %s222
      %p224 = scmp.eq.s32.totalorder %s30, 0
      %p225 = por %p223, %p224
      %s227 = sadd.s32 %s226, 1
      %p230 = scmp.eq.s32.totalorder %s24, 1
      %p231 = scmp.ne.s32.totalorder %s226, %s228
      %p232 = scmp.eq.s32.totalorder %s24, 0
      %p233 = por %p231, %p232
      %p234 = scmp.ne.s32.totalorder %s226, %s228
      %p235 = scmp.eq.s32.totalorder %s29, 1
      %p236 = por %p234, %p235
      %p237 = scmp.ne.s32.totalorder %s228, %s229
      %p238 = scmp.eq.s32.totalorder %s29, 0
      %p239 = por %p237, %p238
      %p240 = scmp.ne.s32.totalorder %s228, %s229
      %p241 = scmp.eq.s32.totalorder %s30, 1
      %p242 = por %p240, %p241
      %p244 = scmp.ne.s32.totalorder %s229, %s243
      %p245 = scmp.eq.s32.totalorder %s30, 0
      %p246 = por %p244, %p245
      %s248 = sadd.s32 %s247, 1
      %p251 = scmp.eq.s32.totalorder %s24, 1
      %p252 = scmp.ne.s32.totalorder %s247, %s249
      %p253 = scmp.eq.s32.totalorder %s24, 0
      %p254 = por %p252, %p253
      %p255 = scmp.ne.s32.totalorder %s247, %s249
      %p256 = scmp.eq.s32.totalorder %s29, 1
      %p257 = por %p255, %p256
      %p258 = scmp.ne.s32.totalorder %s249, %s250
      %p259 = scmp.eq.s32.totalorder %s29, 0
      %p260 = por %p258, %p259
      %p261 = scmp.ne.s32.totalorder %s249, %s250
      %p262 = scmp.eq.s32.totalorder %s30, 1
      %p263 = por %p261, %p262
      %p265 = scmp.ne.s32.totalorder %s250, %s264
      %p266 = scmp.eq.s32.totalorder %s30, 0
      %p267 = por %p265, %p266
      %s269 = sadd.s32 %s268, 1
      %p272 = scmp.eq.s32.totalorder %s24, 1
      %p273 = scmp.ne.s32.totalorder %s268, %s270
      %p274 = scmp.eq.s32.totalorder %s24, 0
      %p275 = por %p273, %p274
      %p276 = scmp.ne.s32.totalorder %s268, %s270
      %p277 = scmp.eq.s32.totalorder %s29, 1
      %p278 = por %p276, %p277
      %p279 = scmp.ne.s32.totalorder %s270, %s271
      %p280 = scmp.eq.s32.totalorder %s29, 0
      %p281 = por %p279, %p280
      %p282 = scmp.ne.s32.totalorder %s270, %s271
      %p283 = scmp.eq.s32.totalorder %s30, 1
      %p284 = por %p282, %p283
      %p286 = scmp.ne.s32.totalorder %s271, %s285
      %p287 = scmp.eq.s32.totalorder %s30, 0
      %p288 = por %p286, %p287
      %s290 = sadd.s32 %s289, 1
      %p293 = scmp.eq.s32.totalorder %s24, 1
      %p294 = scmp.ne.s32.totalorder %s289, %s291
      %p295 = scmp.eq.s32.totalorder %s24, 0
      %p296 = por %p294, %p295
      %p297 = scmp.ne.s32.totalorder %s289, %s291
      %p298 = scmp.eq.s32.totalorder %s29, 1
      %p299 = por %p297, %p298
      %p300 = scmp.ne.s32.totalorder %s291, %s292
      %p301 = scmp.eq.s32.totalorder %s29, 0
      %p302 = por %p300, %p301
      %p303 = scmp.ne.s32.totalorder %s291, %s292
      %p304 = scmp.eq.s32.totalorder %s30, 1
      %p305 = por %p303, %p304
      %p307 = scmp.ne.s32.totalorder %s292, %s306
      %p308 = scmp.eq.s32.totalorder %s30, 0
      %p309 = por %p307, %p308
      %s311 = sadd.s32 %s310, 1
      %p314 = scmp.eq.s32.totalorder %s24, 1
      %p315 = scmp.ne.s32.totalorder %s310, %s312
      %p316 = scmp.eq.s32.totalorder %s24, 0
      %p317 = por %p315, %p316
      %p318 = scmp.ne.s32.totalorder %s310, %s312
      %p319 = scmp.eq.s32.totalorder %s29, 1
      %p320 = por %p318, %p319
      %p321 = scmp.ne.s32.totalorder %s312, %s313
      %p322 = scmp.eq.s32.totalorder %s29, 0
      %p323 = por %p321, %p322
      %p324 = scmp.ne.s32.totalorder %s312, %s313
      %p325 = scmp.eq.s32.totalorder %s30, 1
      %p326 = por %p324, %p325
      %p328 = scmp.ne.s32.totalorder %s313, %s327
      %p329 = scmp.eq.s32.totalorder %s30, 0
      %p330 = por %p328, %p329
      %s332 = sadd.s32 %s331, 1
      %p335 = scmp.eq.s32.totalorder %s24, 1
      %p336 = scmp.ne.s32.totalorder %s331, %s333
      %p337 = scmp.eq.s32.totalorder %s24, 0
      %p338 = por %p336, %p337
      %p339 = scmp.ne.s32.totalorder %s331, %s333
      %p340 = scmp.eq.s32.totalorder %s29, 1
      %p341 = por %p339, %p340
      %p342 = scmp.ne.s32.totalorder %s333, %s334
      %p343 = scmp.eq.s32.totalorder %s29, 0
      %p344 = por %p342, %p343
      %p345 = scmp.ne.s32.totalorder %s333, %s334
      %p346 = scmp.eq.s32.totalorder %s30, 1
      %p347 = por %p345, %p346
      %p349 = scmp.ne.s32.totalorder %s334, %s348
      %p350 = scmp.eq.s32.totalorder %s30, 0
      %p351 = por %p349, %p350
      %s352 = ssub.s32 %s24, %s31
      %p353 = scmp.eq.s32.totalorder %s352, 0
      %s355 = sadd.s32 %s354, 1
      %s356 = scalar_select %p353, %s354, %s355
      %p359 = pneg %p353
      %p360 = scmp.eq.s32.totalorder %s24, 1
      %p361 = por %p359, %p360
      %p362 = scmp.ne.s32.totalorder %s354, %s357
      %p363 = scmp.eq.s32.totalorder %s24, 0
      %p364 = por %p362, %p363
      %p365 = scmp.ne.s32.totalorder %s354, %s357
      %p366 = scmp.eq.s32.totalorder %s29, 1
      %p367 = por %p365, %p366
      %p368 = scmp.ne.s32.totalorder %s357, %s358
      %p369 = scmp.eq.s32.totalorder %s29, 0
      %p370 = por %p368, %p369
      %p371 = scmp.ne.s32.totalorder %s357, %s358
      %p372 = scmp.eq.s32.totalorder %s30, 1
      %p373 = por %p371, %p372
      %p375 = scmp.ne.s32.totalorder %s358, %s374
      %p376 = scmp.eq.s32.totalorder %s30, 0
      %p377 = por %p375, %p376
      %p378 = scmp.le.s32.totalorder 1, %s24
      %p379 = scmp.lt.s32.totalorder %s24, 3
      %p380 = pnand %p378, %p379
      %p381 = pneg %p380
      // Predicated region
      $region9: #{audio_feature_encoder.5} parent=5 // pred_check
        _
      $region10: #{audio_feature_encoder.5} parent=5 // pred_check_branch
        %383 = sbr.rel (%p380) target = $region12
      $region11: #{audio_feature_encoder.5} parent=5 // pred_region
        %s384 = ssub.s32 %s24, 1
        // Predicated region
        $region13: #{audio_feature_encoder.5} parent=11 // pred_check
          %p385 = pneg %p71
        $region14: #{audio_feature_encoder.5} parent=11 // pred_check_branch
          %387 = sbr.rel (%p385) target = $region16
        $region15: #{audio_feature_encoder.5} parent=11 // pred_region
          _
        $region16: #{audio_feature_encoder.5} parent=11 // pred_fallthru
          _
        // Predicated region
        $region17: #{audio_feature_encoder.5} parent=11 // pred_check
          %p388 = pneg %p92
        $region18: #{audio_feature_encoder.5} parent=11 // pred_check_branch
          %390 = sbr.rel (%p388) target = $region20
        $region19: #{audio_feature_encoder.5} parent=11 // pred_region
          _
        $region20: #{audio_feature_encoder.5} parent=11 // pred_fallthru
          _
        // Predicated region
        $region21: #{audio_feature_encoder.5} parent=11 // pred_check
          %p391 = pneg %p113
        $region22: #{audio_feature_encoder.5} parent=11 // pred_check_branch
          %393 = sbr.rel (%p391) target = $region24
        $region23: #{audio_feature_encoder.5} parent=11 // pred_region
          _
        $region24: #{audio_feature_encoder.5} parent=11 // pred_fallthru
          _
        // Predicated region
        $region25: #{audio_feature_encoder.5} parent=11 // pred_check
          %p394 = pneg %p134
        $region26: #{audio_feature_encoder.5} parent=11 // pred_check_branch
          %396 = sbr.rel (%p394) target = $region28
        $region27: #{audio_feature_encoder.5} parent=11 // pred_region
          _
        $region28: #{audio_feature_encoder.5} parent=11 // pred_fallthru
          _
        // Predicated region
        $region29: #{audio_feature_encoder.5} parent=11 // pred_check
          %p397 = pneg %p155
        $region30: #{audio_feature_encoder.5} parent=11 // pred_check_branch
          %399 = sbr.rel (%p397) target = $region32
        $region31: #{audio_feature_encoder.5} parent=11 // pred_region
          _
        $region32: #{audio_feature_encoder.5} parent=11 // pred_fallthru
          _
        // Predicated region
        $region33: #{audio_feature_encoder.5} parent=11 // pred_check
          %p400 = pneg %p176
        $region34: #{audio_feature_encoder.5} parent=11 // pred_check_branch
          %402 = sbr.rel (%p400) target = $region36
        $region35: #{audio_feature_encoder.5} parent=11 // pred_region
          _
        $region36: #{audio_feature_encoder.5} parent=11 // pred_fallthru
          _
        // Predicated region
        $region37: #{audio_feature_encoder.5} parent=11 // pred_check
          %p403 = pneg %p197
        $region38: #{audio_feature_encoder.5} parent=11 // pred_check_branch
          %405 = sbr.rel (%p403) target = $region40
        $region39: #{audio_feature_encoder.5} parent=11 // pred_region
          _
        $region40: #{audio_feature_encoder.5} parent=11 // pred_fallthru
          _
        // Predicated region
        $region41: #{audio_feature_encoder.5} parent=11 // pred_check
          %p406 = pneg %p218
        $region42: #{audio_feature_encoder.5} parent=11 // pred_check_branch
          %408 = sbr.rel (%p406) target = $region44
        $region43: #{audio_feature_encoder.5} parent=11 // pred_region
          _
        $region44: #{audio_feature_encoder.5} parent=11 // pred_fallthru
          _
        // Predicated region
        $region45: #{audio_feature_encoder.5} parent=11 // pred_check
          %p409 = pneg %p239
        $region46: #{audio_feature_encoder.5} parent=11 // pred_check_branch
          %411 = sbr.rel (%p409) target = $region48
        $region47: #{audio_feature_encoder.5} parent=11 // pred_region
          _
        $region48: #{audio_feature_encoder.5} parent=11 // pred_fallthru
          _
        // Predicated region
        $region49: #{audio_feature_encoder.5} parent=11 // pred_check
          %p412 = pneg %p260
        $region50: #{audio_feature_encoder.5} parent=11 // pred_check_branch
          %414 = sbr.rel (%p412) target = $region52
        $region51: #{audio_feature_encoder.5} parent=11 // pred_region
          _
        $region52: #{audio_feature_encoder.5} parent=11 // pred_fallthru
          _
        // Predicated region
        $region53: #{audio_feature_encoder.5} parent=11 // pred_check
          %p415 = pneg %p281
        $region54: #{audio_feature_encoder.5} parent=11 // pred_check_branch
          %417 = sbr.rel (%p415) target = $region56
        $region55: #{audio_feature_encoder.5} parent=11 // pred_region
          _
        $region56: #{audio_feature_encoder.5} parent=11 // pred_fallthru
          _
        // Predicated region
        $region57: #{audio_feature_encoder.5} parent=11 // pred_check
          %p418 = pneg %p302
        $region58: #{audio_feature_encoder.5} parent=11 // pred_check_branch
          %420 = sbr.rel (%p418) target = $region60
        $region59: #{audio_feature_encoder.5} parent=11 // pred_region
          _
        $region60: #{audio_feature_encoder.5} parent=11 // pred_fallthru
          _
        // Predicated region
        $region61: #{audio_feature_encoder.5} parent=11 // pred_check
          %p421 = pneg %p323
        $region62: #{audio_feature_encoder.5} parent=11 // pred_check_branch
          %423 = sbr.rel (%p421) target = $region64
        $region63: #{audio_feature_encoder.5} parent=11 // pred_region
          _
        $region64: #{audio_feature_encoder.5} parent=11 // pred_fallthru
          _
        // Predicated region
        $region65: #{audio_feature_encoder.5} parent=11 // pred_check
          %p424 = pneg %p344
        $region66: #{audio_feature_encoder.5} parent=11 // pred_check_branch
          %426 = sbr.rel (%p424) target = $region68
        $region67: #{audio_feature_encoder.5} parent=11 // pred_region
          _
        $region68: #{audio_feature_encoder.5} parent=11 // pred_fallthru
          _
      $region12: #{audio_feature_encoder.5} parent=5 // pred_fallthru
        _
      %p427 = scmp.lt.s32.totalorder %s24, 2
      // Predicated region
      $region69: #{audio_feature_encoder.5} parent=5 // pred_check
        %p428 = pneg %p427
      $region70: #{audio_feature_encoder.5} parent=5 // pred_check_branch
        %430 = sbr.rel (%p428) target = $region72
      $region71: #{audio_feature_encoder.5} parent=5 // pred_region
        // Predicated region
        $region73: #{audio_feature_encoder.5} parent=71 // pred_check
          %p431 = pneg %p44
        $region74: #{audio_feature_encoder.5} parent=71 // pred_check_branch
          %433 = sbr.rel (%p431) target = $region76
        $region75: #{audio_feature_encoder.5} parent=71 // pred_region
          %p434 = scmp.lt.s32.totalorder %s24, 1
          %s435 = scalar_select %p434, %s24, 1
          %s436 = smul.addr %s435, 4
          %s437 = scalar_lea.vmem %s0, %s436
        $region76: #{audio_feature_encoder.5} parent=71 // pred_fallthru
          _
      $region72: #{audio_feature_encoder.5} parent=5 // pred_fallthru
        _
      %p438 = scmp.le.s32.totalorder 1, %s24
      %p439 = scmp.lt.s32.totalorder %s24, 3
      %p440 = pnand %p438, %p439
      %p441 = pneg %p440
      // Predicated region
      $region77: #{audio_feature_encoder.5} parent=5 // pred_check
        _
      $region78: #{audio_feature_encoder.5} parent=5 // pred_check_branch
        %443 = sbr.rel (%p440) target = $region80
      $region79: #{audio_feature_encoder.5} parent=5 // pred_region
        %s444 = ssub.s32 %s24, 1
        %p445 = scmp.lt.s32.totalorder %s29, 1
        %s446 = scalar_select %p445, %s29, 1
        %s447 = smul.addr %s446, 4
        %s448 = scalar_lea.vmem %s0, %s447
        %p449 = pneg %p50
        %p450 = pneg %p47
        %p451 = pneg %p71
        %p452 = pneg %p68
        %p453 = pneg %p92
        %p454 = pneg %p89
        %p455 = pneg %p113
        %p456 = pneg %p110
        %p457 = pneg %p134
        %p458 = pneg %p131
        %p459 = pneg %p155
        %p460 = pneg %p152
        %p461 = pneg %p176
        %p462 = pneg %p173
        %p463 = pneg %p197
        %p464 = pneg %p194
        %p465 = pneg %p218
        %p466 = pneg %p215
        %p467 = pneg %p239
        %p468 = pneg %p236
        %p469 = pneg %p260
        %p470 = pneg %p257
        %p471 = pneg %p281
        %p472 = pneg %p278
        %p473 = pneg %p302
        %p474 = pneg %p299
        %p475 = pneg %p323
        %p476 = pneg %p320
        %p477 = pneg %p344
        %p478 = pneg %p341
        %p479 = pneg %p370
        %p480 = pneg %p367
        %s481 = sand.u32 %s357, 1
        %s482 = scalar_lea.sflag [#allocation3], %s481
        %s483 = sand.u32 %s357, 1
        %s484 = scalar_lea.vmem [#allocation2], %s483
        %p485 = scmp.lt.s32.totalorder %s29, 1
        %s486 = scalar_select %p485, %s29, 1
        %s487 = smul.addr %s486, 4
        %s488 = scalar_lea.vmem %s0, %s487
        %v491 = vld [vmem:[%s488] sm:$0xf]
        %v492 = vunpack.c.l.bf16 %v491
        %v493 = vld [vmem:[%s1] sm:$0xff]
        %v494 = vld [vmem:[%s1 + $0x8] sm:$0xf]
        %v495 = vld [vmem:[%s1 + $0xc] sm:$0xff]
        %v496 = vld [vmem:[%s1 + $0x14] sm:$0xf]
        %v497 = vld [vmem:[%s1 + $0x18] sm:$0xff]
        %v498 = vld [vmem:[%s1 + $0x20] sm:$0xf]
        %v499 = vld [vmem:[%s1 + $0x24] sm:$0xff]
        %v500 = vld [vmem:[%s1 + $0x2c] sm:$0xf]
        %v501 = vld [vmem:[%s1 + $0x30] sm:$0xff]
        %v502 = vld [vmem:[%s1 + $0x38] sm:$0xf]
        %v503 = vld [vmem:[%s1 + $0x3c] sm:$0xff]
        %v504 = vld [vmem:[%s1 + $0x44] sm:$0xf]
        %v505 = vld [vmem:[%s1 + $0x48] sm:$0xff]
        %v506 = vld [vmem:[%s1 + $0x50] sm:$0xf]
        %v507 = vld [vmem:[%s1 + $0x54] sm:$0xff]
        %v508 = vld [vmem:[%s1 + $0x5c] sm:$0xf]
        %v509 = vld [vmem:[%s1 + $0x60] sm:$0xff]
        %v510 = vld [vmem:[%s1 + $0x68] sm:$0xf]
        %v511 = vld [vmem:[%s1 + $0x6c] sm:$0xff]
        %v512 = vld [vmem:[%s1 + $0x74] sm:$0xf]
        %v513 = vld [vmem:[%s1 + $0x78] sm:$0xff]
        %v514 = vld [vmem:[%s1 + $0x80] sm:$0xf]
        %v515 = vld [vmem:[%s1 + $0x84] sm:$0xff]
        %v516 = vld [vmem:[%s1 + $0x8c] sm:$0xf]
        %v517 = vld [vmem:[%s1 + $0x90] sm:$0xff]
        %v518 = vld [vmem:[%s1 + $0x98] sm:$0xf]
        %v519 = vld [vmem:[%s1 + $0x9c] sm:$0xff]
        %v520 = vld [vmem:[%s1 + $0xa4] sm:$0xf]
        %v521 = vld [vmem:[%s1 + $0xa8] sm:$0xff]
        %v522 = vld [vmem:[%s1 + $0xb0] sm:$0xf]
        %v523 = vld [vmem:[%s1 + $0xb4] sm:$0xff]
        %v524 = vld [vmem:[%s1 + $0xbc] sm:$0xf]
        %v525 = vld [vmem:[%s2] sm:$0x7]
        %v526 = vld [vmem:[%s3] sm:$0xf]
        %v527 = vld [vmem:[%s3 + $0x4] sm:$0xf]
        %v528 = vld [vmem:[%s3 + $0x8] sm:$0xf]
        %v529 = vld [vmem:[%s3 + $0xc] sm:$0xf]
        %v530 = vld [vmem:[%s3 + $0x10] sm:$0xf]
        %v531 = vld [vmem:[%s3 + $0x14] sm:$0xf]
        %v532 = vld [vmem:[%s3 + $0x18] sm:$0xf]
        %v533 = vld [vmem:[%s3 + $0x1c] sm:$0xf]
        %v534 = vld [vmem:[%s3 + $0x20] sm:$0xf]
        %v535 = vld [vmem:[%s3 + $0x24] sm:$0xf]
        %v536 = vld [vmem:[%s3 + $0x28] sm:$0xf]
        %v537 = vld [vmem:[%s3 + $0x2c] sm:$0xf]
        %v538 = vld [vmem:[%s3 + $0x30] sm:$0xf]
        %v539 = vld [vmem:[%s3 + $0x34] sm:$0xf]
        %v540 = vld [vmem:[%s3 + $0x38] sm:$0xf]
        %v541 = vld [vmem:[%s3 + $0x3c] sm:$0xf]
        %v542 = vld [vmem:[%s4] sm:$0x1]
        %v543 = vld [vmem:[%s5] sm:$0x1]
        %v544 = vld [vmem:[%s6] sm:$0x1]
        %v545 = vld [vmem:[%s7] sm:$0xff]
        %v546 = vld [vmem:[%s7 + $0x8] sm:$0xff]
        %v547 = vld [vmem:[%s7 + $0x10] sm:$0xff]
        %v548 = vld [vmem:[%s7 + $0x18] sm:$0xff]
        %v549 = vld [vmem:[%s7 + $0x20] sm:$0xff]
        %v550 = vld [vmem:[%s7 + $0x28] sm:$0xff]
        %v551 = vld [vmem:[%s7 + $0x30] sm:$0xff]
        %v552 = vld [vmem:[%s7 + $0x38] sm:$0xff]
        %v553 = vld [vmem:[%s7 + $0x40] sm:$0xff]
        %v554 = vld [vmem:[%s7 + $0x48] sm:$0xff]
        %v555 = vld [vmem:[%s7 + $0x50] sm:$0xff]
        %v556 = vld [vmem:[%s7 + $0x58] sm:$0xff]
        %v557 = vld [vmem:[%s7 + $0x60] sm:$0xff]
        %v558 = vld [vmem:[%s7 + $0x68] sm:$0xff]
        %v559 = vld [vmem:[%s7 + $0x70] sm:$0xff]
        %v560 = vld [vmem:[%s7 + $0x78] sm:$0xff]
        %v561 = vld [vmem:[%s7 + $0x80] sm:$0xff]
        %v562 = vld [vmem:[%s7 + $0x88] sm:$0xff]
        %v563 = vld [vmem:[%s7 + $0x90] sm:$0xff]
        %v564 = vld [vmem:[%s7 + $0x98] sm:$0xff]
        %v565 = vld [vmem:[%s7 + $0xa0] sm:$0xff]
        %v566 = vld [vmem:[%s7 + $0xa8] sm:$0xff]
        %v567 = vld [vmem:[%s7 + $0xb0] sm:$0xff]
        %v568 = vld [vmem:[%s7 + $0xb8] sm:$0xff]
        %v569 = vld [vmem:[%s7 + $0xc0] sm:$0xff]
        %v570 = vld [vmem:[%s7 + $0xc8] sm:$0xff]
        %v571 = vld [vmem:[%s7 + $0xd0] sm:$0xff]
        %v572 = vld [vmem:[%s7 + $0xd8] sm:$0xff]
        %v573 = vld [vmem:[%s7 + $0xe0] sm:$0xff]
        %v574 = vld [vmem:[%s7 + $0xe8] sm:$0xff]
        %v575 = vld [vmem:[%s7 + $0xf0] sm:$0xff]
        %v576 = vld [vmem:[%s7 + $0xf8] sm:$0xff]
        %v577 = vld [vmem:[%s8] sm:$0xf]
        %v578 = vld [vmem:[%s9] sm:$0xf]
        %v579 = vld [vmem:[%s9 + $0x4] sm:$0xf]
        %v580 = vld [vmem:[%s9 + $0x8] sm:$0xf]
        %v581 = vld [vmem:[%s9 + $0xc] sm:$0xf]
        %v582 = vld [vmem:[%s9 + $0x10] sm:$0xf]
        %v583 = vld [vmem:[%s9 + $0x14] sm:$0xf]
        %v584 = vld [vmem:[%s9 + $0x18] sm:$0xf]
        %v585 = vld [vmem:[%s9 + $0x1c] sm:$0xf]
        %v586 = vld [vmem:[%s9 + $0x20] sm:$0xf]
        %v587 = vld [vmem:[%s9 + $0x24] sm:$0xf]
        %v588 = vld [vmem:[%s9 + $0x28] sm:$0xf]
        %v589 = vld [vmem:[%s9 + $0x2c] sm:$0xf]
        %v590 = vld [vmem:[%s9 + $0x30] sm:$0xf]
        %v591 = vld [vmem:[%s9 + $0x34] sm:$0xf]
        %v592 = vld [vmem:[%s9 + $0x38] sm:$0xf]
        %v593 = vld [vmem:[%s9 + $0x3c] sm:$0xf]
        %v594 = vld [vmem:[%s9 + $0x40] sm:$0xf]
        %v595 = vld [vmem:[%s9 + $0x44] sm:$0xf]
        %v596 = vld [vmem:[%s9 + $0x48] sm:$0xf]
        %v597 = vld [vmem:[%s9 + $0x4c] sm:$0xf]
        %v598 = vld [vmem:[%s9 + $0x50] sm:$0xf]
        %v599 = vld [vmem:[%s9 + $0x54] sm:$0xf]
        %v600 = vld [vmem:[%s9 + $0x58] sm:$0xf]
        %v601 = vld [vmem:[%s9 + $0x5c] sm:$0xf]
        %v602 = vld [vmem:[%s9 + $0x60] sm:$0xf]
        %v603 = vld [vmem:[%s9 + $0x64] sm:$0xf]
        %v604 = vld [vmem:[%s9 + $0x68] sm:$0xf]
        %v605 = vld [vmem:[%s9 + $0x6c] sm:$0xf]
        %v606 = vld [vmem:[%s9 + $0x70] sm:$0xf]
        %v607 = vld [vmem:[%s9 + $0x74] sm:$0xf]
        %v608 = vld [vmem:[%s9 + $0x78] sm:$0xf]
        %v609 = vld [vmem:[%s9 + $0x7c] sm:$0xf]
        %v610 = vld [vmem:[%s9 + $0x80] sm:$0xf]
        %v611 = vld [vmem:[%s9 + $0x84] sm:$0xf]
        %v612 = vld [vmem:[%s9 + $0x88] sm:$0xf]
        %v613 = vld [vmem:[%s9 + $0x8c] sm:$0xf]
        %v614 = vld [vmem:[%s9 + $0x90] sm:$0xf]
        %v615 = vld [vmem:[%s9 + $0x94] sm:$0xf]
        %v616 = vld [vmem:[%s9 + $0x98] sm:$0xf]
        %v617 = vld [vmem:[%s9 + $0x9c] sm:$0xf]
        %v618 = vld [vmem:[%s9 + $0xa0] sm:$0xf]
        %v619 = vld [vmem:[%s9 + $0xa4] sm:$0xf]
        %v620 = vld [vmem:[%s9 + $0xa8] sm:$0xf]
        %v621 = vld [vmem:[%s9 + $0xac] sm:$0xf]
        %v622 = vld [vmem:[%s9 + $0xb0] sm:$0xf]
        %v623 = vld [vmem:[%s9 + $0xb4] sm:$0xf]
        %v624 = vld [vmem:[%s9 + $0xb8] sm:$0xf]
        %v625 = vld [vmem:[%s9 + $0xbc] sm:$0xf]
        %v626 = vld [vmem:[%s9 + $0xc0] sm:$0xf]
        %v627 = vld [vmem:[%s9 + $0xc4] sm:$0xf]
        %v628 = vld [vmem:[%s9 + $0xc8] sm:$0xf]
        %v629 = vld [vmem:[%s9 + $0xcc] sm:$0xf]
        %v630 = vld [vmem:[%s9 + $0xd0] sm:$0xf]
        %v631 = vld [vmem:[%s9 + $0xd4] sm:$0xf]
        %v632 = vld [vmem:[%s9 + $0xd8] sm:$0xf]
        %v633 = vld [vmem:[%s9 + $0xdc] sm:$0xf]
        %v634 = vld [vmem:[%s9 + $0xe0] sm:$0xf]
        %v635 = vld [vmem:[%s9 + $0xe4] sm:$0xf]
        %v636 = vld [vmem:[%s9 + $0xe8] sm:$0xf]
        %v637 = vld [vmem:[%s9 + $0xec] sm:$0xf]
        %v638 = vld [vmem:[%s9 + $0xf0] sm:$0xf]
        %v639 = vld [vmem:[%s9 + $0xf4] sm:$0xf]
        %v640 = vld [vmem:[%s9 + $0xf8] sm:$0xf]
        %v641 = vld [vmem:[%s9 + $0xfc] sm:$0xf]
        %v642 = vld [vmem:[%s10] sm:$0x1]
        %v643 = vld [vmem:[%s11] sm:$0x1]
        %v644 = vld [vmem:[%s12] sm:$0x1]
        %v646 = vlaneseq
        %v647 = vshrl.u32 %v646, 7
        %v648 = vsub.s32 0, %v647
        %v649 = vrot.slane %v525, %v648
        %v650 = vlaneseq
        %v651 = vshrl.u32 %v650, 7
        %v652 = vsub.s32 1, %v651
        %v653 = vrot.slane %v525, %v652
        %v654 = vlaneseq
        %v655 = vshrl.u32 %v654, 7
        %v656 = vsub.s32 2, %v655
        %v657 = vrot.slane %v525, %v656
        %v693 = vunpack.c.l.b16 %v493
        %v694 = vunpack.c.h.b16 %v493
        %v695 = vunpack.c.l.b16 %v494
        %v696 = vunpack.c.l.b16 %v495
        %v697 = vunpack.c.h.b16 %v495
        %v698 = vunpack.c.l.b16 %v496
        %v699 = vunpack.c.l.b16 %v497
        %v700 = vunpack.c.h.b16 %v497
        %v701 = vunpack.c.l.b16 %v498
        %v702 = vunpack.c.l.b16 %v499
        %v703 = vunpack.c.h.b16 %v499
        %v704 = vunpack.c.l.b16 %v500
        %v705 = vunpack.c.l.b16 %v501
        %v706 = vunpack.c.h.b16 %v501
        %v707 = vunpack.c.l.b16 %v502
        %v708 = vunpack.c.l.b16 %v503
        %v709 = vunpack.c.h.b16 %v503
        %v710 = vunpack.c.l.b16 %v504
        %v711 = vunpack.c.l.b16 %v505
        %v712 = vunpack.c.h.b16 %v505
        %v713 = vunpack.c.l.b16 %v506
        %v714 = vunpack.c.l.b16 %v507
        %v715 = vunpack.c.h.b16 %v507
        %v716 = vunpack.c.l.b16 %v508
        %v717 = vunpack.c.l.b16 %v509
        %v718 = vunpack.c.h.b16 %v509
        %v719 = vunpack.c.l.b16 %v510
        %v720 = vunpack.c.l.b16 %v511
        %v721 = vunpack.c.h.b16 %v511
        %v722 = vunpack.c.l.b16 %v512
        %v723 = vunpack.c.l.b16 %v513
        %v724 = vunpack.c.h.b16 %v513
        %v725 = vunpack.c.l.b16 %v514
        %v726 = vunpack.c.l.b16 %v515
        %v727 = vunpack.c.h.b16 %v515
        %v728 = vunpack.c.l.b16 %v516
        %v729 = vunpack.c.l.b16 %v517
        %v730 = vunpack.c.h.b16 %v517
        %v731 = vunpack.c.l.b16 %v518
        %v732 = vunpack.c.l.b16 %v519
        %v733 = vunpack.c.h.b16 %v519
        %v734 = vunpack.c.l.b16 %v520
        %v735 = vunpack.c.l.b16 %v521
        %v736 = vunpack.c.h.b16 %v521
        %v737 = vunpack.c.l.b16 %v522
        %v738 = vunpack.c.l.b16 %v523
        %v739 = vunpack.c.h.b16 %v523
        %v740 = vunpack.c.l.b16 %v524
        %v741 = vpack.c.b16 %v696, %v693
        %v742 = vpack.c.b16 %v697, %v694
        %v743 = vpack.c.b16 %v698, %v695
        %v744 = vpack.c.b16 %v702, %v699
        %v745 = vpack.c.b16 %v703, %v700
        %v746 = vpack.c.b16 %v704, %v701
        %v747 = vpack.c.b16 %v708, %v705
        %v748 = vpack.c.b16 %v709, %v706
        %v749 = vpack.c.b16 %v710, %v707
        %v750 = vpack.c.b16 %v714, %v711
        %v751 = vpack.c.b16 %v715, %v712
        %v752 = vpack.c.b16 %v716, %v713
        %v753 = vpack.c.b16 %v720, %v717
        %v754 = vpack.c.b16 %v721, %v718
        %v755 = vpack.c.b16 %v722, %v719
        %v756 = vpack.c.b16 %v726, %v723
        %v757 = vpack.c.b16 %v727, %v724
        %v758 = vpack.c.b16 %v728, %v725
        %v759 = vpack.c.b16 %v732, %v729
        %v760 = vpack.c.b16 %v733, %v730
        %v761 = vpack.c.b16 %v734, %v731
        %v762 = vpack.c.b16 %v738, %v735
        %v763 = vpack.c.b16 %v739, %v736
        %v764 = vpack.c.b16 %v740, %v737
        %789 = vmatprep.subr.bf16.mxu0 %v742
        %790 = vmatpush1.bf16.msra.mxu0 %v741
        %791 = vmatprep.subr.bf16.mxu0 %v745
        %792 = vmatpush1.bf16.msra.mxu0 %v744
        %793 = vmatprep.subr.bf16.mxu0 %v748
        %794 = vmatpush1.bf16.msra.mxu0 %v747
        %795 = vmatprep.subr.bf16.mxu0 %v751
        %796 = vmatpush1.bf16.msra.mxu0 %v750
        %797 = vmatprep.subr.bf16.mxu0 %v754
        %798 = vmatpush1.bf16.msra.mxu0 %v753
        %799 = vmatprep.subr.bf16.mxu0 %v757
        %800 = vmatpush1.bf16.msra.mxu0 %v756
        %801 = vmatprep.subr.bf16.mxu0 %v760
        %802 = vmatpush1.bf16.msra.mxu0 %v759
        %803 = vmatprep.subr.bf16.mxu0 %v763
        %804 = vmatpush1.bf16.msra.mxu0 %v762
        %805 = vmatprep.subr.bf16.mxu0 0
        %806 = vmatpush1.bf16.msra.mxu0 0
        %807 = vmatprep.subr.bf16.mxu0 0
        %808 = vmatpush1.bf16.msra.mxu0 0
        %809 = vmatprep.subr.bf16.mxu0 0
        %810 = vmatpush1.bf16.msra.mxu0 0
        %811 = vmatprep.subr.bf16.mxu0 0
        %812 = vmatpush1.bf16.msra.mxu0 0
        %813 = vmatprep.subr.bf16.mxu0 0
        %814 = vmatpush1.bf16.msra.mxu0 0
        %815 = vmatprep.subr.bf16.mxu0 0
        %816 = vmatpush1.bf16.msra.mxu0 0
        %817 = vmatprep.subr.bf16.mxu0 0
        %818 = vmatpush1.bf16.msra.mxu0 0
        %819 = vmatprep.subr.bf16.mxu0 0
        %820 = vmatpush1.bf16.msra.mxu0 0
        %821 = vmatprep.mubr.bf16.mxu0 0
        %822 = vmatmul.mubr.bf16.gmra.mrb[0].mxu0 %v491
        %v823 = vpop.f32.mrb[0].mxu0
        %v824 = vadd.f32 %v649, %v823
        %v825 = vpop.f32.mrb[0].mxu0
        %v826 = vadd.f32 %v653, %v825
        %v827 = vpop.f32.mrb[0].mxu0
        %v828 = vpop.f32.mrb[0].mxu0
        %829 = vdwg.mxu0
        %830 = vmatprep.subr.bf16.mxu0 0
        %831 = vmatpush1.bf16.msra.mxu0 %v743
        %832 = vmatprep.subr.bf16.mxu0 0
        %833 = vmatpush1.bf16.msra.mxu0 %v746
        %834 = vmatprep.subr.bf16.mxu0 0
        %835 = vmatpush1.bf16.msra.mxu0 %v749
        %836 = vmatprep.subr.bf16.mxu0 0
        %837 = vmatpush1.bf16.msra.mxu0 %v752
        %838 = vmatprep.subr.bf16.mxu0 0
        %839 = vmatpush1.bf16.msra.mxu0 %v755
        %840 = vmatprep.subr.bf16.mxu0 0
        %841 = vmatpush1.bf16.msra.mxu0 %v758
        %842 = vmatprep.subr.bf16.mxu0 0
        %843 = vmatpush1.bf16.msra.mxu0 %v761
        %844 = vmatprep.subr.bf16.mxu0 0
        %845 = vmatpush1.bf16.msra.mxu0 %v764
        %846 = vmatprep.subr.bf16.mxu0 0
        %847 = vmatpush1.bf16.msra.mxu0 0
        %848 = vmatprep.subr.bf16.mxu0 0
        %849 = vmatpush1.bf16.msra.mxu0 0
        %850 = vmatprep.subr.bf16.mxu0 0
        %851 = vmatpush1.bf16.msra.mxu0 0
        %852 = vmatprep.subr.bf16.mxu0 0
        %853 = vmatpush1.bf16.msra.mxu0 0
        %854 = vmatprep.subr.bf16.mxu0 0
        %855 = vmatpush1.bf16.msra.mxu0 0
        %856 = vmatprep.subr.bf16.mxu0 0
        %857 = vmatpush1.bf16.msra.mxu0 0
        %858 = vmatprep.subr.bf16.mxu0 0
        %859 = vmatpush1.bf16.msra.mxu0 0
        %860 = vmatprep.subr.bf16.mxu0 0
        %861 = vmatpush1.bf16.msra.mxu0 0
        %862 = vmatprep.mubr.bf16.mxu0 0
        %863 = vmatmul.mubr.bf16.gmra.mrb[0].mxu0 %v491
        %v864 = vpop.f32.mrb[0].mxu0
        %v865 = vadd.f32 %v657, %v864
        %v866 = vpop.f32.mrb[0].mxu0
        %v867 = vpop.f32.mrb[0].mxu0
        %v868 = vpop.f32.mrb[0].mxu0
        %869 = vdwg.mxu0
        %v870 = vpack.c.bf16 %v824, %v824
        %v871 = vpack.c.bf16 %v826, %v826
        %v872 = vpack.c.bf16 %v865, %v865
        %873 = vxpose.xlu0.c.b16.start [1/8] %v870, 128
        %874 = vxpose.xlu0.c.b16.cont [2/8] 0, 128
        %875 = vxpose.xlu0.c.b16.cont [3/8] 0, 128
        %876 = vxpose.xlu0.c.b16.cont [4/8] 0, 128
        %877 = vxpose.xlu0.c.b16.cont [5/8] 0, 128
        %878 = vxpose.xlu0.c.b16.cont [6/8] 0, 128
        %879 = vxpose.xlu0.c.b16.cont [7/8] 0, 128
        %880 = vxpose.xlu0.c.b16.end [8/8] 0, 128
        %v881 = vpop.trf.xlu0
        %v882 = vpop.trf.xlu0
        %v883 = vpop.trf.xlu0
        %v884 = vpop.trf.xlu0
        %v885 = vpop.trf.xlu0
        %v886 = vpop.trf.xlu0
        %v887 = vpop.trf.xlu0
        %v888 = vpop.trf.xlu0
        %889 = vxpose.xlu0.c.b16.start [1/8] %v871, 128
        %890 = vxpose.xlu0.c.b16.cont [2/8] 0, 128
        %891 = vxpose.xlu0.c.b16.cont [3/8] 0, 128
        %892 = vxpose.xlu0.c.b16.cont [4/8] 0, 128
        %893 = vxpose.xlu0.c.b16.cont [5/8] 0, 128
        %894 = vxpose.xlu0.c.b16.cont [6/8] 0, 128
        %895 = vxpose.xlu0.c.b16.cont [7/8] 0, 128
        %896 = vxpose.xlu0.c.b16.end [8/8] 0, 128
        %v897 = vpop.trf.xlu0
        %v898 = vpop.trf.xlu0
        %v899 = vpop.trf.xlu0
        %v900 = vpop.trf.xlu0
        %v901 = vpop.trf.xlu0
        %v902 = vpop.trf.xlu0
        %v903 = vpop.trf.xlu0
        %v904 = vpop.trf.xlu0
        %905 = vxpose.xlu0.c.b16.start [1/8] %v872, 128
        %906 = vxpose.xlu0.c.b16.cont [2/8] 0, 128
        %907 = vxpose.xlu0.c.b16.cont [3/8] 0, 128
        %908 = vxpose.xlu0.c.b16.cont [4/8] 0, 128
        %909 = vxpose.xlu0.c.b16.cont [5/8] 0, 128
        %910 = vxpose.xlu0.c.b16.cont [6/8] 0, 128
        %911 = vxpose.xlu0.c.b16.cont [7/8] 0, 128
        %912 = vxpose.xlu0.c.b16.end [8/8] 0, 128
        %v913 = vpop.trf.xlu0
        %v914 = vpop.trf.xlu0
        %v915 = vpop.trf.xlu0
        %v916 = vpop.trf.xlu0
        %v917 = vpop.trf.xlu0
        %v918 = vpop.trf.xlu0
        %v919 = vpop.trf.xlu0
        %v920 = vpop.trf.xlu0
        %v921 = vmul.bf16 %v881, 1048592000
        %v922 = vmul.bf16 %v882, 1048592000
        %v923 = vmul.bf16 %v883, 1048592000
        %v924 = vmul.bf16 %v884, 1048592000
        %v925 = vmul.bf16 %v885, 1048592000
        %v926 = vmul.bf16 %v886, 1048592000
        %v927 = vmul.bf16 %v887, 1048592000
        %v928 = vmul.bf16 %v888, 1048592000
        %929 = vxpose.xlu0.c.b16.start [1/8] %v921, 128
        %930 = vxpose.xlu0.c.b16.cont [2/8] 0, 128
        %931 = vxpose.xlu0.c.b16.cont [3/8] 0, 128
        %932 = vxpose.xlu0.c.b16.cont [4/8] 0, 128
        %933 = vxpose.xlu0.c.b16.cont [5/8] 0, 128
        %934 = vxpose.xlu0.c.b16.cont [6/8] 0, 128
        %935 = vxpose.xlu0.c.b16.cont [7/8] 0, 128
        %936 = vxpose.xlu0.c.b16.end [8/8] 0, 128
        %v937 = vpop.trf.xlu0
        %v938 = vpop.trf.xlu0
        %v939 = vpop.trf.xlu0
        %v940 = vpop.trf.xlu0
        %v941 = vpop.trf.xlu0
        %v942 = vpop.trf.xlu0
        %v943 = vpop.trf.xlu0
        %v944 = vpop.trf.xlu0
        %945 = vxpose.xlu0.c.b16.start [1/8] %v922, 128
        %946 = vxpose.xlu0.c.b16.cont [2/8] 0, 128
        %947 = vxpose.xlu0.c.b16.cont [3/8] 0, 128
        %948 = vxpose.xlu0.c.b16.cont [4/8] 0, 128
        %949 = vxpose.xlu0.c.b16.cont [5/8] 0, 128
        %950 = vxpose.xlu0.c.b16.cont [6/8] 0, 128
        %951 = vxpose.xlu0.c.b16.cont [7/8] 0, 128
        %952 = vxpose.xlu0.c.b16.end [8/8] 0, 128
        %v953 = vpop.trf.xlu0
        %v954 = vpop.trf.xlu0
        %v955 = vpop.trf.xlu0
        %v956 = vpop.trf.xlu0
        %v957 = vpop.trf.xlu0
        %v958 = vpop.trf.xlu0
        %v959 = vpop.trf.xlu0
        %v960 = vpop.trf.xlu0
        %961 = vxpose.xlu0.c.b16.start [1/8] %v923, 128
        %962 = vxpose.xlu0.c.b16.cont [2/8] 0, 128
        %963 = vxpose.xlu0.c.b16.cont [3/8] 0, 128
        %964 = vxpose.xlu0.c.b16.cont [4/8] 0, 128
        %965 = vxpose.xlu0.c.b16.cont [5/8] 0, 128
        %966 = vxpose.xlu0.c.b16.cont [6/8] 0, 128
        %967 = vxpose.xlu0.c.b16.cont [7/8] 0, 128
        %968 = vxpose.xlu0.c.b16.end [8/8] 0, 128
        %v969 = vpop.trf.xlu0
        %v970 = vpop.trf.xlu0
        %v971 = vpop.trf.xlu0
        %v972 = vpop.trf.xlu0
        %v973 = vpop.trf.xlu0
        %v974 = vpop.trf.xlu0
        %v975 = vpop.trf.xlu0
        %v976 = vpop.trf.xlu0
        %977 = vxpose.xlu0.c.b16.start [1/8] %v924, 128
        %978 = vxpose.xlu0.c.b16.cont [2/8] 0, 128
        %979 = vxpose.xlu0.c.b16.cont [3/8] 0, 128
        %980 = vxpose.xlu0.c.b16.cont [4/8] 0, 128
        %981 = vxpose.xlu0.c.b16.cont [5/8] 0, 128
        %982 = vxpose.xlu0.c.b16.cont [6/8] 0, 128
        %983 = vxpose.xlu0.c.b16.cont [7/8] 0, 128
        %984 = vxpose.xlu0.c.b16.end [8/8] 0, 128
        %v985 = vpop.trf.xlu0
        %v986 = vpop.trf.xlu0
        %v987 = vpop.trf.xlu0
        %v988 = vpop.trf.xlu0
        %v989 = vpop.trf.xlu0
        %v990 = vpop.trf.xlu0
        %v991 = vpop.trf.xlu0
        %v992 = vpop.trf.xlu0
        %993 = vxpose.xlu0.c.b16.start [1/8] %v925, 128
        %994 = vxpose.xlu0.c.b16.cont [2/8] 0, 128
        %995 = vxpose.xlu0.c.b16.cont [3/8] 0, 128
        %996 = vxpose.xlu0.c.b16.cont [4/8] 0, 128
        %997 = vxpose.xlu0.c.b16.cont [5/8] 0, 128
        %998 = vxpose.xlu0.c.b16.cont [6/8] 0, 128
        %999 = vxpose.xlu0.c.b16.cont [7/8] 0, 128
        %1000 = vxpose.xlu0.c.b16.end [8/8] 0, 128
        %v1001 = vpop.trf.xlu0
        %v1002 = vpop.trf.xlu0
        %v1003 = vpop.trf.xlu0
        %v1004 = vpop.trf.xlu0
        %v1005 = vpop.trf.xlu0
        %v1006 = vpop.trf.xlu0
        %v1007 = vpop.trf.xlu0
        %v1008 = vpop.trf.xlu0
        %1009 = vxpose.xlu0.c.b16.start [1/8] %v926, 128
        %1010 = vxpose.xlu0.c.b16.cont [2/8] 0, 128
        %1011 = vxpose.xlu0.c.b16.cont [3/8] 0, 128
        %1012 = vxpose.xlu0.c.b16.cont [4/8] 0, 128
        %1013 = vxpose.xlu0.c.b16.cont [5/8] 0, 128
        %1014 = vxpose.xlu0.c.b16.cont [6/8] 0, 128
        %1015 = vxpose.xlu0.c.b16.cont [7/8] 0, 128
        %1016 = vxpose.xlu0.c.b16.end [8/8] 0, 128
        %v1017 = vpop.trf.xlu0
        %v1018 = vpop.trf.xlu0
        %v1019 = vpop.trf.xlu0
        %v1020 = vpop.trf.xlu0
        %v1021 = vpop.trf.xlu0
        %v1022 = vpop.trf.xlu0
        %v1023 = vpop.trf.xlu0
        %v1024 = vpop.trf.xlu0
        %1025 = vxpose.xlu0.c.b16.start [1/8] %v927, 128
        %1026 = vxpose.xlu0.c.b16.cont [2/8] 0, 128
        %1027 = vxpose.xlu0.c.b16.cont [3/8] 0, 128
        %1028 = vxpose.xlu0.c.b16.cont [4/8] 0, 128
        %1029 = vxpose.xlu0.c.b16.cont [5/8] 0, 128
        %1030 = vxpose.xlu0.c.b16.cont [6/8] 0, 128
        %1031 = vxpose.xlu0.c.b16.cont [7/8] 0, 128
        %1032 = vxpose.xlu0.c.b16.end [8/8] 0, 128
        %v1033 = vpop.trf.xlu0
        %v1034 = vpop.trf.xlu0
        %v1035 = vpop.trf.xlu0
        %v1036 = vpop.trf.xlu0
        %v1037 = vpop.trf.xlu0
        %v1038 = vpop.trf.xlu0
        %v1039 = vpop.trf.xlu0
        %v1040 = vpop.trf.xlu0
        %1041 = vxpose.xlu0.c.b16.start [1/8] %v928, 128
        %1042 = vxpose.xlu0.c.b16.cont [2/8] 0, 128
        %1043 = vxpose.xlu0.c.b16.cont [3/8] 0, 128
        %1044 = vxpose.xlu0.c.b16.cont [4/8] 0, 128
        %1045 = vxpose.xlu0.c.b16.cont [5/8] 0, 128
        %1046 = vxpose.xlu0.c.b16.cont [6/8] 0, 128
        %1047 = vxpose.xlu0.c.b16.cont [7/8] 0, 128
        %1048 = vxpose.xlu0.c.b16.end [8/8] 0, 128
        %v1049 = vpop.trf.xlu0
        %v1050 = vpop.trf.xlu0
        %v1051 = vpop.trf.xlu0
        %v1052 = vpop.trf.xlu0
        %v1053 = vpop.trf.xlu0
        %v1054 = vpop.trf.xlu0
        %v1055 = vpop.trf.xlu0
        %v1056 = vpop.trf.xlu0
        %vm1057 = vcmask 130048
        %v1059 = vsel %vm1057, %v937, 0
        %1061 = vmatprep.subr.bf16.mxu0 0
        %1062 = vmatpush1.bf16.msra.mxu0 %v897
        %1063 = vmatprep.subr.bf16.mxu0 0
        %1064 = vmatpush1.bf16.msra.mxu0 0
        %1065 = vmatprep.subr.bf16.mxu0 0
        %1066 = vmatpush1.bf16.msra.mxu0 0
        %1067 = vmatprep.subr.bf16.mxu0 0
        %1068 = vmatpush1.bf16.msra.mxu0 0
        %1069 = vmatprep.subr.bf16.mxu0 0
        %1070 = vmatpush1.bf16.msra.mxu0 0
        %1071 = vmatprep.subr.bf16.mxu0 0
        %1072 = vmatpush1.bf16.msra.mxu0 0
        %1073 = vmatprep.subr.bf16.mxu0 0
        %1074 = vmatpush1.bf16.msra.mxu0 0
        %1075 = vmatprep.subr.bf16.mxu0 0
        %1076 = vmatpush1.bf16.msra.mxu0 0
        %1077 = vmatprep.subr.bf16.mxu0 0
        %1078 = vmatpush1.bf16.msra.mxu0 0
        %1079 = vmatprep.subr.bf16.mxu0 0
        %1080 = vmatpush1.bf16.msra.mxu0 0
        %1081 = vmatprep.subr.bf16.mxu0 0
        %1082 = vmatpush1.bf16.msra.mxu0 0
        %1083 = vmatprep.subr.bf16.mxu0 0
        %1084 = vmatpush1.bf16.msra.mxu0 0
        %1085 = vmatprep.subr.bf16.mxu0 0
        %1086 = vmatpush1.bf16.msra.mxu0 0
        %1087 = vmatprep.subr.bf16.mxu0 0
        %1088 = vmatpush1.bf16.msra.mxu0 0
        %1089 = vmatprep.subr.bf16.mxu0 0
        %1090 = vmatpush1.bf16.msra.mxu0 0
        %1091 = vmatprep.subr.bf16.mxu0 0
        %1092 = vmatpush1.bf16.msra.mxu0 0
        %1093 = vmatprep.mubr.bf16.mxu0 0
        %1094 = vmatmul.mubr.bf16.gmra.mrb[0].mxu0 %v1059
        %v1095 = vpop.f32.mrb[0].mxu0
        %v1096 = vadd.f32 0.0, %v1095
        %v1097 = vpop.f32.mrb[0].mxu0
        %v1098 = vpop.f32.mrb[0].mxu0
        %v1099 = vpop.f32.mrb[0].mxu0
        %1100 = vdwg.mxu0
        %v1102 = vsel %vm1057, %v953, 0
        %1104 = vmatprep.subr.bf16.mxu0 0
        %1105 = vmatpush1.bf16.msra.mxu0 %v898
        %1106 = vmatprep.subr.bf16.mxu0 0
        %1107 = vmatpush1.bf16.msra.mxu0 0
        %1108 = vmatprep.subr.bf16.mxu0 0
        %1109 = vmatpush1.bf16.msra.mxu0 0
        %1110 = vmatprep.subr.bf16.mxu0 0
        %1111 = vmatpush1.bf16.msra.mxu0 0
        %1112 = vmatprep.subr.bf16.mxu0 0
        %1113 = vmatpush1.bf16.msra.mxu0 0
        %1114 = vmatprep.subr.bf16.mxu0 0
        %1115 = vmatpush1.bf16.msra.mxu0 0
        %1116 = vmatprep.subr.bf16.mxu0 0
        %1117 = vmatpush1.bf16.msra.mxu0 0
        %1118 = vmatprep.subr.bf16.mxu0 0
        %1119 = vmatpush1.bf16.msra.mxu0 0
        %1120 = vmatprep.subr.bf16.mxu0 0
        %1121 = vmatpush1.bf16.msra.mxu0 0
        %1122 = vmatprep.subr.bf16.mxu0 0
        %1123 = vmatpush1.bf16.msra.mxu0 0
        %1124 = vmatprep.subr.bf16.mxu0 0
        %1125 = vmatpush1.bf16.msra.mxu0 0
        %1126 = vmatprep.subr.bf16.mxu0 0
        %1127 = vmatpush1.bf16.msra.mxu0 0
        %1128 = vmatprep.subr.bf16.mxu0 0
        %1129 = vmatpush1.bf16.msra.mxu0 0
        %1130 = vmatprep.subr.bf16.mxu0 0
        %1131 = vmatpush1.bf16.msra.mxu0 0
        %1132 = vmatprep.subr.bf16.mxu0 0
        %1133 = vmatpush1.bf16.msra.mxu0 0
        %1134 = vmatprep.subr.bf16.mxu0 0
        %1135 = vmatpush1.bf16.msra.mxu0 0
        %1136 = vmatprep.mubr.bf16.mxu0 0
        %1137 = vmatmul.mubr.bf16.gmra.mrb[0].mxu0 %v1102
        %v1138 = vpop.f32.mrb[0].mxu0
        %v1139 = vadd.f32 0.0, %v1138
        %v1140 = vpop.f32.mrb[0].mxu0
        %v1141 = vpop.f32.mrb[0].mxu0
        %v1142 = vpop.f32.mrb[0].mxu0
        %1143 = vdwg.mxu0
        %v1145 = vsel %vm1057, %v969, 0
        %1147 = vmatprep.subr.bf16.mxu0 0
        %1148 = vmatpush1.bf16.msra.mxu0 %v899
        %1149 = vmatprep.subr.bf16.mxu0 0
        %1150 = vmatpush1.bf16.msra.mxu0 0
        %1151 = vmatprep.subr.bf16.mxu0 0
        %1152 = vmatpush1.bf16.msra.mxu0 0
        %1153 = vmatprep.subr.bf16.mxu0 0
        %1154 = vmatpush1.bf16.msra.mxu0 0
        %1155 = vmatprep.subr.bf16.mxu0 0
        %1156 = vmatpush1.bf16.msra.mxu0 0
        %1157 = vmatprep.subr.bf16.mxu0 0
        %1158 = vmatpush1.bf16.msra.mxu0 0
        %1159 = vmatprep.subr.bf16.mxu0 0
        %1160 = vmatpush1.bf16.msra.mxu0 0
        %1161 = vmatprep.subr.bf16.mxu0 0
        %1162 = vmatpush1.bf16.msra.mxu0 0
        %1163 = vmatprep.subr.bf16.mxu0 0
        %1164 = vmatpush1.bf16.msra.mxu0 0
        %1165 = vmatprep.subr.bf16.mxu0 0
        %1166 = vmatpush1.bf16.msra.mxu0 0
        %1167 = vmatprep.subr.bf16.mxu0 0
        %1168 = vmatpush1.bf16.msra.mxu0 0
        %1169 = vmatprep.subr.bf16.mxu0 0
        %1170 = vmatpush1.bf16.msra.mxu0 0
        %1171 = vmatprep.subr.bf16.mxu0 0
        %1172 = vmatpush1.bf16.msra.mxu0 0
        %1173 = vmatprep.subr.bf16.mxu0 0
        %1174 = vmatpush1.bf16.msra.mxu0 0
        %1175 = vmatprep.subr.bf16.mxu0 0
        %1176 = vmatpush1.bf16.msra.mxu0 0
        %1177 = vmatprep.subr.bf16.mxu0 0
        %1178 = vmatpush1.bf16.msra.mxu0 0
        %1179 = vmatprep.mubr.bf16.mxu0 0
        %1180 = vmatmul.mubr.bf16.gmra.mrb[0].mxu0 %v1145
        %v1181 = vpop.f32.mrb[0].mxu0
        %v1182 = vadd.f32 0.0, %v1181
        %v1183 = vpop.f32.mrb[0].mxu0
        %v1184 = vpop.f32.mrb[0].mxu0
        %v1185 = vpop.f32.mrb[0].mxu0
        %1186 = vdwg.mxu0
        %v1188 = vsel %vm1057, %v985, 0
        %1190 = vmatprep.subr.bf16.mxu0 0
        %1191 = vmatpush1.bf16.msra.mxu0 %v900
        %1192 = vmatprep.subr.bf16.mxu0 0
        %1193 = vmatpush1.bf16.msra.mxu0 0
        %1194 = vmatprep.subr.bf16.mxu0 0
        %1195 = vmatpush1.bf16.msra.mxu0 0
        %1196 = vmatprep.subr.bf16.mxu0 0
        %1197 = vmatpush1.bf16.msra.mxu0 0
        %1198 = vmatprep.subr.bf16.mxu0 0
        %1199 = vmatpush1.bf16.msra.mxu0 0
        %1200 = vmatprep.subr.bf16.mxu0 0
        %1201 = vmatpush1.bf16.msra.mxu0 0
        %1202 = vmatprep.subr.bf16.mxu0 0
        %1203 = vmatpush1.bf16.msra.mxu0 0
        %1204 = vmatprep.subr.bf16.mxu0 0
        %1205 = vmatpush1.bf16.msra.mxu0 0
        %1206 = vmatprep.subr.bf16.mxu0 0
        %1207 = vmatpush1.bf16.msra.mxu0 0
        %1208 = vmatprep.subr.bf16.mxu0 0
        %1209 = vmatpush1.bf16.msra.mxu0 0
        %1210 = vmatprep.subr.bf16.mxu0 0
        %1211 = vmatpush1.bf16.msra.mxu0 0
        %1212 = vmatprep.subr.bf16.mxu0 0
        %1213 = vmatpush1.bf16.msra.mxu0 0
        %1214 = vmatprep.subr.bf16.mxu0 0
        %1215 = vmatpush1.bf16.msra.mxu0 0
        %1216 = vmatprep.subr.bf16.mxu0 0
        %1217 = vmatpush1.bf16.msra.mxu0 0
        %1218 = vmatprep.subr.bf16.mxu0 0
        %1219 = vmatpush1.bf16.msra.mxu0 0
        %1220 = vmatprep.subr.bf16.mxu0 0
        %1221 = vmatpush1.bf16.msra.mxu0 0
        %1222 = vmatprep.mubr.bf16.mxu0 0
        %1223 = vmatmul.mubr.bf16.gmra.mrb[0].mxu0 %v1188
        %v1224 = vpop.f32.mrb[0].mxu0
        %v1225 = vadd.f32 0.0, %v1224
        %v1226 = vpop.f32.mrb[0].mxu0
        %v1227 = vpop.f32.mrb[0].mxu0
        %v1228 = vpop.f32.mrb[0].mxu0
        %1229 = vdwg.mxu0
        %v1231 = vsel %vm1057, %v1001, 0
        %1233 = vmatprep.subr.bf16.mxu0 0
        %1234 = vmatpush1.bf16.msra.mxu0 %v901
        %1235 = vmatprep.subr.bf16.mxu0 0
        %1236 = vmatpush1.bf16.msra.mxu0 0
        %1237 = vmatprep.subr.bf16.mxu0 0
        %1238 = vmatpush1.bf16.msra.mxu0 0
        %1239 = vmatprep.subr.bf16.mxu0 0
        %1240 = vmatpush1.bf16.msra.mxu0 0
        %1241 = vmatprep.subr.bf16.mxu0 0
        %1242 = vmatpush1.bf16.msra.mxu0 0
        %1243 = vmatprep.subr.bf16.mxu0 0
        %1244 = vmatpush1.bf16.msra.mxu0 0
        %1245 = vmatprep.subr.bf16.mxu0 0
        %1246 = vmatpush1.bf16.msra.mxu0 0
        %1247 = vmatprep.subr.bf16.mxu0 0
        %1248 = vmatpush1.bf16.msra.mxu0 0
        %1249 = vmatprep.subr.bf16.mxu0 0
        %1250 = vmatpush1.bf16.msra.mxu0 0
        %1251 = vmatprep.subr.bf16.mxu0 0
        %1252 = vmatpush1.bf16.msra.mxu0 0
        %1253 = vmatprep.subr.bf16.mxu0 0
        %1254 = vmatpush1.bf16.msra.mxu0 0
        %1255 = vmatprep.subr.bf16.mxu0 0
        %1256 = vmatpush1.bf16.msra.mxu0 0
        %1257 = vmatprep.subr.bf16.mxu0 0
        %1258 = vmatpush1.bf16.msra.mxu0 0
        %1259 = vmatprep.subr.bf16.mxu0 0
        %1260 = vmatpush1.bf16.msra.mxu0 0
        %1261 = vmatprep.subr.bf16.mxu0 0
        %1262 = vmatpush1.bf16.msra.mxu0 0
        %1263 = vmatprep.subr.bf16.mxu0 0
        %1264 = vmatpush1.bf16.msra.mxu0 0
        %1265 = vmatprep.mubr.bf16.mxu0 0
        %1266 = vmatmul.mubr.bf16.gmra.mrb[0].mxu0 %v1231
        %v1267 = vpop.f32.mrb[0].mxu0
        %v1268 = vadd.f32 0.0, %v1267
        %v1269 = vpop.f32.mrb[0].mxu0
        %v1270 = vpop.f32.mrb[0].mxu0
        %v1271 = vpop.f32.mrb[0].mxu0
        %1272 = vdwg.mxu0
        %v1274 = vsel %vm1057, %v1017, 0
        %1276 = vmatprep.subr.bf16.mxu0 0
        %1277 = vmatpush1.bf16.msra.mxu0 %v902
        %1278 = vmatprep.subr.bf16.mxu0 0
        %1279 = vmatpush1.bf16.msra.mxu0 0
        %1280 = vmatprep.subr.bf16.mxu0 0
        %1281 = vmatpush1.bf16.msra.mxu0 0
        %1282 = vmatprep.subr.bf16.mxu0 0
        %1283 = vmatpush1.bf16.msra.mxu0 0
        %1284 = vmatprep.subr.bf16.mxu0 0
        %1285 = vmatpush1.bf16.msra.mxu0 0
        %1286 = vmatprep.subr.bf16.mxu0 0
        %1287 = vmatpush1.bf16.msra.mxu0 0
        %1288 = vmatprep.subr.bf16.mxu0 0
        %1289 = vmatpush1.bf16.msra.mxu0 0
        %1290 = vmatprep.subr.bf16.mxu0 0
        %1291 = vmatpush1.bf16.msra.mxu0 0
        %1292 = vmatprep.subr.bf16.mxu0 0
        %1293 = vmatpush1.bf16.msra.mxu0 0
        %1294 = vmatprep.subr.bf16.mxu0 0
        %1295 = vmatpush1.bf16.msra.mxu0 0
        %1296 = vmatprep.subr.bf16.mxu0 0
        %1297 = vmatpush1.bf16.msra.mxu0 0
        %1298 = vmatprep.subr.bf16.mxu0 0
        %1299 = vmatpush1.bf16.msra.mxu0 0
        %1300 = vmatprep.subr.bf16.mxu0 0
        %1301 = vmatpush1.bf16.msra.mxu0 0
        %1302 = vmatprep.subr.bf16.mxu0 0
        %1303 = vmatpush1.bf16.msra.mxu0 0
        %1304 = vmatprep.subr.bf16.mxu0 0
        %1305 = vmatpush1.bf16.msra.mxu0 0
        %1306 = vmatprep.subr.bf16.mxu0 0
        %1307 = vmatpush1.bf16.msra.mxu0 0
        %1308 = vmatprep.mubr.bf16.mxu0 0
        %1309 = vmatmul.mubr.bf16.gmra.mrb[0].mxu0 %v1274
        %v1310 = vpop.f32.mrb[0].mxu0
        %v1311 = vadd.f32 0.0, %v1310
        %v1312 = vpop.f32.mrb[0].mxu0
        %v1313 = vpop.f32.mrb[0].mxu0
        %v1314 = vpop.f32.mrb[0].mxu0
        %1315 = vdwg.mxu0
        %v1317 = vsel %vm1057, %v1033, 0
        %1319 = vmatprep.subr.bf16.mxu0 0
        %1320 = vmatpush1.bf16.msra.mxu0 %v903
        %1321 = vmatprep.subr.bf16.mxu0 0
        %1322 = vmatpush1.bf16.msra.mxu0 0
        %1323 = vmatprep.subr.bf16.mxu0 0
        %1324 = vmatpush1.bf16.msra.mxu0 0
        %1325 = vmatprep.subr.bf16.mxu0 0
        %1326 = vmatpush1.bf16.msra.mxu0 0
        %1327 = vmatprep.subr.bf16.mxu0 0
        %1328 = vmatpush1.bf16.msra.mxu0 0
        %1329 = vmatprep.subr.bf16.mxu0 0
        %1330 = vmatpush1.bf16.msra.mxu0 0
        %1331 = vmatprep.subr.bf16.mxu0 0
        %1332 = vmatpush1.bf16.msra.mxu0 0
        %1333 = vmatprep.subr.bf16.mxu0 0
        %1334 = vmatpush1.bf16.msra.mxu0 0
        %1335 = vmatprep.subr.bf16.mxu0 0
        %1336 = vmatpush1.bf16.msra.mxu0 0
        %1337 = vmatprep.subr.bf16.mxu0 0
        %1338 = vmatpush1.bf16.msra.mxu0 0
        %1339 = vmatprep.subr.bf16.mxu0 0
        %1340 = vmatpush1.bf16.msra.mxu0 0
        %1341 = vmatprep.subr.bf16.mxu0 0
        %1342 = vmatpush1.bf16.msra.mxu0 0
        %1343 = vmatprep.subr.bf16.mxu0 0
        %1344 = vmatpush1.bf16.msra.mxu0 0
        %1345 = vmatprep.subr.bf16.mxu0 0
        %1346 = vmatpush1.bf16.msra.mxu0 0
        %1347 = vmatprep.subr.bf16.mxu0 0
        %1348 = vmatpush1.bf16.msra.mxu0 0
        %1349 = vmatprep.subr.bf16.mxu0 0
        %1350 = vmatpush1.bf16.msra.mxu0 0
        %1351 = vmatprep.mubr.bf16.mxu0 0
        %1352 = vmatmul.mubr.bf16.gmra.mrb[0].mxu0 %v1317
        %v1353 = vpop.f32.mrb[0].mxu0
        %v1354 = vadd.f32 0.0, %v1353
        %v1355 = vpop.f32.mrb[0].mxu0
        %v1356 = vpop.f32.mrb[0].mxu0
        %v1357 = vpop.f32.mrb[0].mxu0
        %1358 = vdwg.mxu0
        %v1360 = vsel %vm1057, %v1049, 0
        %1362 = vmatprep.subr.bf16.mxu0 0
        %1363 = vmatpush1.bf16.msra.mxu0 %v904
        %1364 = vmatprep.subr.bf16.mxu0 0
        %1365 = vmatpush1.bf16.msra.mxu0 0
        %1366 = vmatprep.subr.bf16.mxu0 0
        %1367 = vmatpush1.bf16.msra.mxu0 0
        %1368 = vmatprep.subr.bf16.mxu0 0
        %1369 = vmatpush1.bf16.msra.mxu0 0
        %1370 = vmatprep.subr.bf16.mxu0 0
        %1371 = vmatpush1.bf16.msra.mxu0 0
        %1372 = vmatprep.subr.bf16.mxu0 0
        %1373 = vmatpush1.bf16.msra.mxu0 0
        %1374 = vmatprep.subr.bf16.mxu0 0
        %1375 = vmatpush1.bf16.msra.mxu0 0
        %1376 = vmatprep.subr.bf16.mxu0 0
        %1377 = vmatpush1.bf16.msra.mxu0 0
        %1378 = vmatprep.subr.bf16.mxu0 0
        %1379 = vmatpush1.bf16.msra.mxu0 0
        %1380 = vmatprep.subr.bf16.mxu0 0
        %1381 = vmatpush1.bf16.msra.mxu0 0
        %1382 = vmatprep.subr.bf16.mxu0 0
        %1383 = vmatpush1.bf16.msra.mxu0 0
        %1384 = vmatprep.subr.bf16.mxu0 0
        %1385 = vmatpush1.bf16.msra.mxu0 0
        %1386 = vmatprep.subr.bf16.mxu0 0
        %1387 = vmatpush1.bf16.msra.mxu0 0
        %1388 = vmatprep.subr.bf16.mxu0 0
        %1389 = vmatpush1.bf16.msra.mxu0 0
        %1390 = vmatprep.subr.bf16.mxu0 0
        %1391 = vmatpush1.bf16.msra.mxu0 0
        %1392 = vmatprep.subr.bf16.mxu0 0
        %1393 = vmatpush1.bf16.msra.mxu0 0
        %1394 = vmatprep.mubr.bf16.mxu0 0
        %1395 = vmatmul.mubr.bf16.gmra.mrb[0].mxu0 %v1360
        %v1396 = vpop.f32.mrb[0].mxu0
        %v1397 = vadd.f32 0.0, %v1396
        %v1398 = vpop.f32.mrb[0].mxu0
        %v1399 = vpop.f32.mrb[0].mxu0
        %v1400 = vpop.f32.mrb[0].mxu0
        %1401 = vdwg.mxu0
        %vm1402 = vcmask 64512
        %v1403 = vsel %vm1402, %v1096, -inf
        %1404 = vmax.xlane.f32.xlu0 %v1403
        %v1405 = vpop.xlane.xlu0 %1404
        %v1406 = vsel %vm1402, %v1139, -inf
        %1407 = vmax.xlane.f32.xlu0 %v1406
        %v1408 = vpop.xlane.xlu0 %1407
        %v1409 = vsel %vm1402, %v1182, -inf
        %1410 = vmax.xlane.f32.xlu0 %v1409
        %v1411 = vpop.xlane.xlu0 %1410
        %v1412 = vsel %vm1402, %v1225, -inf
        %1413 = vmax.xlane.f32.xlu0 %v1412
        %v1414 = vpop.xlane.xlu0 %1413
        %v1415 = vsel %vm1402, %v1268, -inf
        %1416 = vmax.xlane.f32.xlu0 %v1415
        %v1417 = vpop.xlane.xlu0 %1416
        %v1418 = vsel %vm1402, %v1311, -inf
        %1419 = vmax.xlane.f32.xlu0 %v1418
        %v1420 = vpop.xlane.xlu0 %1419
        %v1421 = vsel %vm1402, %v1354, -inf
        %1422 = vmax.xlane.f32.xlu0 %v1421
        %v1423 = vpop.xlane.xlu0 %1422
        %v1424 = vsel %vm1402, %v1397, -inf
        %1425 = vmax.xlane.f32.xlu0 %v1424
        %v1426 = vpop.xlane.xlu0 %1425
        %v1427 = vsub.f32 %v1096, %v1405
        %v1428 = vsub.f32 %v1139, %v1408
        %v1429 = vsub.f32 %v1182, %v1411
        %v1430 = vsub.f32 %v1225, %v1414
        %v1431 = vsub.f32 %v1268, %v1417
        %v1432 = vsub.f32 %v1311, %v1420
        %v1433 = vsub.f32 %v1354, %v1423
        %v1434 = vsub.f32 %v1397, %v1426
        %v1435 = vmul.f32 %v1427, 1.442695
        %v1436 = vpow.pop %v1435
        %v1437 = vmul.f32 %v1428, 1.442695
        %v1438 = vpow.pop %v1437
        %v1439 = vmul.f32 %v1429, 1.442695
        %v1440 = vpow.pop %v1439
        %v1441 = vmul.f32 %v1430, 1.442695
        %v1442 = vpow.pop %v1441
        %v1443 = vmul.f32 %v1431, 1.442695
        %v1444 = vpow.pop %v1443
        %v1445 = vmul.f32 %v1432, 1.442695
        %v1446 = vpow.pop %v1445
        %v1447 = vmul.f32 %v1433, 1.442695
        %v1448 = vpow.pop %v1447
        %v1449 = vmul.f32 %v1434, 1.442695
        %v1450 = vpow.pop %v1449
        %v1451 = vsel %vm1402, %v1436, 0.0
        %1452 = vadd.xlane.f32.xlu0 %v1451
        %v1453 = vpop.xlane.xlu0 %1452
        %v1454 = vsel %vm1402, %v1438, 0.0
        %1455 = vadd.xlane.f32.xlu0 %v1454
        %v1456 = vpop.xlane.xlu0 %1455
        %v1457 = vsel %vm1402, %v1440, 0.0
        %1458 = vadd.xlane.f32.xlu0 %v1457
        %v1459 = vpop.xlane.xlu0 %1458
        %v1460 = vsel %vm1402, %v1442, 0.0
        %1461 = vadd.xlane.f32.xlu0 %v1460
        %v1462 = vpop.xlane.xlu0 %1461
        %v1463 = vsel %vm1402, %v1444, 0.0
        %1464 = vadd.xlane.f32.xlu0 %v1463
        %v1465 = vpop.xlane.xlu0 %1464
        %v1466 = vsel %vm1402, %v1446, 0.0
        %1467 = vadd.xlane.f32.xlu0 %v1466
        %v1468 = vpop.xlane.xlu0 %1467
        %v1469 = vsel %vm1402, %v1448, 0.0
        %1470 = vadd.xlane.f32.xlu0 %v1469
        %v1471 = vpop.xlane.xlu0 %1470
        %v1472 = vsel %vm1402, %v1450, 0.0
        %1473 = vadd.xlane.f32.xlu0 %v1472
        %v1474 = vpop.xlane.xlu0 %1473
        %v1475 = vrcp.pop %v1453
        %v1476 = vrcp.pop %v1456
        %v1477 = vrcp.pop %v1459
        %v1478 = vrcp.pop %v1462
        %v1479 = vrcp.pop %v1465
        %v1480 = vrcp.pop %v1468
        %v1481 = vrcp.pop %v1471
        %v1482 = vrcp.pop %v1474
        %v1483 = vmul.f32 %v1436, %v1475
        %v1484 = vmul.f32 %v1438, %v1476
        %v1485 = vmul.f32 %v1440, %v1477
        %v1486 = vmul.f32 %v1442, %v1478
        %v1487 = vmul.f32 %v1444, %v1479
        %v1488 = vmul.f32 %v1446, %v1480
        %v1489 = vmul.f32 %v1448, %v1481
        %v1490 = vmul.f32 %v1450, %v1482
        %v1491 = vpack.c.bf16 %v1483, %v1483
        %v1492 = vpack.c.bf16 %v1484, %v1484
        %v1493 = vpack.c.bf16 %v1485, %v1485
        %v1494 = vpack.c.bf16 %v1486, %v1486
        %v1495 = vpack.c.bf16 %v1487, %v1487
        %v1496 = vpack.c.bf16 %v1488, %v1488
        %v1497 = vpack.c.bf16 %v1489, %v1489
        %v1498 = vpack.c.bf16 %v1490, %v1490
        %v1500 = vsel %vm1402, %v913, 0
        %v1503 = vsel %vm1402, %v1491, 0
        %1505 = vmatprep.subr.bf16.mxu0 0
        %1506 = vmatpush1.bf16.xpose.msra.mxu0 %v1503
        %1507 = vmatprep.subr.bf16.mxu0 0
        %1508 = vmatpush1.bf16.xpose.msra.mxu0 0
        %1509 = vmatprep.subr.bf16.mxu0 0
        %1510 = vmatpush1.bf16.xpose.msra.mxu0 0
        %1511 = vmatprep.subr.bf16.mxu0 0
        %1512 = vmatpush1.bf16.xpose.msra.mxu0 0
        %1513 = vmatprep.subr.bf16.mxu0 0
        %1514 = vmatpush1.bf16.xpose.msra.mxu0 0
        %1515 = vmatprep.subr.bf16.mxu0 0
        %1516 = vmatpush1.bf16.xpose.msra.mxu0 0
        %1517 = vmatprep.subr.bf16.mxu0 0
        %1518 = vmatpush1.bf16.xpose.msra.mxu0 0
        %1519 = vmatprep.subr.bf16.mxu0 0
        %1520 = vmatpush1.bf16.xpose.msra.mxu0 0
        %1521 = vmatprep.subr.bf16.mxu0 0
        %1522 = vmatpush1.bf16.xpose.msra.mxu0 0
        %1523 = vmatprep.subr.bf16.mxu0 0
        %1524 = vmatpush1.bf16.xpose.msra.mxu0 0
        %1525 = vmatprep.subr.bf16.mxu0 0
        %1526 = vmatpush1.bf16.xpose.msra.mxu0 0
        %1527 = vmatprep.subr.bf16.mxu0 0
        %1528 = vmatpush1.bf16.xpose.msra.mxu0 0
        %1529 = vmatprep.subr.bf16.mxu0 0
        %1530 = vmatpush1.bf16.xpose.msra.mxu0 0
        %1531 = vmatprep.subr.bf16.mxu0 0
        %1532 = vmatpush1.bf16.xpose.msra.mxu0 0
        %1533 = vmatprep.subr.bf16.mxu0 0
        %1534 = vmatpush1.bf16.xpose.msra.mxu0 0
        %1535 = vmatprep.subr.bf16.mxu0 0
        %1536 = vmatpush1.bf16.xpose.msra.mxu0 0
        %1537 = vmatprep.mubr.bf16.mxu0 0
        %1538 = vmatmul.mubr.bf16.gmra.mrb[0].mxu0 %v1500
        %v1539 = vpop.f32.mrb[0].mxu0
        %v1540 = vadd.f32 0.0, %v1539
        %v1541 = vpop.f32.mrb[0].mxu0
        %v1542 = vpop.f32.mrb[0].mxu0
        %v1543 = vadd.f32 0.0, %v1542
        %v1544 = vpop.f32.mrb[0].mxu0
        %1545 = vdwg.mxu0
        %v1547 = vsel %vm1402, %v914, 0
        %v1550 = vsel %vm1402, %v1492, 0
        %1552 = vmatprep.subr.bf16.mxu0 0
        %1553 = vmatpush1.bf16.xpose.msra.mxu0 %v1550
        %1554 = vmatprep.subr.bf16.mxu0 0
        %1555 = vmatpush1.bf16.xpose.msra.mxu0 0
        %1556 = vmatprep.subr.bf16.mxu0 0
        %1557 = vmatpush1.bf16.xpose.msra.mxu0 0
        %1558 = vmatprep.subr.bf16.mxu0 0
        %1559 = vmatpush1.bf16.xpose.msra.mxu0 0
        %1560 = vmatprep.subr.bf16.mxu0 0
        %1561 = vmatpush1.bf16.xpose.msra.mxu0 0
        %1562 = vmatprep.subr.bf16.mxu0 0
        %1563 = vmatpush1.bf16.xpose.msra.mxu0 0
        %1564 = vmatprep.subr.bf16.mxu0 0
        %1565 = vmatpush1.bf16.xpose.msra.mxu0 0
        %1566 = vmatprep.subr.bf16.mxu0 0
        %1567 = vmatpush1.bf16.xpose.msra.mxu0 0
        %1568 = vmatprep.subr.bf16.mxu0 0
        %1569 = vmatpush1.bf16.xpose.msra.mxu0 0
        %1570 = vmatprep.subr.bf16.mxu0 0
        %1571 = vmatpush1.bf16.xpose.msra.mxu0 0
        %1572 = vmatprep.subr.bf16.mxu0 0
        %1573 = vmatpush1.bf16.xpose.msra.mxu0 0
        %1574 = vmatprep.subr.bf16.mxu0 0
        %1575 = vmatpush1.bf16.xpose.msra.mxu0 0
        %1576 = vmatprep.subr.bf16.mxu0 0
        %1577 = vmatpush1.bf16.xpose.msra.mxu0 0
        %1578 = vmatprep.subr.bf16.mxu0 0
        %1579 = vmatpush1.bf16.xpose.msra.mxu0 0
        %1580 = vmatprep.subr.bf16.mxu0 0
        %1581 = vmatpush1.bf16.xpose.msra.mxu0 0
        %1582 = vmatprep.subr.bf16.mxu0 0
        %1583 = vmatpush1.bf16.xpose.msra.mxu0 0
        %1584 = vmatprep.mubr.bf16.mxu0 0
        %1585 = vmatmul.mubr.bf16.gmra.mrb[0].mxu0 %v1547
        %v1586 = vpop.f32.mrb[0].mxu0
        %v1587 = vadd.f32 0.0, %v1586
        %v1588 = vpop.f32.mrb[0].mxu0
        %v1589 = vpop.f32.mrb[0].mxu0
        %v1590 = vadd.f32 0.0, %v1589
        %v1591 = vpop.f32.mrb[0].mxu0
        %1592 = vdwg.mxu0
        %v1594 = vsel %vm1402, %v915, 0
        %v1597 = vsel %vm1402, %v1493, 0
        %1599 = vmatprep.subr.bf16.mxu0 0
        %1600 = vmatpush1.bf16.xpose.msra.mxu0 %v1597
        %1601 = vmatprep.subr.bf16.mxu0 0
        %1602 = vmatpush1.bf16.xpose.msra.mxu0 0
        %1603 = vmatprep.subr.bf16.mxu0 0
        %1604 = vmatpush1.bf16.xpose.msra.mxu0 0
        %1605 = vmatprep.subr.bf16.mxu0 0
        %1606 = vmatpush1.bf16.xpose.msra.mxu0 0
        %1607 = vmatprep.subr.bf16.mxu0 0
        %1608 = vmatpush1.bf16.xpose.msra.mxu0 0
        %1609 = vmatprep.subr.bf16.mxu0 0
        %1610 = vmatpush1.bf16.xpose.msra.mxu0 0
        %1611 = vmatprep.subr.bf16.mxu0 0
        %1612 = vmatpush1.bf16.xpose.msra.mxu0 0
        %1613 = vmatprep.subr.bf16.mxu0 0
        %1614 = vmatpush1.bf16.xpose.msra.mxu0 0
        %1615 = vmatprep.subr.bf16.mxu0 0
        %1616 = vmatpush1.bf16.xpose.msra.mxu0 0
        %1617 = vmatprep.subr.bf16.mxu0 0
        %1618 = vmatpush1.bf16.xpose.msra.mxu0 0
        %1619 = vmatprep.subr.bf16.mxu0 0
        %1620 = vmatpush1.bf16.xpose.msra.mxu0 0
        %1621 = vmatprep.subr.bf16.mxu0 0
        %1622 = vmatpush1.bf16.xpose.msra.mxu0 0
        %1623 = vmatprep.subr.bf16.mxu0 0
        %1624 = vmatpush1.bf16.xpose.msra.mxu0 0
        %1625 = vmatprep.subr.bf16.mxu0 0
        %1626 = vmatpush1.bf16.xpose.msra.mxu0 0
        %1627 = vmatprep.subr.bf16.mxu0 0
        %1628 = vmatpush1.bf16.xpose.msra.mxu0 0
        %1629 = vmatprep.subr.bf16.mxu0 0
        %1630 = vmatpush1.bf16.xpose.msra.mxu0 0
        %1631 = vmatprep.mubr.bf16.mxu0 0
        %1632 = vmatmul.mubr.bf16.gmra.mrb[0].mxu0 %v1594
        %v1633 = vpop.f32.mrb[0].mxu0
        %v1634 = vadd.f32 0.0, %v1633
        %v1635 = vpop.f32.mrb[0].mxu0
        %v1636 = vpop.f32.mrb[0].mxu0
        %v1637 = vadd.f32 0.0, %v1636
        %v1638 = vpop.f32.mrb[0].mxu0
        %1639 = vdwg.mxu0
        %v1641 = vsel %vm1402, %v916, 0
        %v1644 = vsel %vm1402, %v1494, 0
        %1646 = vmatprep.subr.bf16.mxu0 0
        %1647 = vmatpush1.bf16.xpose.msra.mxu0 %v1644
        %1648 = vmatprep.subr.bf16.mxu0 0
        %1649 = vmatpush1.bf16.xpose.msra.mxu0 0
        %1650 = vmatprep.subr.bf16.mxu0 0
        %1651 = vmatpush1.bf16.xpose.msra.mxu0 0
        %1652 = vmatprep.subr.bf16.mxu0 0
        %1653 = vmatpush1.bf16.xpose.msra.mxu0 0
        %1654 = vmatprep.subr.bf16.mxu0 0
        %1655 = vmatpush1.bf16.xpose.msra.mxu0 0
        %1656 = vmatprep.subr.bf16.mxu0 0
        %1657 = vmatpush1.bf16.xpose.msra.mxu0 0
        %1658 = vmatprep.subr.bf16.mxu0 0
        %1659 = vmatpush1.bf16.xpose.msra.mxu0 0
        %1660 = vmatprep.subr.bf16.mxu0 0
        %1661 = vmatpush1.bf16.xpose.msra.mxu0 0
        %1662 = vmatprep.subr.bf16.mxu0 0
        %1663 = vmatpush1.bf16.xpose.msra.mxu0 0
        %1664 = vmatprep.subr.bf16.mxu0 0
        %1665 = vmatpush1.bf16.xpose.msra.mxu0 0
        %1666 = vmatprep.subr.bf16.mxu0 0
        %1667 = vmatpush1.bf16.xpose.msra.mxu0 0
        %1668 = vmatprep.subr.bf16.mxu0 0
        %1669 = vmatpush1.bf16.xpose.msra.mxu0 0
        %1670 = vmatprep.subr.bf16.mxu0 0
        %1671 = vmatpush1.bf16.xpose.msra.mxu0 0
        %1672 = vmatprep.subr.bf16.mxu0 0
        %1673 = vmatpush1.bf16.xpose.msra.mxu0 0
        %1674 = vmatprep.subr.bf16.mxu0 0
        %1675 = vmatpush1.bf16.xpose.msra.mxu0 0
        %1676 = vmatprep.subr.bf16.mxu0 0
        %1677 = vmatpush1.bf16.xpose.msra.mxu0 0
        %1678 = vmatprep.mubr.bf16.mxu0 0
        %1679 = vmatmul.mubr.bf16.gmra.mrb[0].mxu0 %v1641
        %v1680 = vpop.f32.mrb[0].mxu0
        %v1681 = vadd.f32 0.0, %v1680
        %v1682 = vpop.f32.mrb[0].mxu0
        %v1683 = vpop.f32.mrb[0].mxu0
        %v1684 = vadd.f32 0.0, %v1683
        %v1685 = vpop.f32.mrb[0].mxu0
        %1686 = vdwg.mxu0
        %v1688 = vsel %vm1402, %v917, 0
        %v1691 = vsel %vm1402, %v1495, 0
        %1693 = vmatprep.subr.bf16.mxu0 0
        %1694 = vmatpush1.bf16.xpose.msra.mxu0 %v1691
        %1695 = vmatprep.subr.bf16.mxu0 0
        %1696 = vmatpush1.bf16.xpose.msra.mxu0 0
        %1697 = vmatprep.subr.bf16.mxu0 0
        %1698 = vmatpush1.bf16.xpose.msra.mxu0 0
        %1699 = vmatprep.subr.bf16.mxu0 0
        %1700 = vmatpush1.bf16.xpose.msra.mxu0 0
        %1701 = vmatprep.subr.bf16.mxu0 0
        %1702 = vmatpush1.bf16.xpose.msra.mxu0 0
        %1703 = vmatprep.subr.bf16.mxu0 0
        %1704 = vmatpush1.bf16.xpose.msra.mxu0 0
        %1705 = vmatprep.subr.bf16.mxu0 0
        %1706 = vmatpush1.bf16.xpose.msra.mxu0 0
        %1707 = vmatprep.subr.bf16.mxu0 0
        %1708 = vmatpush1.bf16.xpose.msra.mxu0 0
        %1709 = vmatprep.subr.bf16.mxu0 0
        %1710 = vmatpush1.bf16.xpose.msra.mxu0 0
        %1711 = vmatprep.subr.bf16.mxu0 0
        %1712 = vmatpush1.bf16.xpose.msra.mxu0 0
        %1713 = vmatprep.subr.bf16.mxu0 0
        %1714 = vmatpush1.bf16.xpose.msra.mxu0 0
        %1715 = vmatprep.subr.bf16.mxu0 0
        %1716 = vmatpush1.bf16.xpose.msra.mxu0 0
        %1717 = vmatprep.subr.bf16.mxu0 0
        %1718 = vmatpush1.bf16.xpose.msra.mxu0 0
        %1719 = vmatprep.subr.bf16.mxu0 0
        %1720 = vmatpush1.bf16.xpose.msra.mxu0 0
        %1721 = vmatprep.subr.bf16.mxu0 0
        %1722 = vmatpush1.bf16.xpose.msra.mxu0 0
        %1723 = vmatprep.subr.bf16.mxu0 0
        %1724 = vmatpush1.bf16.xpose.msra.mxu0 0
        %1725 = vmatprep.mubr.bf16.mxu0 0
        %1726 = vmatmul.mubr.bf16.gmra.mrb[0].mxu0 %v1688
        %v1727 = vpop.f32.mrb[0].mxu0
        %v1728 = vadd.f32 0.0, %v1727
        %v1729 = vpop.f32.mrb[0].mxu0
        %v1730 = vpop.f32.mrb[0].mxu0
        %v1731 = vadd.f32 0.0, %v1730
        %v1732 = vpop.f32.mrb[0].mxu0
        %1733 = vdwg.mxu0
        %v1735 = vsel %vm1402, %v918, 0
        %v1738 = vsel %vm1402, %v1496, 0
        %1740 = vmatprep.subr.bf16.mxu0 0
        %1741 = vmatpush1.bf16.xpose.msra.mxu0 %v1738
        %1742 = vmatprep.subr.bf16.mxu0 0
        %1743 = vmatpush1.bf16.xpose.msra.mxu0 0
        %1744 = vmatprep.subr.bf16.mxu0 0
        %1745 = vmatpush1.bf16.xpose.msra.mxu0 0
        %1746 = vmatprep.subr.bf16.mxu0 0
        %1747 = vmatpush1.bf16.xpose.msra.mxu0 0
        %1748 = vmatprep.subr.bf16.mxu0 0
        %1749 = vmatpush1.bf16.xpose.msra.mxu0 0
        %1750 = vmatprep.subr.bf16.mxu0 0
        %1751 = vmatpush1.bf16.xpose.msra.mxu0 0
        %1752 = vmatprep.subr.bf16.mxu0 0
        %1753 = vmatpush1.bf16.xpose.msra.mxu0 0
        %1754 = vmatprep.subr.bf16.mxu0 0
        %1755 = vmatpush1.bf16.xpose.msra.mxu0 0
        %1756 = vmatprep.subr.bf16.mxu0 0
        %1757 = vmatpush1.bf16.xpose.msra.mxu0 0
        %1758 = vmatprep.subr.bf16.mxu0 0
        %1759 = vmatpush1.bf16.xpose.msra.mxu0 0
        %1760 = vmatprep.subr.bf16.mxu0 0
        %1761 = vmatpush1.bf16.xpose.msra.mxu0 0
        %1762 = vmatprep.subr.bf16.mxu0 0
        %1763 = vmatpush1.bf16.xpose.msra.mxu0 0
        %1764 = vmatprep.subr.bf16.mxu0 0
        %1765 = vmatpush1.bf16.xpose.msra.mxu0 0
        %1766 = vmatprep.subr.bf16.mxu0 0
        %1767 = vmatpush1.bf16.xpose.msra.mxu0 0
        %1768 = vmatprep.subr.bf16.mxu0 0
        %1769 = vmatpush1.bf16.xpose.msra.mxu0 0
        %1770 = vmatprep.subr.bf16.mxu0 0
        %1771 = vmatpush1.bf16.xpose.msra.mxu0 0
        %1772 = vmatprep.mubr.bf16.mxu0 0
        %1773 = vmatmul.mubr.bf16.gmra.mrb[0].mxu0 %v1735
        %v1774 = vpop.f32.mrb[0].mxu0
        %v1775 = vadd.f32 0.0, %v1774
        %v1776 = vpop.f32.mrb[0].mxu0
        %v1777 = vpop.f32.mrb[0].mxu0
        %v1778 = vadd.f32 0.0, %v1777
        %v1779 = vpop.f32.mrb[0].mxu0
        %1780 = vdwg.mxu0
        %v1782 = vsel %vm1402, %v919, 0
        %v1785 = vsel %vm1402, %v1497, 0
        %1787 = vmatprep.subr.bf16.mxu0 0
        %1788 = vmatpush1.bf16.xpose.msra.mxu0 %v1785
        %1789 = vmatprep.subr.bf16.mxu0 0
        %1790 = vmatpush1.bf16.xpose.msra.mxu0 0
        %1791 = vmatprep.subr.bf16.mxu0 0
        %1792 = vmatpush1.bf16.xpose.msra.mxu0 0
        %1793 = vmatprep.subr.bf16.mxu0 0
        %1794 = vmatpush1.bf16.xpose.msra.mxu0 0
        %1795 = vmatprep.subr.bf16.mxu0 0
        %1796 = vmatpush1.bf16.xpose.msra.mxu0 0
        %1797 = vmatprep.subr.bf16.mxu0 0
        %1798 = vmatpush1.bf16.xpose.msra.mxu0 0
        %1799 = vmatprep.subr.bf16.mxu0 0
        %1800 = vmatpush1.bf16.xpose.msra.mxu0 0
        %1801 = vmatprep.subr.bf16.mxu0 0
        %1802 = vmatpush1.bf16.xpose.msra.mxu0 0
        %1803 = vmatprep.subr.bf16.mxu0 0
        %1804 = vmatpush1.bf16.xpose.msra.mxu0 0
        %1805 = vmatprep.subr.bf16.mxu0 0
        %1806 = vmatpush1.bf16.xpose.msra.mxu0 0
        %1807 = vmatprep.subr.bf16.mxu0 0
        %1808 = vmatpush1.bf16.xpose.msra.mxu0 0
        %1809 = vmatprep.subr.bf16.mxu0 0
        %1810 = vmatpush1.bf16.xpose.msra.mxu0 0
        %1811 = vmatprep.subr.bf16.mxu0 0
        %1812 = vmatpush1.bf16.xpose.msra.mxu0 0
        %1813 = vmatprep.subr.bf16.mxu0 0
        %1814 = vmatpush1.bf16.xpose.msra.mxu0 0
        %1815 = vmatprep.subr.bf16.mxu0 0
        %1816 = vmatpush1.bf16.xpose.msra.mxu0 0
        %1817 = vmatprep.subr.bf16.mxu0 0
        %1818 = vmatpush1.bf16.xpose.msra.mxu0 0
        %1819 = vmatprep.mubr.bf16.mxu0 0
        %1820 = vmatmul.mubr.bf16.gmra.mrb[0].mxu0 %v1782
        %v1821 = vpop.f32.mrb[0].mxu0
        %v1822 = vadd.f32 0.0, %v1821
        %v1823 = vpop.f32.mrb[0].mxu0
        %v1824 = vpop.f32.mrb[0].mxu0
        %v1825 = vadd.f32 0.0, %v1824
        %v1826 = vpop.f32.mrb[0].mxu0
        %1827 = vdwg.mxu0
        %v1829 = vsel %vm1402, %v920, 0
        %v1832 = vsel %vm1402, %v1498, 0
        %1834 = vmatprep.subr.bf16.mxu0 0
        %1835 = vmatpush1.bf16.xpose.msra.mxu0 %v1832
        %1836 = vmatprep.subr.bf16.mxu0 0
        %1837 = vmatpush1.bf16.xpose.msra.mxu0 0
        %1838 = vmatprep.subr.bf16.mxu0 0
        %1839 = vmatpush1.bf16.xpose.msra.mxu0 0
        %1840 = vmatprep.subr.bf16.mxu0 0
        %1841 = vmatpush1.bf16.xpose.msra.mxu0 0
        %1842 = vmatprep.subr.bf16.mxu0 0
        %1843 = vmatpush1.bf16.xpose.msra.mxu0 0
        %1844 = vmatprep.subr.bf16.mxu0 0
        %1845 = vmatpush1.bf16.xpose.msra.mxu0 0
        %1846 = vmatprep.subr.bf16.mxu0 0
        %1847 = vmatpush1.bf16.xpose.msra.mxu0 0
        %1848 = vmatprep.subr.bf16.mxu0 0
        %1849 = vmatpush1.bf16.xpose.msra.mxu0 0
        %1850 = vmatprep.subr.bf16.mxu0 0
        %1851 = vmatpush1.bf16.xpose.msra.mxu0 0
        %1852 = vmatprep.subr.bf16.mxu0 0
        %1853 = vmatpush1.bf16.xpose.msra.mxu0 0
        %1854 = vmatprep.subr.bf16.mxu0 0
        %1855 = vmatpush1.bf16.xpose.msra.mxu0 0
        %1856 = vmatprep.subr.bf16.mxu0 0
        %1857 = vmatpush1.bf16.xpose.msra.mxu0 0
        %1858 = vmatprep.subr.bf16.mxu0 0
        %1859 = vmatpush1.bf16.xpose.msra.mxu0 0
        %1860 = vmatprep.subr.bf16.mxu0 0
        %1861 = vmatpush1.bf16.xpose.msra.mxu0 0
        %1862 = vmatprep.subr.bf16.mxu0 0
        %1863 = vmatpush1.bf16.xpose.msra.mxu0 0
        %1864 = vmatprep.subr.bf16.mxu0 0
        %1865 = vmatpush1.bf16.xpose.msra.mxu0 0
        %1866 = vmatprep.mubr.bf16.mxu0 0
        %1867 = vmatmul.mubr.bf16.gmra.mrb[0].mxu0 %v1829
        %v1868 = vpop.f32.mrb[0].mxu0
        %v1869 = vadd.f32 0.0, %v1868
        %v1870 = vpop.f32.mrb[0].mxu0
        %v1871 = vpop.f32.mrb[0].mxu0
        %v1872 = vadd.f32 0.0, %v1871
        %v1873 = vpop.f32.mrb[0].mxu0
        %1874 = vdwg.mxu0
        %v1875 = vpack.c.bf16 %v1543, %v1540
        %v1876 = vpack.c.bf16 %v1590, %v1587
        %v1877 = vpack.c.bf16 %v1637, %v1634
        %v1878 = vpack.c.bf16 %v1684, %v1681
        %v1879 = vpack.c.bf16 %v1731, %v1728
        %v1880 = vpack.c.bf16 %v1778, %v1775
        %v1881 = vpack.c.bf16 %v1825, %v1822
        %v1882 = vpack.c.bf16 %v1872, %v1869
        %1883 = vxpose.xlu0.c.b16.start [1/8] %v1875, 128
        %1884 = vxpose.xlu0.c.b16.cont [2/8] %v1876, 128
        %1885 = vxpose.xlu0.c.b16.cont [3/8] %v1877, 128
        %1886 = vxpose.xlu0.c.b16.cont [4/8] %v1878, 128
        %1887 = vxpose.xlu0.c.b16.cont [5/8] %v1879, 128
        %1888 = vxpose.xlu0.c.b16.cont [6/8] %v1880, 128
        %1889 = vxpose.xlu0.c.b16.cont [7/8] %v1881, 128
        %1890 = vxpose.xlu0.c.b16.end [8/8] %v1882, 128
        %v1891 = vpop.trf.xlu0
        %v1892 = vpop.trf.xlu0
        %v1893 = vpop.trf.xlu0
        %v1894 = vpop.trf.xlu0
        %v1895 = vpop.trf.xlu0
        %v1896 = vpop.trf.xlu0
        %v1897 = vpop.trf.xlu0
        %v1898 = vpop.trf.xlu0
        %v1900 = vlaneseq
        %v1901 = vshrl.u32 %v1900, 7
        %v1902 = vsub.s32 0, %v1901
        %v1903 = vrot.slane %v542, %v1902
        %v1921 = vunpack.c.l.b16 %v526
        %v1922 = vunpack.c.l.b16 %v527
        %v1923 = vunpack.c.l.b16 %v528
        %v1924 = vunpack.c.l.b16 %v529
        %v1925 = vunpack.c.l.b16 %v530
        %v1926 = vunpack.c.l.b16 %v531
        %v1927 = vunpack.c.l.b16 %v532
        %v1928 = vunpack.c.l.b16 %v533
        %v1929 = vunpack.c.l.b16 %v534
        %v1930 = vunpack.c.l.b16 %v535
        %v1931 = vunpack.c.l.b16 %v536
        %v1932 = vunpack.c.l.b16 %v537
        %v1933 = vunpack.c.l.b16 %v538
        %v1934 = vunpack.c.l.b16 %v539
        %v1935 = vunpack.c.l.b16 %v540
        %v1936 = vunpack.c.l.b16 %v541
        %v1937 = vpack.c.b16 %v1922, %v1921
        %v1938 = vpack.c.b16 %v1924, %v1923
        %v1939 = vpack.c.b16 %v1926, %v1925
        %v1940 = vpack.c.b16 %v1928, %v1927
        %v1941 = vpack.c.b16 %v1930, %v1929
        %v1942 = vpack.c.b16 %v1932, %v1931
        %v1943 = vpack.c.b16 %v1934, %v1933
        %v1944 = vpack.c.b16 %v1936, %v1935
        %1953 = vmatprep.subr.bf16.mxu0 0
        %1954 = vmatpush1.bf16.msra.mxu0 %v1937
        %1955 = vmatprep.subr.bf16.mxu0 0
        %1956 = vmatpush1.bf16.msra.mxu0 %v1938
        %1957 = vmatprep.subr.bf16.mxu0 0
        %1958 = vmatpush1.bf16.msra.mxu0 %v1939
        %1959 = vmatprep.subr.bf16.mxu0 0
        %1960 = vmatpush1.bf16.msra.mxu0 %v1940
        %1961 = vmatprep.subr.bf16.mxu0 0
        %1962 = vmatpush1.bf16.msra.mxu0 %v1941
        %1963 = vmatprep.subr.bf16.mxu0 0
        %1964 = vmatpush1.bf16.msra.mxu0 %v1942
        %1965 = vmatprep.subr.bf16.mxu0 0
        %1966 = vmatpush1.bf16.msra.mxu0 %v1943
        %1967 = vmatprep.subr.bf16.mxu0 0
        %1968 = vmatpush1.bf16.msra.mxu0 %v1944
        %1969 = vmatprep.subr.bf16.mxu0 0
        %1970 = vmatpush1.bf16.msra.mxu0 0
        %1971 = vmatprep.subr.bf16.mxu0 0
        %1972 = vmatpush1.bf16.msra.mxu0 0
        %1973 = vmatprep.subr.bf16.mxu0 0
        %1974 = vmatpush1.bf16.msra.mxu0 0
        %1975 = vmatprep.subr.bf16.mxu0 0
        %1976 = vmatpush1.bf16.msra.mxu0 0
        %1977 = vmatprep.subr.bf16.mxu0 0
        %1978 = vmatpush1.bf16.msra.mxu0 0
        %1979 = vmatprep.subr.bf16.mxu0 0
        %1980 = vmatpush1.bf16.msra.mxu0 0
        %1981 = vmatprep.subr.bf16.mxu0 0
        %1982 = vmatpush1.bf16.msra.mxu0 0
        %1983 = vmatprep.subr.bf16.mxu0 0
        %1984 = vmatpush1.bf16.msra.mxu0 0
        %1985 = vmatprep.mubr.bf16.mxu0 0
        %1986 = vmatmul.mubr.bf16.gmra.mrb[0].mxu0 %v1891
        %v1987 = vpop.f32.mrb[0].mxu0
        %v1988 = vadd.f32 %v1903, %v1987
        %v1989 = vpop.f32.mrb[0].mxu0
        %v1990 = vpop.f32.mrb[0].mxu0
        %v1991 = vpop.f32.mrb[0].mxu0
        %1992 = vdwg.mxu0
        %v1993 = vadd.f32 %v492, %v1988
        %1994 = vadd.xlane.f32.xlu0 %v1993
        %v1995 = vpop.xlane.xlu0 %1994
        %v1996 = vrcp.pop 128.0
        %v1997 = vmul.f32 %v1995, %v1996
        %v1998 = vsub.f32 %v1993, %v1997
        %v1999 = vmul.f32 %v1998, %v1998
        %2000 = vadd.xlane.f32.xlu0 %v1999
        %v2001 = vpop.xlane.xlu0 %2000
        %v2002 = vmul.f32 %v2001, %v1996
        %v2003 = vadd.f32 %v2002, 1e-05
        %v2004 = vrsqrt.pop %v2003
        %v2005 = vmul.f32 %v1998, %v2004
        %v2007 = vlaneseq
        %v2008 = vshrl.u32 %v2007, 7
        %v2009 = vsub.s32 0, %v2008
        %v2010 = vrot.slane %v543, %v2009
        %v2012 = vmul.f32 %v2005, %v2010
        %v2014 = vlaneseq
        %v2015 = vshrl.u32 %v2014, 7
        %v2016 = vsub.s32 0, %v2015
        %v2017 = vrot.slane %v544, %v2016
        %v2019 = vadd.f32 %v2012, %v2017
        %v2020 = vpack.c.bf16 %v2019, %v2019
        %v2022 = vlaneseq
        %v2023 = vshrl.u32 %v2022, 7
        %v2024 = vsub.s32 0, %v2023
        %v2025 = vrot.slane %v577, %v2024
        %v2026 = vlaneseq
        %v2027 = vshrl.u32 %v2026, 7
        %v2028 = vsub.s32 1, %v2027
        %v2029 = vrot.slane %v577, %v2028
        %v2030 = vlaneseq
        %v2031 = vshrl.u32 %v2030, 7
        %v2032 = vsub.s32 2, %v2031
        %v2033 = vrot.slane %v577, %v2032
        %v2034 = vlaneseq
        %v2035 = vshrl.u32 %v2034, 7
        %v2036 = vsub.s32 3, %v2035
        %v2037 = vrot.slane %v577, %v2036
        %v2074 = vunpack.c.l.b16 %v545
        %v2075 = vunpack.c.h.b16 %v545
        %v2076 = vunpack.c.l.b16 %v546
        %v2077 = vunpack.c.h.b16 %v546
        %v2078 = vunpack.c.l.b16 %v547
        %v2079 = vunpack.c.h.b16 %v547
        %v2080 = vunpack.c.l.b16 %v548
        %v2081 = vunpack.c.h.b16 %v548
        %v2082 = vunpack.c.l.b16 %v549
        %v2083 = vunpack.c.h.b16 %v549
        %v2084 = vunpack.c.l.b16 %v550
        %v2085 = vunpack.c.h.b16 %v550
        %v2086 = vunpack.c.l.b16 %v551
        %v2087 = vunpack.c.h.b16 %v551
        %v2088 = vunpack.c.l.b16 %v552
        %v2089 = vunpack.c.h.b16 %v552
        %v2090 = vunpack.c.l.b16 %v553
        %v2091 = vunpack.c.h.b16 %v553
        %v2092 = vunpack.c.l.b16 %v554
        %v2093 = vunpack.c.h.b16 %v554
        %v2094 = vunpack.c.l.b16 %v555
        %v2095 = vunpack.c.h.b16 %v555
        %v2096 = vunpack.c.l.b16 %v556
        %v2097 = vunpack.c.h.b16 %v556
        %v2098 = vunpack.c.l.b16 %v557
        %v2099 = vunpack.c.h.b16 %v557
        %v2100 = vunpack.c.l.b16 %v558
        %v2101 = vunpack.c.h.b16 %v558
        %v2102 = vunpack.c.l.b16 %v559
        %v2103 = vunpack.c.h.b16 %v559
        %v2104 = vunpack.c.l.b16 %v560
        %v2105 = vunpack.c.h.b16 %v560
        %v2106 = vunpack.c.l.b16 %v561
        %v2107 = vunpack.c.h.b16 %v561
        %v2108 = vunpack.c.l.b16 %v562
        %v2109 = vunpack.c.h.b16 %v562
        %v2110 = vunpack.c.l.b16 %v563
        %v2111 = vunpack.c.h.b16 %v563
        %v2112 = vunpack.c.l.b16 %v564
        %v2113 = vunpack.c.h.b16 %v564
        %v2114 = vunpack.c.l.b16 %v565
        %v2115 = vunpack.c.h.b16 %v565
        %v2116 = vunpack.c.l.b16 %v566
        %v2117 = vunpack.c.h.b16 %v566
        %v2118 = vunpack.c.l.b16 %v567
        %v2119 = vunpack.c.h.b16 %v567
        %v2120 = vunpack.c.l.b16 %v568
        %v2121 = vunpack.c.h.b16 %v568
        %v2122 = vunpack.c.l.b16 %v569
        %v2123 = vunpack.c.h.b16 %v569
        %v2124 = vunpack.c.l.b16 %v570
        %v2125 = vunpack.c.h.b16 %v570
        %v2126 = vunpack.c.l.b16 %v571
        %v2127 = vunpack.c.h.b16 %v571
        %v2128 = vunpack.c.l.b16 %v572
        %v2129 = vunpack.c.h.b16 %v572
        %v2130 = vunpack.c.l.b16 %v573
        %v2131 = vunpack.c.h.b16 %v573
        %v2132 = vunpack.c.l.b16 %v574
        %v2133 = vunpack.c.h.b16 %v574
        %v2134 = vunpack.c.l.b16 %v575
        %v2135 = vunpack.c.h.b16 %v575
        %v2136 = vunpack.c.l.b16 %v576
        %v2137 = vunpack.c.h.b16 %v576
        %v2138 = vpack.c.b16 %v2078, %v2074
        %v2139 = vpack.c.b16 %v2079, %v2075
        %v2140 = vpack.c.b16 %v2080, %v2076
        %v2141 = vpack.c.b16 %v2081, %v2077
        %v2142 = vpack.c.b16 %v2086, %v2082
        %v2143 = vpack.c.b16 %v2087, %v2083
        %v2144 = vpack.c.b16 %v2088, %v2084
        %v2145 = vpack.c.b16 %v2089, %v2085
        %v2146 = vpack.c.b16 %v2094, %v2090
        %v2147 = vpack.c.b16 %v2095, %v2091
        %v2148 = vpack.c.b16 %v2096, %v2092
        %v2149 = vpack.c.b16 %v2097, %v2093
        %v2150 = vpack.c.b16 %v2102, %v2098
        %v2151 = vpack.c.b16 %v2103, %v2099
        %v2152 = vpack.c.b16 %v2104, %v2100
        %v2153 = vpack.c.b16 %v2105, %v2101
        %v2154 = vpack.c.b16 %v2110, %v2106
        %v2155 = vpack.c.b16 %v2111, %v2107
        %v2156 = vpack.c.b16 %v2112, %v2108
        %v2157 = vpack.c.b16 %v2113, %v2109
        %v2158 = vpack.c.b16 %v2118, %v2114
        %v2159 = vpack.c.b16 %v2119, %v2115
        %v2160 = vpack.c.b16 %v2120, %v2116
        %v2161 = vpack.c.b16 %v2121, %v2117
        %v2162 = vpack.c.b16 %v2126, %v2122
        %v2163 = vpack.c.b16 %v2127, %v2123
        %v2164 = vpack.c.b16 %v2128, %v2124
        %v2165 = vpack.c.b16 %v2129, %v2125
        %v2166 = vpack.c.b16 %v2134, %v2130
        %v2167 = vpack.c.b16 %v2135, %v2131
        %v2168 = vpack.c.b16 %v2136, %v2132
        %v2169 = vpack.c.b16 %v2137, %v2133
        %2202 = vmatprep.subr.bf16.mxu0 %v2139
        %2203 = vmatpush1.bf16.msra.mxu0 %v2138
        %2204 = vmatprep.subr.bf16.mxu0 %v2143
        %2205 = vmatpush1.bf16.msra.mxu0 %v2142
        %2206 = vmatprep.subr.bf16.mxu0 %v2147
        %2207 = vmatpush1.bf16.msra.mxu0 %v2146
        %2208 = vmatprep.subr.bf16.mxu0 %v2151
        %2209 = vmatpush1.bf16.msra.mxu0 %v2150
        %2210 = vmatprep.subr.bf16.mxu0 %v2155
        %2211 = vmatpush1.bf16.msra.mxu0 %v2154
        %2212 = vmatprep.subr.bf16.mxu0 %v2159
        %2213 = vmatpush1.bf16.msra.mxu0 %v2158
        %2214 = vmatprep.subr.bf16.mxu0 %v2163
        %2215 = vmatpush1.bf16.msra.mxu0 %v2162
        %2216 = vmatprep.subr.bf16.mxu0 %v2167
        %2217 = vmatpush1.bf16.msra.mxu0 %v2166
        %2218 = vmatprep.subr.bf16.mxu0 0
        %2219 = vmatpush1.bf16.msra.mxu0 0
        %2220 = vmatprep.subr.bf16.mxu0 0
        %2221 = vmatpush1.bf16.msra.mxu0 0
        %2222 = vmatprep.subr.bf16.mxu0 0
        %2223 = vmatpush1.bf16.msra.mxu0 0
        %2224 = vmatprep.subr.bf16.mxu0 0
        %2225 = vmatpush1.bf16.msra.mxu0 0
        %2226 = vmatprep.subr.bf16.mxu0 0
        %2227 = vmatpush1.bf16.msra.mxu0 0
        %2228 = vmatprep.subr.bf16.mxu0 0
        %2229 = vmatpush1.bf16.msra.mxu0 0
        %2230 = vmatprep.subr.bf16.mxu0 0
        %2231 = vmatpush1.bf16.msra.mxu0 0
        %2232 = vmatprep.subr.bf16.mxu0 0
        %2233 = vmatpush1.bf16.msra.mxu0 0
        %2234 = vmatprep.mubr.bf16.mxu0 0
        %2235 = vmatmul.mubr.bf16.gmra.mrb[0].mxu0 %v2020
        %v2236 = vpop.f32.mrb[0].mxu0
        %v2237 = vadd.f32 %v2025, %v2236
        %v2238 = vpop.f32.mrb[0].mxu0
        %v2239 = vadd.f32 %v2029, %v2238
        %v2240 = vpop.f32.mrb[0].mxu0
        %v2241 = vpop.f32.mrb[0].mxu0
        %2242 = vdwg.mxu0
        %2243 = vmatprep.subr.bf16.mxu0 %v2141
        %2244 = vmatpush1.bf16.msra.mxu0 %v2140
        %2245 = vmatprep.subr.bf16.mxu0 %v2145
        %2246 = vmatpush1.bf16.msra.mxu0 %v2144
        %2247 = vmatprep.subr.bf16.mxu0 %v2149
        %2248 = vmatpush1.bf16.msra.mxu0 %v2148
        %2249 = vmatprep.subr.bf16.mxu0 %v2153
        %2250 = vmatpush1.bf16.msra.mxu0 %v2152
        %2251 = vmatprep.subr.bf16.mxu0 %v2157
        %2252 = vmatpush1.bf16.msra.mxu0 %v2156
        %2253 = vmatprep.subr.bf16.mxu0 %v2161
        %2254 = vmatpush1.bf16.msra.mxu0 %v2160
        %2255 = vmatprep.subr.bf16.mxu0 %v2165
        %2256 = vmatpush1.bf16.msra.mxu0 %v2164
        %2257 = vmatprep.subr.bf16.mxu0 %v2169
        %2258 = vmatpush1.bf16.msra.mxu0 %v2168
        %2259 = vmatprep.subr.bf16.mxu0 0
        %2260 = vmatpush1.bf16.msra.mxu0 0
        %2261 = vmatprep.subr.bf16.mxu0 0
        %2262 = vmatpush1.bf16.msra.mxu0 0
        %2263 = vmatprep.subr.bf16.mxu0 0
        %2264 = vmatpush1.bf16.msra.mxu0 0
        %2265 = vmatprep.subr.bf16.mxu0 0
        %2266 = vmatpush1.bf16.msra.mxu0 0
        %2267 = vmatprep.subr.bf16.mxu0 0
        %2268 = vmatpush1.bf16.msra.mxu0 0
        %2269 = vmatprep.subr.bf16.mxu0 0
        %2270 = vmatpush1.bf16.msra.mxu0 0
        %2271 = vmatprep.subr.bf16.mxu0 0
        %2272 = vmatpush1.bf16.msra.mxu0 0
        %2273 = vmatprep.subr.bf16.mxu0 0
        %2274 = vmatpush1.bf16.msra.mxu0 0
        %2275 = vmatprep.mubr.bf16.mxu0 0
        %2276 = vmatmul.mubr.bf16.gmra.mrb[0].mxu0 %v2020
        %v2277 = vpop.f32.mrb[0].mxu0
        %v2278 = vadd.f32 %v2033, %v2277
        %v2279 = vpop.f32.mrb[0].mxu0
        %v2280 = vadd.f32 %v2037, %v2279
        %v2281 = vpop.f32.mrb[0].mxu0
        %v2282 = vpop.f32.mrb[0].mxu0
        %2283 = vdwg.mxu0
        %v2284 = vmax.f32 %v2237, 0.0
        %v2285 = vmax.f32 %v2239, 0.0
        %v2286 = vmax.f32 %v2278, 0.0
        %v2287 = vmax.f32 %v2280, 0.0
        %v2288 = vpack.c.bf16 %v2284, %v2284
        %v2289 = vpack.c.bf16 %v2285, %v2285
        %v2290 = vpack.c.bf16 %v2286, %v2286
        %v2291 = vpack.c.bf16 %v2287, %v2287
        %v2293 = vlaneseq
        %v2294 = vshrl.u32 %v2293, 7
        %v2295 = vsub.s32 0, %v2294
        %v2296 = vrot.slane %v642, %v2295
        %v2362 = vunpack.c.l.b16 %v578
        %v2363 = vunpack.c.l.b16 %v579
        %v2364 = vunpack.c.l.b16 %v580
        %v2365 = vunpack.c.l.b16 %v581
        %v2366 = vunpack.c.l.b16 %v582
        %v2367 = vunpack.c.l.b16 %v583
        %v2368 = vunpack.c.l.b16 %v584
        %v2369 = vunpack.c.l.b16 %v585
        %v2370 = vunpack.c.l.b16 %v586
        %v2371 = vunpack.c.l.b16 %v587
        %v2372 = vunpack.c.l.b16 %v588
        %v2373 = vunpack.c.l.b16 %v589
        %v2374 = vunpack.c.l.b16 %v590
        %v2375 = vunpack.c.l.b16 %v591
        %v2376 = vunpack.c.l.b16 %v592
        %v2377 = vunpack.c.l.b16 %v593
        %v2378 = vunpack.c.l.b16 %v594
        %v2379 = vunpack.c.l.b16 %v595
        %v2380 = vunpack.c.l.b16 %v596
        %v2381 = vunpack.c.l.b16 %v597
        %v2382 = vunpack.c.l.b16 %v598
        %v2383 = vunpack.c.l.b16 %v599
        %v2384 = vunpack.c.l.b16 %v600
        %v2385 = vunpack.c.l.b16 %v601
        %v2386 = vunpack.c.l.b16 %v602
        %v2387 = vunpack.c.l.b16 %v603
        %v2388 = vunpack.c.l.b16 %v604
        %v2389 = vunpack.c.l.b16 %v605
        %v2390 = vunpack.c.l.b16 %v606
        %v2391 = vunpack.c.l.b16 %v607
        %v2392 = vunpack.c.l.b16 %v608
        %v2393 = vunpack.c.l.b16 %v609
        %v2394 = vunpack.c.l.b16 %v610
        %v2395 = vunpack.c.l.b16 %v611
        %v2396 = vunpack.c.l.b16 %v612
        %v2397 = vunpack.c.l.b16 %v613
        %v2398 = vunpack.c.l.b16 %v614
        %v2399 = vunpack.c.l.b16 %v615
        %v2400 = vunpack.c.l.b16 %v616
        %v2401 = vunpack.c.l.b16 %v617
        %v2402 = vunpack.c.l.b16 %v618
        %v2403 = vunpack.c.l.b16 %v619
        %v2404 = vunpack.c.l.b16 %v620
        %v2405 = vunpack.c.l.b16 %v621
        %v2406 = vunpack.c.l.b16 %v622
        %v2407 = vunpack.c.l.b16 %v623
        %v2408 = vunpack.c.l.b16 %v624
        %v2409 = vunpack.c.l.b16 %v625
        %v2410 = vunpack.c.l.b16 %v626
        %v2411 = vunpack.c.l.b16 %v627
        %v2412 = vunpack.c.l.b16 %v628
        %v2413 = vunpack.c.l.b16 %v629
        %v2414 = vunpack.c.l.b16 %v630
        %v2415 = vunpack.c.l.b16 %v631
        %v2416 = vunpack.c.l.b16 %v632
        %v2417 = vunpack.c.l.b16 %v633
        %v2418 = vunpack.c.l.b16 %v634
        %v2419 = vunpack.c.l.b16 %v635
        %v2420 = vunpack.c.l.b16 %v636
        %v2421 = vunpack.c.l.b16 %v637
        %v2422 = vunpack.c.l.b16 %v638
        %v2423 = vunpack.c.l.b16 %v639
        %v2424 = vunpack.c.l.b16 %v640
        %v2425 = vunpack.c.l.b16 %v641
        %v2426 = vpack.c.b16 %v2363, %v2362
        %v2427 = vpack.c.b16 %v2365, %v2364
        %v2428 = vpack.c.b16 %v2367, %v2366
        %v2429 = vpack.c.b16 %v2369, %v2368
        %v2430 = vpack.c.b16 %v2371, %v2370
        %v2431 = vpack.c.b16 %v2373, %v2372
        %v2432 = vpack.c.b16 %v2375, %v2374
        %v2433 = vpack.c.b16 %v2377, %v2376
        %v2434 = vpack.c.b16 %v2379, %v2378
        %v2435 = vpack.c.b16 %v2381, %v2380
        %v2436 = vpack.c.b16 %v2383, %v2382
        %v2437 = vpack.c.b16 %v2385, %v2384
        %v2438 = vpack.c.b16 %v2387, %v2386
        %v2439 = vpack.c.b16 %v2389, %v2388
        %v2440 = vpack.c.b16 %v2391, %v2390
        %v2441 = vpack.c.b16 %v2393, %v2392
        %v2442 = vpack.c.b16 %v2395, %v2394
        %v2443 = vpack.c.b16 %v2397, %v2396
        %v2444 = vpack.c.b16 %v2399, %v2398
        %v2445 = vpack.c.b16 %v2401, %v2400
        %v2446 = vpack.c.b16 %v2403, %v2402
        %v2447 = vpack.c.b16 %v2405, %v2404
        %v2448 = vpack.c.b16 %v2407, %v2406
        %v2449 = vpack.c.b16 %v2409, %v2408
        %v2450 = vpack.c.b16 %v2411, %v2410
        %v2451 = vpack.c.b16 %v2413, %v2412
        %v2452 = vpack.c.b16 %v2415, %v2414
        %v2453 = vpack.c.b16 %v2417, %v2416
        %v2454 = vpack.c.b16 %v2419, %v2418
        %v2455 = vpack.c.b16 %v2421, %v2420
        %v2456 = vpack.c.b16 %v2423, %v2422
        %v2457 = vpack.c.b16 %v2425, %v2424
        %2490 = vmatprep.subr.bf16.mxu0 0
        %2491 = vmatpush1.bf16.msra.mxu0 %v2426
        %2492 = vmatprep.subr.bf16.mxu0 0
        %2493 = vmatpush1.bf16.msra.mxu0 %v2427
        %2494 = vmatprep.subr.bf16.mxu0 0
        %2495 = vmatpush1.bf16.msra.mxu0 %v2428
        %2496 = vmatprep.subr.bf16.mxu0 0
        %2497 = vmatpush1.bf16.msra.mxu0 %v2429
        %2498 = vmatprep.subr.bf16.mxu0 0
        %2499 = vmatpush1.bf16.msra.mxu0 %v2430
        %2500 = vmatprep.subr.bf16.mxu0 0
        %2501 = vmatpush1.bf16.msra.mxu0 %v2431
        %2502 = vmatprep.subr.bf16.mxu0 0
        %2503 = vmatpush1.bf16.msra.mxu0 %v2432
        %2504 = vmatprep.subr.bf16.mxu0 0
        %2505 = vmatpush1.bf16.msra.mxu0 %v2433
        %2506 = vmatprep.subr.bf16.mxu0 0
        %2507 = vmatpush1.bf16.msra.mxu0 %v2434
        %2508 = vmatprep.subr.bf16.mxu0 0
        %2509 = vmatpush1.bf16.msra.mxu0 %v2435
        %2510 = vmatprep.subr.bf16.mxu0 0
        %2511 = vmatpush1.bf16.msra.mxu0 %v2436
        %2512 = vmatprep.subr.bf16.mxu0 0
        %2513 = vmatpush1.bf16.msra.mxu0 %v2437
        %2514 = vmatprep.subr.bf16.mxu0 0
        %2515 = vmatpush1.bf16.msra.mxu0 %v2438
        %2516 = vmatprep.subr.bf16.mxu0 0
        %2517 = vmatpush1.bf16.msra.mxu0 %v2439
        %2518 = vmatprep.subr.bf16.mxu0 0
        %2519 = vmatpush1.bf16.msra.mxu0 %v2440
        %2520 = vmatprep.subr.bf16.mxu0 0
        %2521 = vmatpush1.bf16.msra.mxu0 %v2441
        %2522 = vmatprep.mubr.bf16.mxu0 %v2289
        %2523 = vmatmul.mubr.bf16.gmra.mrb[0].mxu0 %v2288
        %v2524 = vpop.f32.mrb[0].mxu0
        %v2525 = vadd.f32 %v2296, %v2524
        %v2526 = vpop.f32.mrb[0].mxu0
        %v2527 = vpop.f32.mrb[0].mxu0
        %v2528 = vpop.f32.mrb[0].mxu0
        %2529 = vdwg.mxu0
        %2530 = vmatprep.subr.bf16.mxu0 0
        %2531 = vmatpush1.bf16.msra.mxu0 %v2442
        %2532 = vmatprep.subr.bf16.mxu0 0
        %2533 = vmatpush1.bf16.msra.mxu0 %v2443
        %2534 = vmatprep.subr.bf16.mxu0 0
        %2535 = vmatpush1.bf16.msra.mxu0 %v2444
        %2536 = vmatprep.subr.bf16.mxu0 0
        %2537 = vmatpush1.bf16.msra.mxu0 %v2445
        %2538 = vmatprep.subr.bf16.mxu0 0
        %2539 = vmatpush1.bf16.msra.mxu0 %v2446
        %2540 = vmatprep.subr.bf16.mxu0 0
        %2541 = vmatpush1.bf16.msra.mxu0 %v2447
        %2542 = vmatprep.subr.bf16.mxu0 0
        %2543 = vmatpush1.bf16.msra.mxu0 %v2448
        %2544 = vmatprep.subr.bf16.mxu0 0
        %2545 = vmatpush1.bf16.msra.mxu0 %v2449
        %2546 = vmatprep.subr.bf16.mxu0 0
        %2547 = vmatpush1.bf16.msra.mxu0 %v2450
        %2548 = vmatprep.subr.bf16.mxu0 0
        %2549 = vmatpush1.bf16.msra.mxu0 %v2451
        %2550 = vmatprep.subr.bf16.mxu0 0
        %2551 = vmatpush1.bf16.msra.mxu0 %v2452
        %2552 = vmatprep.subr.bf16.mxu0 0
        %2553 = vmatpush1.bf16.msra.mxu0 %v2453
        %2554 = vmatprep.subr.bf16.mxu0 0
        %2555 = vmatpush1.bf16.msra.mxu0 %v2454
        %2556 = vmatprep.subr.bf16.mxu0 0
        %2557 = vmatpush1.bf16.msra.mxu0 %v2455
        %2558 = vmatprep.subr.bf16.mxu0 0
        %2559 = vmatpush1.bf16.msra.mxu0 %v2456
        %2560 = vmatprep.subr.bf16.mxu0 0
        %2561 = vmatpush1.bf16.msra.mxu0 %v2457
        %2562 = vmatprep.mubr.bf16.mxu0 %v2291
        %2563 = vmatmul.mubr.bf16.gmra.mrb[0].mxu0 %v2290
        %v2564 = vpop.f32.mrb[0].mxu0
        %v2565 = vadd.f32 %v2525, %v2564
        %v2566 = vpop.f32.mrb[0].mxu0
        %v2567 = vpop.f32.mrb[0].mxu0
        %v2568 = vpop.f32.mrb[0].mxu0
        %2569 = vdwg.mxu0
        %v2570 = vadd.f32 %v2019, %v2565
        %2571 = vadd.xlane.f32.xlu0 %v2570
        %v2572 = vpop.xlane.xlu0 %2571
        %v2573 = vmul.f32 %v2572, %v1996
        %v2574 = vsub.f32 %v2570, %v2573
        %v2575 = vmul.f32 %v2574, %v2574
        %2576 = vadd.xlane.f32.xlu0 %v2575
        %v2577 = vpop.xlane.xlu0 %2576
        %v2578 = vmul.f32 %v2577, %v1996
        %v2579 = vadd.f32 %v2578, 1e-05
        %v2580 = vrsqrt.pop %v2579
        %v2581 = vmul.f32 %v2574, %v2580
        %v2583 = vlaneseq
        %v2584 = vshrl.u32 %v2583, 7
        %v2585 = vsub.s32 0, %v2584
        %v2586 = vrot.slane %v643, %v2585
        %v2588 = vmul.f32 %v2581, %v2586
        %v2590 = vlaneseq
        %v2591 = vshrl.u32 %v2590, 7
        %v2592 = vsub.s32 0, %v2591
        %v2593 = vrot.slane %v644, %v2592
        %v2595 = vadd.f32 %v2588, %v2593
        %v2596 = vrot.slane %v2595, 4
        %v2597 = vadd.f32 %v2595, %v2596
        %v2598 = vrot.slane %v2597, 2
        %v2599 = vadd.f32 %v2597, %v2598
        %v2600 = vrot.slane %v2599, 1
        %v2601 = vadd.f32 %v2599, %v2600
        %v2602 = vrcp.pop 8.0
        %v2603 = vmul.f32 %v2601, %v2602
        %v2604 = vld [vmem:[%s13] sm:$0x1]
        %v2605 = vld [vmem:[%s14] sm:$0x1]
        %2606 = vadd.xlane.f32.xlu0 %v2603
        %v2607 = vpop.xlane.xlu0 %2606
        %v2608 = vmul.f32 %v2607, %v1996
        %v2609 = vsub.f32 %v2603, %v2608
        %v2610 = vmul.f32 %v2609, %v2609
        %2611 = vadd.xlane.f32.xlu0 %v2610
        %v2612 = vpop.xlane.xlu0 %2611
        %v2613 = vmul.f32 %v2612, %v1996
        %v2614 = vadd.f32 %v2613, 1e-05
        %v2615 = vrsqrt.pop %v2614
        %v2616 = vmul.f32 %v2609, %v2615
        %v2617 = vmul.f32 %v2616, %v2604
        %v2618 = vadd.f32 %v2617, %v2605
        %2619 = vst [vmem:[%s484] sm:$0x1] %v2618
        %s2620 = sand.u32 %s357, 1
        %s2621 = scalar_lea.sflag [#allocation3], %s2620
        %s2622 = sand.u32 %s357, 1
        %s2623 = scalar_lea.vmem [#allocation2], %s2622
        // Predicated region
        $region81: #{audio_feature_encoder.5} parent=79 // pred_check
          %p2624 = pneg %p367
        $region82: #{audio_feature_encoder.5} parent=79 // pred_check_branch
          %2626 = sbr.rel (%p2624) target = $region84
        $region83: #{audio_feature_encoder.5} parent=79 // pred_region
          %s2628 = ssub.s32 16, 16
          %2629 = vsyncadd %s2621, %s2628
          %s2630 = smul.addr %s29, 16
          %s2631 = scalar_lea.hbm %s15, %s2630
          %s2633 = sshll.u32 %s2623, 4
          %s2634 = int_to_ptr.vmem [resolvable:$true] %s2633
          %2636 = dma.vmem_to_hbm [thread:$0]  %s2634, 16, %s2631, %s2621
        $region84: #{audio_feature_encoder.5} parent=79 // pred_fallthru
          _
      $region80: #{audio_feature_encoder.5} parent=5 // pred_fallthru
        _
      %p2637 = scmp.le.s32.totalorder 2, %s24
      // Predicated region
      $region85: #{audio_feature_encoder.5} parent=5 // pred_check
        %p2638 = pneg %p2637
      $region86: #{audio_feature_encoder.5} parent=5 // pred_check_branch
        %2640 = sbr.rel (%p2638) target = $region88
      $region87: #{audio_feature_encoder.5} parent=5 // pred_region
        %s2641 = ssub.s32 %s24, 2
        // Predicated region
        $region89: #{audio_feature_encoder.5} parent=87 // pred_check
          %p2642 = pneg %p373
        $region90: #{audio_feature_encoder.5} parent=87 // pred_check_branch
          %2644 = sbr.rel (%p2642) target = $region92
        $region91: #{audio_feature_encoder.5} parent=87 // pred_region
          %s2645 = sand.u32 %s358, 1
          %s2646 = scalar_lea.sflag [#allocation3], %s2645
          %s2647 = sand.u32 %s358, 1
          %s2648 = scalar_lea.vmem [#allocation2], %s2647
          %2649 = dma.done %s2646, 16
        $region92: #{audio_feature_encoder.5} parent=87 // pred_fallthru
          _
      $region88: #{audio_feature_encoder.5} parent=5 // pred_fallthru
        _
    $region6: #{audio_feature_encoder.5} parent=1 // loop_footer
      %s28 = sadd.s32 1, %s24
    $region7: #{audio_feature_encoder.5} parent=1 // loop_footer_branch
      %23 = sbr.rel target = $region3
    $region8: #{audio_feature_encoder.5} parent=1 // loop_exit
      _
    %2650 = vsyncpa [#allocation3], 1
    %s2651 = scalar_lea.sflag [#allocation3], 1
    %2652 = vsyncpa %s2651, 1

</llo_original>
